<compile_context>
chip_gen: v7x
topology: tpu7x:2x2x1
jax: 0.10.0
libtpu: 0.0.40
codegen_flags: <defaults>
</compile_context>

<pallas_src>
import functools
import numpy as np
import jax
import jax.numpy as jnp
from jax import lax
from jax.experimental import pallas as pl
from jax.experimental.pallas import tpu as pltpu


# -----------------------------------------------------------------------------
# Parameter setup (equivalent of Cube2Equirec.__init__, deterministic, no files)
# -----------------------------------------------------------------------------
def make_sample_grid(face_w, equ_h, equ_w):
    # _equirect_facetype
    tp = np.roll(
        np.arange(4).repeat(equ_w // 4)[None, :].repeat(equ_h, 0),
        3 * equ_w // 8, 1)
    mask = np.zeros((equ_h, equ_w // 4), bool)
    idx = np.linspace(-np.pi, np.pi, equ_w // 4) / 4
    idx = equ_h // 2 - np.round(np.arctan(np.cos(idx)) * equ_h / np.pi).astype(int)
    for i, j in enumerate(idx):
        mask[:j, i] = 1
    mask = np.roll(np.concatenate([mask] * 4, 1), 3 * equ_w // 8, 1)
    tp[mask] = 4
    tp[np.flip(mask, 0)] = 5

    # _equirect_faceuv
    lon = ((np.linspace(0, equ_w - 1, num=equ_w, dtype=np.float32) + 0.5) / equ_w - 0.5) * 2 * np.pi
    lat = -((np.linspace(0, equ_h - 1, num=equ_h, dtype=np.float32) + 0.5) / equ_h - 0.5) * np.pi
    lon, lat = np.meshgrid(lon, lat)
    coor_u = np.zeros((equ_h, equ_w), dtype=np.float32)
    coor_v = np.zeros((equ_h, equ_w), dtype=np.float32)
    for i in range(4):
        m = tp == i
        coor_u[m] = 0.5 * np.tan(lon[m] - np.pi * i / 2)
        coor_v[m] = -0.5 * np.tan(lat[m]) / np.cos(lon[m] - np.pi * i / 2)
    m = tp == 4
    c = 0.5 * np.tan(np.pi / 2 - lat[m])
    coor_u[m] = c * np.sin(lon[m])
    coor_v[m] = c * np.cos(lon[m])
    m = tp == 5
    c = 0.5 * np.tan(np.pi / 2 - np.abs(lat[m]))
    coor_u[m] = c * np.sin(lon[m])
    coor_v[m] = -c * np.cos(lon[m])
    coor_u = np.clip(coor_u, -0.5, 0.5) * 2
    coor_v = np.clip(coor_v, -0.5, 0.5) * 2
    return coor_u.astype(np.float32), coor_v.astype(np.float32), tp.astype(np.int32)


# -----------------------------------------------------------------------------
# Pallas kernel: one (TQ, TP) weight strip + (M, TQ)@(TQ, TP) MXU accumulate
# -----------------------------------------------------------------------------
def _c2e_kernel(grid_ref, cube_ref, out_ref, acc_ref, wt_ref, *, face_w):
    q_idx = pl.program_id(1)
    last_q = pl.num_programs(1) - 1
    tq, tp = wt_ref.shape
    fw = face_w

    g = grid_ref[...]                       # (8, TP) f32
    u = g[0:1, :]                           # x within face  (W axis)
    v = g[1:2, :]                           # y within face  (H axis)
    face = g[2:3, :]                        # exact integer face id 0..5

    # align_corners=True unnormalization: idx = (g + 1)/2 * (size - 1)
    scale = 0.5 * (fw - 1.0)
    fx = (u + 1.0) * scale
    fy = (v + 1.0) * scale
    x0f = jnp.floor(fx)
    y0f = jnp.floor(fy)
    wx1 = fx - x0f
    wx0 = 1.0 - wx1
    wy1 = fy - y0f
    wy0 = 1.0 - wy1

    # padding_mode='border' -> clamp corner coords to the face
    x0 = jnp.clip(x0f, 0.0, fw - 1.0).astype(jnp.int32)
    x1 = jnp.clip(x0f + 1.0, 0.0, fw - 1.0).astype(jnp.int32)
    y0 = jnp.clip(y0f, 0.0, fw - 1.0).astype(jnp.int32)
    y1 = jnp.clip(y0f + 1.0, 0.0, fw - 1.0).astype(jnp.int32)

    # flat source index in the ORIGINAL (fw, 6*fw) layout: q = y*(6*fw) + f*fw + x
    fcol = face.astype(jnp.int32) * fw      # (1, TP)
    row_stride = 6 * fw

    # absolute source-row index for every row of this Q tile (hoisted iota)
    qi = q_idx * tq + lax.broadcasted_iota(jnp.int32, (tq, tp), 0)

    # 4 bilinear corners (face interpolation dropped: face id is integer, wz==1)
    corners = (
        (y0, x0, wy0 * wx0),
        (y0, x1, wy0 * wx1),
        (y1, x0, wy1 * wx0),
        (y1, x1, wy1 * wx1),
    )
    first = True
    for yc, xc, w in corners:
        flat = yc * row_stride + fcol + xc          # (1, TP) int32
        hot = jnp.where(qi == flat, w, 0.0)         # (TQ, TP) f32
        if first:
            wt_ref[...] = hot
            first = False
        else:
            wt_ref[...] += hot

    @pl.when(q_idx == 0)
    def _():
        acc_ref[...] = jnp.zeros_like(acc_ref)

    cube = cube_ref[...]                            # (M_pad, TQ)
    if cube_ref.dtype != jnp.bfloat16:
        cube = cube.astype(jnp.bfloat16)
    acc_ref[...] += jnp.dot(cube, wt_ref[...].astype(jnp.bfloat16),
                            preferred_element_type=jnp.float32)

    @pl.when(q_idx == last_q)
    def _():
        out_ref[...] = acc_ref[...].astype(out_ref.dtype)


# -----------------------------------------------------------------------------
# Wrapper: layout padding + pallas_call
# -----------------------------------------------------------------------------
def cube2equirec(cube_feat, face_w, equ_h, equ_w, *, tp_max=1024, tq_max=512):
    bs, ch, h, w = cube_feat.shape
    assert h == face_w and w == 6 * face_w
    P = equ_h * equ_w
    Q = 6 * face_w * face_w
    M = bs * ch

    def rup(x, m):
        return (x + m - 1) // m * m

    TP = min(tp_max, rup(P, 128))           # pixel tile (lanes)
    TQ = min(tq_max, rup(Q, 128))           # source tile (reduction)
    P_pad = rup(P, TP)
    Q_pad = rup(Q, TQ)
    M_pad = rup(M, 16)                      # sublane/bf16-packing friendly rows

    coor_u, coor_v, tp_face = make_sample_grid(face_w, equ_h, equ_w)
    grid_np = np.zeros((8, P_pad), np.float32)          # padded to 8 sublanes
    grid_np[0, :P] = coor_u.reshape(-1)
    grid_np[1, :P] = coor_v.reshape(-1)
    grid_np[2, :P] = tp_face.reshape(-1).astype(np.float32)
    grid_uvf = jnp.asarray(grid_np)

    # Original NCHW layout flattened: row = b*ch + c, col = y*(6*fw) + f*fw + x.
    # Pure reshape -> no transpose / extra HBM pass.
    cube_flat = cube_feat.reshape(M, Q)
    if M_pad != M or Q_pad != Q:
        cube_flat = jnp.pad(cube_flat, ((0, M_pad - M), (0, Q_pad - Q)))

    kernel = functools.partial(_c2e_kernel, face_w=face_w)
    out = pl.pallas_call(
        kernel,
        out_shape=jax.ShapeDtypeStruct((M_pad, P_pad), cube_feat.dtype),
        grid=(P_pad // TP, Q_pad // TQ),
        in_specs=[
            pl.BlockSpec((8, TP), lambda p, q: (0, p)),        # sample grid
            pl.BlockSpec((M_pad, TQ), lambda p, q: (0, q)),    # cube rows
        ],
        out_specs=pl.BlockSpec((M_pad, TP), lambda p, q: (0, p)),
        scratch_shapes=[
            pltpu.VMEM((M_pad, TP), jnp.float32),   # f32 accumulator
            pltpu.VMEM((TQ, TP), jnp.float32),      # weight strip
        ],
        compiler_params=pltpu.CompilerParams(
            dimension_semantics=("parallel", "arbitrary"),
            vmem_limit_bytes=48 * 1024 * 1024,
        ),
    )(grid_uvf, cube_flat)

    return out[:M, :P].reshape(bs, ch, equ_h, equ_w)


# -----------------------------------------------------------------------------
# Pure-JAX reference: exact replica of the module math (trilinear grid_sample,
# border padding, align_corners=True, z = tp/2.5 - 1 round-trip).
# -----------------------------------------------------------------------------
def cube2equirec_ref(cube_feat, face_w, equ_h, equ_w):
    bs, ch, h, w = cube_feat.shape
    coor_u, coor_v, tp_int = make_sample_grid(face_w, equ_h, equ_w)
    u = jnp.asarray(coor_u.reshape(-1))
    v = jnp.asarray(coor_v.reshape(-1))
    t = jnp.asarray((tp_int.astype(np.float32) / 2.5 - 1.0).reshape(-1))

    cube_flat = cube_feat.reshape(bs, ch, h * w).astype(jnp.float32)
    fw = float(face_w)
    fx = (u + 1.0) * 0.5 * (fw - 1.0)
    fy = (v + 1.0) * 0.5 * (fw - 1.0)
    fz = (t + 1.0) * 0.5 * 5.0
    x0 = jnp.floor(fx); y0 = jnp.floor(fy); z0 = jnp.floor(fz)
    wx1 = fx - x0; wx0 = 1.0 - wx1
    wy1 = fy - y0; wy0 = 1.0 - wy1
    wz1 = fz - z0; wz0 = 1.0 - wz1

    out = jnp.zeros((bs, ch, u.shape[0]), jnp.float32)
    for dz, wz in ((z0, wz0), (z0 + 1.0, wz1)):
        zc = jnp.clip(dz, 0.0, 5.0)
        for dy, wy in ((y0, wy0), (y0 + 1.0, wy1)):
            yc = jnp.clip(dy, 0.0, fw - 1.0)
            for dx, wx in ((x0, wx0), (x0 + 1.0, wx1)):
                xc = jnp.clip(dx, 0.0, fw - 1.0)
                flat = (yc * (6.0 * fw) + zc * fw + xc).astype(jnp.int32)
                vals = jnp.take(cube_flat, flat, axis=-1)      # (bs, ch, P)
                out = out + vals * (wz * wy * wx)[None, None, :]
    return out.reshape(bs, ch, equ_h, equ_w).astype(cube_feat.dtype)


if __name__ == "__main__":
    face_w, equ_h, equ_w = 8, 16, 32
    bs, ch = 2, 4

    key = jax.random.PRNGKey(0)
    cube_feat = jax.random.normal(key, (bs, ch, face_w, 6 * face_w), dtype=jnp.float32)

    out = jax.block_until_ready(cube2equirec(cube_feat, face_w, equ_h, equ_w))
    assert out.shape == (bs, ch, equ_h, equ_w), out.shape

    ref = jax.block_until_ready(cube2equirec_ref(cube_feat, face_w, equ_h, equ_w))
    # bf16 MXU operands (f32 accumulation) -> ~4e-3 relative operand error.
    np.testing.assert_allclose(np.asarray(out), np.asarray(ref), rtol=5e-2, atol=5e-2)

    print("KERNEL_OK")
</pallas_src>

<mosaic_0001>
module attributes {stable_mosaic.version = 11 : i64} {
  func.func @_c2e_kernel(%arg0: i32, %arg1: i32, %arg2: memref<8x512xf32, #tpu.memory_space<vmem>>, %arg3: memref<16x384xf32, #tpu.memory_space<vmem>>, %arg4: memref<16x512xf32, #tpu.memory_space<vmem>>, %arg5: memref<16x512xf32, #tpu.memory_space<vmem>>, %arg6: memref<384x512xf32, #tpu.memory_space<vmem>>) attributes {dimension_semantics = [#tpu.dimension_semantics<parallel>, #tpu.dimension_semantics<arbitrary>], iteration_bounds = array<i64: 1, 1>, scalar_prefetch = 0 : i64, scratch_operands = 2 : i64, tpu.core_type = #tpu.core_type<tc>, window_params = [{transform_indices = @transform_0, window_bounds = array<i64: 8, 512>}, {transform_indices = @transform_1, window_bounds = array<i64: 16, 384>}, {transform_indices = @transform_2, window_bounds = array<i64: 16, 512>}]} {
    %c0 = arith.constant 0 : index
    %c0_0 = arith.constant 0 : index
    %0 = vector.load %arg2[%c0, %c0_0] : memref<8x512xf32, #tpu.memory_space<vmem>>, vector<8x512xf32>
    %1 = vector.extract_strided_slice %0 {offsets = [0, 0], sizes = [1, 512], strides = [1, 1]} : vector<8x512xf32> to vector<1x512xf32>
    %2 = vector.extract_strided_slice %0 {offsets = [1, 0], sizes = [1, 512], strides = [1, 1]} : vector<8x512xf32> to vector<1x512xf32>
    %3 = vector.extract_strided_slice %0 {offsets = [2, 0], sizes = [1, 512], strides = [1, 1]} : vector<8x512xf32> to vector<1x512xf32>
    %cst = arith.constant 1.000000e+00 : f32
    %4 = vector.broadcast %cst : f32 to vector<1x512xf32>
    %5 = arith.addf %1, %4 : vector<1x512xf32>
    %cst_1 = arith.constant 3.500000e+00 : f32
    %6 = vector.broadcast %cst_1 : f32 to vector<1x512xf32>
    %7 = arith.mulf %5, %6 : vector<1x512xf32>
    %cst_2 = arith.constant 1.000000e+00 : f32
    %8 = vector.broadcast %cst_2 : f32 to vector<1x512xf32>
    %9 = arith.addf %2, %8 : vector<1x512xf32>
    %cst_3 = arith.constant 3.500000e+00 : f32
    %10 = vector.broadcast %cst_3 : f32 to vector<1x512xf32>
    %11 = arith.mulf %9, %10 : vector<1x512xf32>
    %12 = math.floor %7 : vector<1x512xf32>
    %13 = math.floor %11 : vector<1x512xf32>
    %14 = arith.subf %7, %12 : vector<1x512xf32>
    %cst_4 = arith.constant 1.000000e+00 : f32
    %15 = vector.broadcast %cst_4 : f32 to vector<1x512xf32>
    %16 = arith.subf %15, %14 : vector<1x512xf32>
    %17 = arith.subf %11, %13 : vector<1x512xf32>
    %cst_5 = arith.constant 1.000000e+00 : f32
    %18 = vector.broadcast %cst_5 : f32 to vector<1x512xf32>
    %19 = arith.subf %18, %17 : vector<1x512xf32>
    %cst_6 = arith.constant 0.000000e+00 : f32
    %cst_7 = arith.constant 7.000000e+00 : f32
    %20 = vector.broadcast %cst_6 : f32 to vector<1x512xf32>
    %21 = arith.maximumf %20, %12 : vector<1x512xf32>
    %22 = vector.broadcast %cst_7 : f32 to vector<1x512xf32>
    %23 = arith.minimumf %22, %21 : vector<1x512xf32>
    %24 = arith.fptosi %23 : vector<1x512xf32> to vector<1x512xi32>
    %cst_8 = arith.constant 1.000000e+00 : f32
    %25 = vector.broadcast %cst_8 : f32 to vector<1x512xf32>
    %26 = arith.addf %12, %25 : vector<1x512xf32>
    %cst_9 = arith.constant 0.000000e+00 : f32
    %cst_10 = arith.constant 7.000000e+00 : f32
    %27 = vector.broadcast %cst_9 : f32 to vector<1x512xf32>
    %28 = arith.maximumf %27, %26 : vector<1x512xf32>
    %29 = vector.broadcast %cst_10 : f32 to vector<1x512xf32>
    %30 = arith.minimumf %29, %28 : vector<1x512xf32>
    %31 = arith.fptosi %30 : vector<1x512xf32> to vector<1x512xi32>
    %cst_11 = arith.constant 0.000000e+00 : f32
    %cst_12 = arith.constant 7.000000e+00 : f32
    %32 = vector.broadcast %cst_11 : f32 to vector<1x512xf32>
    %33 = arith.maximumf %32, %13 : vector<1x512xf32>
    %34 = vector.broadcast %cst_12 : f32 to vector<1x512xf32>
    %35 = arith.minimumf %34, %33 : vector<1x512xf32>
    %36 = arith.fptosi %35 : vector<1x512xf32> to vector<1x512xi32>
    %cst_13 = arith.constant 1.000000e+00 : f32
    %37 = vector.broadcast %cst_13 : f32 to vector<1x512xf32>
    %38 = arith.addf %13, %37 : vector<1x512xf32>
    %cst_14 = arith.constant 0.000000e+00 : f32
    %cst_15 = arith.constant 7.000000e+00 : f32
    %39 = vector.broadcast %cst_14 : f32 to vector<1x512xf32>
    %40 = arith.maximumf %39, %38 : vector<1x512xf32>
    %41 = vector.broadcast %cst_15 : f32 to vector<1x512xf32>
    %42 = arith.minimumf %41, %40 : vector<1x512xf32>
    %43 = arith.fptosi %42 : vector<1x512xf32> to vector<1x512xi32>
    %44 = arith.fptosi %3 : vector<1x512xf32> to vector<1x512xi32>
    %c8_i32 = arith.constant 8 : i32
    %45 = vector.broadcast %c8_i32 : i32 to vector<1x512xi32>
    %46 = arith.muli %44, %45 : vector<1x512xi32>
    %c384_i32 = arith.constant 384 : i32
    %47 = arith.muli %arg1, %c384_i32 : i32
    %48 = tpu.iota {dimensions = array<i32: 0>} : vector<384x512xi32>
    %49 = vector.broadcast %47 : i32 to vector<384x512xi32>
    %50 = arith.addi %49, %48 : vector<384x512xi32>
    %51 = arith.mulf %19, %16 : vector<1x512xf32>
    %52 = arith.mulf %19, %14 : vector<1x512xf32>
    %53 = arith.mulf %17, %16 : vector<1x512xf32>
    %54 = arith.mulf %17, %14 : vector<1x512xf32>
    %c48_i32 = arith.constant 48 : i32
    %55 = vector.broadcast %c48_i32 : i32 to vector<1x512xi32>
    %56 = arith.muli %36, %55 : vector<1x512xi32>
    %57 = arith.addi %56, %46 : vector<1x512xi32>
    %58 = arith.addi %57, %24 : vector<1x512xi32>
    %59 = vector.broadcast %58 : vector<1x512xi32> to vector<384x512xi32>
    %60 = arith.cmpi eq, %50, %59 : vector<384x512xi32>
    %cst_16 = arith.constant 0.000000e+00 : f32
    %61 = vector.shape_cast %51 : vector<1x512xf32> to vector<1x512xf32>
    %62 = vector.broadcast %61 : vector<1x512xf32> to vector<384x512xf32>
    %63 = vector.broadcast %cst_16 : f32 to vector<384x512xf32>
    %64 = arith.select %60, %62, %63 : vector<384x512xi1>, vector<384x512xf32>
    %c0_17 = arith.constant 0 : index
    %c0_18 = arith.constant 0 : index
    %65 = vector.load %arg6[%c0_17, %c0_18] : memref<384x512xf32, #tpu.memory_space<vmem>>, vector<384x512xf32>
    tpu.vector_store %arg6[%c0_17, %c0_18], %64 {strides = array<i32>} : memref<384x512xf32, #tpu.memory_space<vmem>>, vector<384x512xf32>,
    %c48_i32_19 = arith.constant 48 : i32
    %66 = vector.broadcast %c48_i32_19 : i32 to vector<1x512xi32>
    %67 = arith.muli %36, %66 : vector<1x512xi32>
    %68 = arith.addi %67, %46 : vector<1x512xi32>
    %69 = arith.addi %68, %31 : vector<1x512xi32>
    %70 = vector.broadcast %69 : vector<1x512xi32> to vector<384x512xi32>
    %71 = arith.cmpi eq, %50, %70 : vector<384x512xi32>
    %cst_20 = arith.constant 0.000000e+00 : f32
    %72 = vector.shape_cast %52 : vector<1x512xf32> to vector<1x512xf32>
    %73 = vector.broadcast %72 : vector<1x512xf32> to vector<384x512xf32>
    %74 = vector.broadcast %cst_20 : f32 to vector<384x512xf32>
    %75 = arith.select %71, %73, %74 : vector<384x512xi1>, vector<384x512xf32>
    %c0_21 = arith.constant 0 : index
    %c0_22 = arith.constant 0 : index
    %76 = vector.load %arg6[%c0_21, %c0_22] : memref<384x512xf32, #tpu.memory_space<vmem>>, vector<384x512xf32>
    %77 = arith.addf %76, %75 : vector<384x512xf32>
    %c0_23 = arith.constant 0 : index
    %c0_24 = arith.constant 0 : index
    %78 = vector.load %arg6[%c0_23, %c0_24] : memref<384x512xf32, #tpu.memory_space<vmem>>, vector<384x512xf32>
    tpu.vector_store %arg6[%c0_23, %c0_24], %77 {strides = array<i32>} : memref<384x512xf32, #tpu.memory_space<vmem>>, vector<384x512xf32>,
    %c48_i32_25 = arith.constant 48 : i32
    %79 = vector.broadcast %c48_i32_25 : i32 to vector<1x512xi32>
    %80 = arith.muli %43, %79 : vector<1x512xi32>
    %81 = arith.addi %80, %46 : vector<1x512xi32>
    %82 = arith.addi %81, %24 : vector<1x512xi32>
    %83 = vector.broadcast %82 : vector<1x512xi32> to vector<384x512xi32>
    %84 = arith.cmpi eq, %50, %83 : vector<384x512xi32>
    %cst_26 = arith.constant 0.000000e+00 : f32
    %85 = vector.shape_cast %53 : vector<1x512xf32> to vector<1x512xf32>
    %86 = vector.broadcast %85 : vector<1x512xf32> to vector<384x512xf32>
    %87 = vector.broadcast %cst_26 : f32 to vector<384x512xf32>
    %88 = arith.select %84, %86, %87 : vector<384x512xi1>, vector<384x512xf32>
    %c0_27 = arith.constant 0 : index
    %c0_28 = arith.constant 0 : index
    %89 = vector.load %arg6[%c0_27, %c0_28] : memref<384x512xf32, #tpu.memory_space<vmem>>, vector<384x512xf32>
    %90 = arith.addf %89, %88 : vector<384x512xf32>
    %c0_29 = arith.constant 0 : index
    %c0_30 = arith.constant 0 : index
    %91 = vector.load %arg6[%c0_29, %c0_30] : memref<384x512xf32, #tpu.memory_space<vmem>>, vector<384x512xf32>
    tpu.vector_store %arg6[%c0_29, %c0_30], %90 {strides = array<i32>} : memref<384x512xf32, #tpu.memory_space<vmem>>, vector<384x512xf32>,
    %c48_i32_31 = arith.constant 48 : i32
    %92 = vector.broadcast %c48_i32_31 : i32 to vector<1x512xi32>
    %93 = arith.muli %43, %92 : vector<1x512xi32>
    %94 = arith.addi %93, %46 : vector<1x512xi32>
    %95 = arith.addi %94, %31 : vector<1x512xi32>
    %96 = vector.broadcast %95 : vector<1x512xi32> to vector<384x512xi32>
    %97 = arith.cmpi eq, %50, %96 : vector<384x512xi32>
    %cst_32 = arith.constant 0.000000e+00 : f32
    %98 = vector.shape_cast %54 : vector<1x512xf32> to vector<1x512xf32>
    %99 = vector.broadcast %98 : vector<1x512xf32> to vector<384x512xf32>
    %100 = vector.broadcast %cst_32 : f32 to vector<384x512xf32>
    %101 = arith.select %97, %99, %100 : vector<384x512xi1>, vector<384x512xf32>
    %c0_33 = arith.constant 0 : index
    %c0_34 = arith.constant 0 : index
    %102 = vector.load %arg6[%c0_33, %c0_34] : memref<384x512xf32, #tpu.memory_space<vmem>>, vector<384x512xf32>
    %103 = arith.addf %102, %101 : vector<384x512xf32>
    %c0_35 = arith.constant 0 : index
    %c0_36 = arith.constant 0 : index
    %104 = vector.load %arg6[%c0_35, %c0_36] : memref<384x512xf32, #tpu.memory_space<vmem>>, vector<384x512xf32>
    tpu.vector_store %arg6[%c0_35, %c0_36], %103 {strides = array<i32>} : memref<384x512xf32, #tpu.memory_space<vmem>>, vector<384x512xf32>,
    %c0_i32 = arith.constant 0 : i32
    %105 = arith.cmpi eq, %arg1, %c0_i32 : i32
    %106 = arith.extui %105 : i1 to i32
    %c0_i32_37 = arith.constant 0 : i32
    %107 = arith.cmpi ne, %106, %c0_i32_37 : i32
    scf.if %107 {
      %cst_49 = arith.constant 0.000000e+00 : f32
      %119 = vector.broadcast %cst_49 : f32 to vector<16x512xf32>
      %c0_50 = arith.constant 0 : index
      %c0_51 = arith.constant 0 : index
      %120 = vector.load %arg5[%c0_50, %c0_51] : memref<16x512xf32, #tpu.memory_space<vmem>>, vector<16x512xf32>
      tpu.vector_store %arg5[%c0_50, %c0_51], %119 {strides = array<i32>} : memref<16x512xf32, #tpu.memory_space<vmem>>, vector<16x512xf32>,
    } else {
    }
    %c0_38 = arith.constant 0 : index
    %c0_39 = arith.constant 0 : index
    %108 = vector.load %arg3[%c0_38, %c0_39] : memref<16x384xf32, #tpu.memory_space<vmem>>, vector<16x384xf32>
    %109 = arith.truncf %108 : vector<16x384xf32> to vector<16x384xbf16>
    %c0_40 = arith.constant 0 : index
    %c0_41 = arith.constant 0 : index
    %110 = vector.load %arg5[%c0_40, %c0_41] : memref<16x512xf32, #tpu.memory_space<vmem>>, vector<16x512xf32>
    %c0_42 = arith.constant 0 : index
    %c0_43 = arith.constant 0 : index
    %111 = vector.load %arg6[%c0_42, %c0_43] : memref<384x512xf32, #tpu.memory_space<vmem>>, vector<384x512xf32>
    %112 = arith.truncf %111 : vector<384x512xf32> to vector<384x512xbf16>
    %cst_44 = arith.constant dense<0.000000e+00> : vector<16x512xf32>
    %113 = tpu.matmul %109, %112, %cst_44 {dimension_numbers = #tpu.dot_dimension_numbers<[1], [0], [0], [1], [0, 0, 1, 1], [], []>} : vector<16x384xbf16>, vector<384x512xbf16>, vector<16x512xf32> -> vector<16x512xf32>
    %114 = arith.addf %110, %113 : vector<16x512xf32>
    %c0_45 = arith.constant 0 : index
    %c0_46 = arith.constant 0 : index
    %115 = vector.load %arg5[%c0_45, %c0_46] : memref<16x512xf32, #tpu.memory_space<vmem>>, vector<16x512xf32>
    tpu.vector_store %arg5[%c0_45, %c0_46], %114 {strides = array<i32>} : memref<16x512xf32, #tpu.memory_space<vmem>>, vector<16x512xf32>,
    %c0_i32_47 = arith.constant 0 : i32
    %116 = arith.cmpi eq, %arg1, %c0_i32_47 : i32
    %117 = arith.extui %116 : i1 to i32
    %c0_i32_48 = arith.constant 0 : i32
    %118 = arith.cmpi ne, %117, %c0_i32_48 : i32
    scf.if %118 {
      %c0_49 = arith.constant 0 : index
      %c0_50 = arith.constant 0 : index
      %119 = vector.load %arg5[%c0_49, %c0_50] : memref<16x512xf32, #tpu.memory_space<vmem>>, vector<16x512xf32>
      %c0_51 = arith.constant 0 : index
      %c0_52 = arith.constant 0 : index
      %120 = vector.load %arg4[%c0_51, %c0_52] : memref<16x512xf32, #tpu.memory_space<vmem>>, vector<16x512xf32>
      tpu.vector_store %arg4[%c0_51, %c0_52], %119 {strides = array<i32>} : memref<16x512xf32, #tpu.memory_space<vmem>>, vector<16x512xf32>,
    } else {
    }
    return
  }
  func.func @transform_0(%arg0: i32, %arg1: i32) -> (i32, i32) {
    %c0_i32 = arith.constant 0 : i32
    %c0_i32_0 = arith.constant 0 : i32
    return %c0_i32, %arg0 : i32, i32
  }
  func.func @transform_1(%arg0: i32, %arg1: i32) -> (i32, i32) {
    %c0_i32 = arith.constant 0 : i32
    %c0_i32_0 = arith.constant 0 : i32
    return %c0_i32, %arg1 : i32, i32
  }
  func.func @transform_2(%arg0: i32, %arg1: i32) -> (i32, i32) {
    %c0_i32 = arith.constant 0 : i32
    %c0_i32_0 = arith.constant 0 : i32
    return %c0_i32, %arg0 : i32, i32
  }
}

</mosaic_0001>

<llo_original>
// kernel: tpu_custom_call.1
$region0: #{tpu_custom_call.1}
  #allocation0 [shape = 'u32[]', space=smem, size = 0x4, offset = 0x4, fixed_abs, tag = 'smem constant byte address 0x4 - core index']
  #allocation1 [shape = 'u32[144,128]{1,0:T(1,128)}', space=vmem, size = 0x12000, scoped, tag = 'internal scratch']
  #allocation2 [shape = 'f32[16,512]{1,0:T(8,128)}', space=vmem, size = 0x8000, scoped, tag = 'scratch operand']
  #allocation3 [shape = 'f32[384,512]{1,0:T(8,128)}', space=vmem, size = 0xc0000, scoped, tag = 'scratch operand']
  %s0 = inlined_call_operand.hbm [shape: f32[8,512], index: 0, kind: input, shape index: {}]
  %s1 = inlined_call_operand.hbm [shape: f32[16,384], index: 1, kind: input, shape index: {}]
  %s2 = inlined_call_operand.hbm [shape: f32[16,512], index: 2, kind: output, shape index: {}]
  %s3 = sld [smem:[#allocation0]]
  $region34: #{tpu_custom_call.1} parent=0
    _
  %s5 = ssub.s32 1, %s3
  %s6 = scalar_select 0, %s5, %s3
  $region1: #{tpu_custom_call.1} parent=0
    #allocation4 [shape = 'u8[16384]{0}', space=vmem, size = 0x4000, scoped, tag = 'input window, operand 0, single buffered']
    #allocation5 [shape = 's32[1]{0}', space=sflag, size = 0x4, scoped, tag = 'scoped memory for tpu_custom_call.1']
    #allocation6 [shape = 's32[1]{0}', space=sflag, size = 0x4, scoped, tag = 'scoped memory for tpu_custom_call.1']
    #allocation7 [shape = 'u8[24576]{0}', space=vmem, size = 0x6000, scoped, tag = 'input window, operand 1, single buffered']
    #allocation8 [shape = 's32[1]{0}', space=sflag, size = 0x4, scoped, tag = 'scoped memory for tpu_custom_call.1']
    #allocation9 [shape = 'u8[32768]{0}', space=vmem, size = 0x8000, scoped, tag = 'output window, operand 0, single buffered']
    %7 = vsyncpa [#allocation5], 0
    %8 = vsyncpa [#allocation8], 0
    %9 = vsyncpa [#allocation6], 0
    // Predicated region
    $region2: #{tpu_custom_call.1} parent=1 // pred_check
      _
    $region3: #{tpu_custom_call.1} parent=1 // pred_check_branch
      %11 = sbr.rel (0) target = $region5
    $region4: #{tpu_custom_call.1} parent=1 // pred_region
      %s13 = ssub.s32 512, 512
      %14 = vsyncadd [#allocation5], %s13
      %s16 = sshll.u32 [#allocation4], 4
      %s17 = int_to_ptr.vmem [resolvable:$true] %s16
      %19 = dma.hbm_to_vmem [thread:$0]  %s0, 512, %s17, [#allocation5]
    $region5: #{tpu_custom_call.1} parent=1 // pred_fallthru
      _
    // Predicated region
    $region6: #{tpu_custom_call.1} parent=1 // pred_check
      _
    $region7: #{tpu_custom_call.1} parent=1 // pred_check_branch
      %21 = sbr.rel (0) target = $region9
    $region8: #{tpu_custom_call.1} parent=1 // pred_region
      %s23 = ssub.s32 768, 768
      %24 = vsyncadd [#allocation8], %s23
      %s25 = sshll.u32 [#allocation7], 4
      %s26 = int_to_ptr.vmem [resolvable:$true] %s25
      %31 = dma.hbm_to_vmem [thread:$0]  %s1, 768, %s26, [#allocation8], 384, 384, 24
    $region9: #{tpu_custom_call.1} parent=1 // pred_fallthru
      _
    // Predicated region
    $region10: #{tpu_custom_call.1} parent=1 // pred_check
      _
    $region11: #{tpu_custom_call.1} parent=1 // pred_check_branch
      %33 = sbr.rel (0) target = $region13
    $region12: #{tpu_custom_call.1} parent=1 // pred_region
      %34 = dma.done [#allocation5], 512
    $region13: #{tpu_custom_call.1} parent=1 // pred_fallthru
      _
    // Predicated region
    $region14: #{tpu_custom_call.1} parent=1 // pred_check
      _
    $region15: #{tpu_custom_call.1} parent=1 // pred_check_branch
      %36 = sbr.rel (0) target = $region17
    $region16: #{tpu_custom_call.1} parent=1 // pred_region
      %37 = dma.done [#allocation8], 768
    $region17: #{tpu_custom_call.1} parent=1 // pred_fallthru
      _
    %v39 = vld [vmem:[#allocation4] sm:$0xff]
    %v40 = vld [vmem:[#allocation4 + $0x8] sm:$0xff]
    %v41 = vld [vmem:[#allocation4 + $0x10] sm:$0xff]
    %v42 = vld [vmem:[#allocation4 + $0x18] sm:$0xff]
    %v43 = vadd.f32 %v39, 1.0
    %v44 = vadd.f32 %v40, 1.0
    %v45 = vadd.f32 %v41, 1.0
    %v46 = vadd.f32 %v42, 1.0
    %v47 = vmul.f32 %v43, 3.5
    %v48 = vmul.f32 %v44, 3.5
    %v49 = vmul.f32 %v45, 3.5
    %v50 = vmul.f32 %v46, 3.5
    %v51 = vfloor.f32 %v47
    %v52 = vfloor.f32 %v48
    %v53 = vfloor.f32 %v49
    %v54 = vfloor.f32 %v50
    %v55 = vsub.f32 %v47, %v51
    %v56 = vsub.f32 %v48, %v52
    %v57 = vsub.f32 %v49, %v53
    %v58 = vsub.f32 %v50, %v54
    %v59 = vsub.f32 1.0, %v55
    %v60 = vsub.f32 1.0, %v56
    %v61 = vsub.f32 1.0, %v57
    %v62 = vsub.f32 1.0, %v58
    %v63 = vmax.f32 %v51, 0.0
    %v64 = vmax.f32 %v52, 0.0
    %v65 = vmax.f32 %v53, 0.0
    %v66 = vmax.f32 %v54, 0.0
    %v67 = vmin.f32 %v63, 7.0
    %v68 = vmin.f32 %v64, 7.0
    %v69 = vmin.f32 %v65, 7.0
    %v70 = vmin.f32 %v66, 7.0
    %v71 = vcvt.f32.s32.to.zero.pseudo %v67
    %v72 = vcvt.f32.s32.to.zero.pseudo %v68
    %v73 = vcvt.f32.s32.to.zero.pseudo %v69
    %v74 = vcvt.f32.s32.to.zero.pseudo %v70
    %v75 = vadd.f32 %v51, 1.0
    %v76 = vadd.f32 %v52, 1.0
    %v77 = vadd.f32 %v53, 1.0
    %v78 = vadd.f32 %v54, 1.0
    %v79 = vmax.f32 %v75, 0.0
    %v80 = vmax.f32 %v76, 0.0
    %v81 = vmax.f32 %v77, 0.0
    %v82 = vmax.f32 %v78, 0.0
    %v83 = vmin.f32 %v79, 7.0
    %v84 = vmin.f32 %v80, 7.0
    %v85 = vmin.f32 %v81, 7.0
    %v86 = vmin.f32 %v82, 7.0
    %v87 = vcvt.f32.s32.to.zero.pseudo %v83
    %v88 = vcvt.f32.s32.to.zero.pseudo %v84
    %v89 = vcvt.f32.s32.to.zero.pseudo %v85
    %v90 = vcvt.f32.s32.to.zero.pseudo %v86
    %v91 = vcvt.f32.s32.to.zero.pseudo %v39
    %v92 = vcvt.f32.s32.to.zero.pseudo %v40
    %v93 = vcvt.f32.s32.to.zero.pseudo %v41
    %v94 = vcvt.f32.s32.to.zero.pseudo %v42
    %v95 = vmul.u32 %v91, 8
    %v96 = vmul.u32 %v92, 8
    %v97 = vmul.u32 %v93, 8
    %v98 = vmul.u32 %v94, 8
    %s99 = smul.u32 0, 384
    %v100 = vlaneseq
    %v101 = vshrl.u32 %v100, 7
    %v102 = vadd.s32 %v101, 8
    %v103 = vadd.s32 %v101, 16
    %v104 = vadd.s32 %v101, 24
    %v105 = vadd.s32 %v101, 32
    %v106 = vadd.s32 %v101, 40
    %v107 = vadd.s32 %v101, 48
    %v108 = vadd.s32 %v101, 56
    %v109 = vadd.s32 %v101, 64
    %v110 = vadd.s32 %v101, 72
    %v111 = vadd.s32 %v101, 80
    %v112 = vadd.s32 %v101, 88
    %v113 = vadd.s32 %v101, 96
    %v114 = vadd.s32 %v101, 104
    %v115 = vadd.s32 %v101, 112
    %v116 = vadd.s32 %v101, 120
    %v117 = vadd.s32 %v101, 128
    %v118 = vadd.s32 %v101, 136
    %v119 = vadd.s32 %v101, 144
    %v120 = vadd.s32 %v101, 152
    %v121 = vadd.s32 %v101, 160
    %v122 = vadd.s32 %v101, 168
    %v123 = vadd.s32 %v101, 176
    %v124 = vadd.s32 %v101, 184
    %v125 = vadd.s32 %v101, 192
    %v126 = vadd.s32 %v101, 200
    %v127 = vadd.s32 %v101, 208
    %v128 = vadd.s32 %v101, 216
    %v129 = vadd.s32 %v101, 224
    %v130 = vadd.s32 %v101, 232
    %v131 = vadd.s32 %v101, 240
    %v132 = vadd.s32 %v101, 248
    %v133 = vadd.s32 %v101, 256
    %v134 = vadd.s32 %v101, 264
    %v135 = vadd.s32 %v101, 272
    %v136 = vadd.s32 %v101, 280
    %v137 = vadd.s32 %v101, 288
    %v138 = vadd.s32 %v101, 296
    %v139 = vadd.s32 %v101, 304
    %v140 = vadd.s32 %v101, 312
    %v141 = vadd.s32 %v101, 320
    %v142 = vadd.s32 %v101, 328
    %v143 = vadd.s32 %v101, 336
    %v144 = vadd.s32 %v101, 344
    %v145 = vadd.s32 %v101, 352
    %v146 = vadd.s32 %v101, 360
    %v147 = vadd.s32 %v101, 368
    %v148 = vadd.s32 %v101, 376
    %v149 = vstv %s99
    %v150 = vadd.s32 %v149, %v101
    %v151 = vadd.s32 %v149, %v102
    %v152 = vadd.s32 %v149, %v103
    %v153 = vadd.s32 %v149, %v104
    %v154 = vadd.s32 %v149, %v105
    %v155 = vadd.s32 %v149, %v106
    %v156 = vadd.s32 %v149, %v107
    %v157 = vadd.s32 %v149, %v108
    %v158 = vadd.s32 %v149, %v109
    %v159 = vadd.s32 %v149, %v110
    %v160 = vadd.s32 %v149, %v111
    %v161 = vadd.s32 %v149, %v112
    %v162 = vadd.s32 %v149, %v113
    %v163 = vadd.s32 %v149, %v114
    %v164 = vadd.s32 %v149, %v115
    %v165 = vadd.s32 %v149, %v116
    %v166 = vadd.s32 %v149, %v117
    %v167 = vadd.s32 %v149, %v118
    %v168 = vadd.s32 %v149, %v119
    %v169 = vadd.s32 %v149, %v120
    %v170 = vadd.s32 %v149, %v121
    %v171 = vadd.s32 %v149, %v122
    %v172 = vadd.s32 %v149, %v123
    %v173 = vadd.s32 %v149, %v124
    %v174 = vadd.s32 %v149, %v125
    %v175 = vadd.s32 %v149, %v126
    %v176 = vadd.s32 %v149, %v127
    %v177 = vadd.s32 %v149, %v128
    %v178 = vadd.s32 %v149, %v129
    %v179 = vadd.s32 %v149, %v130
    %v180 = vadd.s32 %v149, %v131
    %v181 = vadd.s32 %v149, %v132
    %v182 = vadd.s32 %v149, %v133
    %v183 = vadd.s32 %v149, %v134
    %v184 = vadd.s32 %v149, %v135
    %v185 = vadd.s32 %v149, %v136
    %v186 = vadd.s32 %v149, %v137
    %v187 = vadd.s32 %v149, %v138
    %v188 = vadd.s32 %v149, %v139
    %v189 = vadd.s32 %v149, %v140
    %v190 = vadd.s32 %v149, %v141
    %v191 = vadd.s32 %v149, %v142
    %v192 = vadd.s32 %v149, %v143
    %v193 = vadd.s32 %v149, %v144
    %v194 = vadd.s32 %v149, %v145
    %v195 = vadd.s32 %v149, %v146
    %v196 = vadd.s32 %v149, %v147
    %v197 = vadd.s32 %v149, %v148
    %v202 = vrot.slane %v59, 7
    %v203 = vrot.slane %v60, 7
    %v204 = vrot.slane %v61, 7
    %v205 = vrot.slane %v62, 7
    %v210 = vmul.f32 %v59, %v202
    %v211 = vmul.f32 %v60, %v203
    %v212 = vmul.f32 %v61, %v204
    %v213 = vmul.f32 %v62, %v205
    %v218 = vrot.slane %v55, 7
    %v219 = vrot.slane %v56, 7
    %v220 = vrot.slane %v57, 7
    %v221 = vrot.slane %v58, 7
    %v226 = vmul.f32 %v59, %v218
    %v227 = vmul.f32 %v60, %v219
    %v228 = vmul.f32 %v61, %v220
    %v229 = vmul.f32 %v62, %v221
    %v230 = vmul.f32 %v55, %v202
    %v231 = vmul.f32 %v56, %v203
    %v232 = vmul.f32 %v57, %v204
    %v233 = vmul.f32 %v58, %v205
    %v234 = vmul.f32 %v55, %v218
    %v235 = vmul.f32 %v56, %v219
    %v236 = vmul.f32 %v57, %v220
    %v237 = vmul.f32 %v58, %v221
    %v238 = vmul.u32 %v71, 48
    %v239 = vmul.u32 %v72, 48
    %v240 = vmul.u32 %v73, 48
    %v241 = vmul.u32 %v74, 48
    %v242 = vrot.slane %v95, 1
    %v243 = vrot.slane %v96, 1
    %v244 = vrot.slane %v97, 1
    %v245 = vrot.slane %v98, 1
    %v246 = vadd.s32 %v238, %v242
    %v247 = vadd.s32 %v239, %v243
    %v248 = vadd.s32 %v240, %v244
    %v249 = vadd.s32 %v241, %v245
    %v250 = vrot.slane %v71, 7
    %v251 = vrot.slane %v72, 7
    %v252 = vrot.slane %v73, 7
    %v253 = vrot.slane %v74, 7
    %v254 = vadd.s32 %v246, %v250
    %v255 = vadd.s32 %v247, %v251
    %v256 = vadd.s32 %v248, %v252
    %v257 = vadd.s32 %v249, %v253
    %v258 = vlaneseq
    %v259 = vshrl.u32 %v258, 7
    %v260 = vsub.s32 1, %v259
    %v261 = vrot.slane %v254, %v260
    %v262 = vlaneseq
    %v263 = vshrl.u32 %v262, 7
    %v264 = vsub.s32 1, %v263
    %v265 = vrot.slane %v255, %v264
    %v266 = vlaneseq
    %v267 = vshrl.u32 %v266, 7
    %v268 = vsub.s32 1, %v267
    %v269 = vrot.slane %v256, %v268
    %v270 = vlaneseq
    %v271 = vshrl.u32 %v270, 7
    %v272 = vsub.s32 1, %v271
    %v273 = vrot.slane %v257, %v272
    %vm274 = vcmp.eq.s32.totalorder %v150, %v261
    %vm275 = vcmp.eq.s32.totalorder %v150, %v265
    %vm276 = vcmp.eq.s32.totalorder %v150, %v269
    %vm277 = vcmp.eq.s32.totalorder %v150, %v273
    %vm278 = vcmp.eq.s32.totalorder %v151, %v261
    %vm279 = vcmp.eq.s32.totalorder %v151, %v265
    %vm280 = vcmp.eq.s32.totalorder %v151, %v269
    %vm281 = vcmp.eq.s32.totalorder %v151, %v273
    %vm282 = vcmp.eq.s32.totalorder %v152, %v261
    %vm283 = vcmp.eq.s32.totalorder %v152, %v265
    %vm284 = vcmp.eq.s32.totalorder %v152, %v269
    %vm285 = vcmp.eq.s32.totalorder %v152, %v273
    %vm286 = vcmp.eq.s32.totalorder %v153, %v261
    %vm287 = vcmp.eq.s32.totalorder %v153, %v265
    %vm288 = vcmp.eq.s32.totalorder %v153, %v269
    %vm289 = vcmp.eq.s32.totalorder %v153, %v273
    %vm290 = vcmp.eq.s32.totalorder %v154, %v261
    %vm291 = vcmp.eq.s32.totalorder %v154, %v265
    %vm292 = vcmp.eq.s32.totalorder %v154, %v269
    %vm293 = vcmp.eq.s32.totalorder %v154, %v273
    %vm294 = vcmp.eq.s32.totalorder %v155, %v261
    %vm295 = vcmp.eq.s32.totalorder %v155, %v265
    %vm296 = vcmp.eq.s32.totalorder %v155, %v269
    %vm297 = vcmp.eq.s32.totalorder %v155, %v273
    %vm298 = vcmp.eq.s32.totalorder %v156, %v261
    %vm299 = vcmp.eq.s32.totalorder %v156, %v265
    %vm300 = vcmp.eq.s32.totalorder %v156, %v269
    %vm301 = vcmp.eq.s32.totalorder %v156, %v273
    %vm302 = vcmp.eq.s32.totalorder %v157, %v261
    %vm303 = vcmp.eq.s32.totalorder %v157, %v265
    %vm304 = vcmp.eq.s32.totalorder %v157, %v269
    %vm305 = vcmp.eq.s32.totalorder %v157, %v273
    %vm306 = vcmp.eq.s32.totalorder %v158, %v261
    %vm307 = vcmp.eq.s32.totalorder %v158, %v265
    %vm308 = vcmp.eq.s32.totalorder %v158, %v269
    %vm309 = vcmp.eq.s32.totalorder %v158, %v273
    %vm310 = vcmp.eq.s32.totalorder %v159, %v261
    %vm311 = vcmp.eq.s32.totalorder %v159, %v265
    %vm312 = vcmp.eq.s32.totalorder %v159, %v269
    %vm313 = vcmp.eq.s32.totalorder %v159, %v273
    %vm314 = vcmp.eq.s32.totalorder %v160, %v261
    %vm315 = vcmp.eq.s32.totalorder %v160, %v265
    %vm316 = vcmp.eq.s32.totalorder %v160, %v269
    %vm317 = vcmp.eq.s32.totalorder %v160, %v273
    %vm318 = vcmp.eq.s32.totalorder %v161, %v261
    %vm319 = vcmp.eq.s32.totalorder %v161, %v265
    %vm320 = vcmp.eq.s32.totalorder %v161, %v269
    %vm321 = vcmp.eq.s32.totalorder %v161, %v273
    %vm322 = vcmp.eq.s32.totalorder %v162, %v261
    %vm323 = vcmp.eq.s32.totalorder %v162, %v265
    %vm324 = vcmp.eq.s32.totalorder %v162, %v269
    %vm325 = vcmp.eq.s32.totalorder %v162, %v273
    %vm326 = vcmp.eq.s32.totalorder %v163, %v261
    %vm327 = vcmp.eq.s32.totalorder %v163, %v265
    %vm328 = vcmp.eq.s32.totalorder %v163, %v269
    %vm329 = vcmp.eq.s32.totalorder %v163, %v273
    %vm330 = vcmp.eq.s32.totalorder %v164, %v261
    %vm331 = vcmp.eq.s32.totalorder %v164, %v265
    %vm332 = vcmp.eq.s32.totalorder %v164, %v269
    %vm333 = vcmp.eq.s32.totalorder %v164, %v273
    %vm334 = vcmp.eq.s32.totalorder %v165, %v261
    %vm335 = vcmp.eq.s32.totalorder %v165, %v265
    %vm336 = vcmp.eq.s32.totalorder %v165, %v269
    %vm337 = vcmp.eq.s32.totalorder %v165, %v273
    %vm338 = vcmp.eq.s32.totalorder %v166, %v261
    %vm339 = vcmp.eq.s32.totalorder %v166, %v265
    %vm340 = vcmp.eq.s32.totalorder %v166, %v269
    %vm341 = vcmp.eq.s32.totalorder %v166, %v273
    %vm342 = vcmp.eq.s32.totalorder %v167, %v261
    %vm343 = vcmp.eq.s32.totalorder %v167, %v265
    %vm344 = vcmp.eq.s32.totalorder %v167, %v269
    %vm345 = vcmp.eq.s32.totalorder %v167, %v273
    %vm346 = vcmp.eq.s32.totalorder %v168, %v261
    %vm347 = vcmp.eq.s32.totalorder %v168, %v265
    %vm348 = vcmp.eq.s32.totalorder %v168, %v269
    %vm349 = vcmp.eq.s32.totalorder %v168, %v273
    %vm350 = vcmp.eq.s32.totalorder %v169, %v261
    %vm351 = vcmp.eq.s32.totalorder %v169, %v265
    %vm352 = vcmp.eq.s32.totalorder %v169, %v269
    %vm353 = vcmp.eq.s32.totalorder %v169, %v273
    %vm354 = vcmp.eq.s32.totalorder %v170, %v261
    %vm355 = vcmp.eq.s32.totalorder %v170, %v265
    %vm356 = vcmp.eq.s32.totalorder %v170, %v269
    %vm357 = vcmp.eq.s32.totalorder %v170, %v273
    %vm358 = vcmp.eq.s32.totalorder %v171, %v261
    %vm359 = vcmp.eq.s32.totalorder %v171, %v265
    %vm360 = vcmp.eq.s32.totalorder %v171, %v269
    %vm361 = vcmp.eq.s32.totalorder %v171, %v273
    %vm362 = vcmp.eq.s32.totalorder %v172, %v261
    %vm363 = vcmp.eq.s32.totalorder %v172, %v265
    %vm364 = vcmp.eq.s32.totalorder %v172, %v269
    %vm365 = vcmp.eq.s32.totalorder %v172, %v273
    %vm366 = vcmp.eq.s32.totalorder %v173, %v261
    %vm367 = vcmp.eq.s32.totalorder %v173, %v265
    %vm368 = vcmp.eq.s32.totalorder %v173, %v269
    %vm369 = vcmp.eq.s32.totalorder %v173, %v273
    %vm370 = vcmp.eq.s32.totalorder %v174, %v261
    %vm371 = vcmp.eq.s32.totalorder %v174, %v265
    %vm372 = vcmp.eq.s32.totalorder %v174, %v269
    %vm373 = vcmp.eq.s32.totalorder %v174, %v273
    %vm374 = vcmp.eq.s32.totalorder %v175, %v261
    %vm375 = vcmp.eq.s32.totalorder %v175, %v265
    %vm376 = vcmp.eq.s32.totalorder %v175, %v269
    %vm377 = vcmp.eq.s32.totalorder %v175, %v273
    %vm378 = vcmp.eq.s32.totalorder %v176, %v261
    %vm379 = vcmp.eq.s32.totalorder %v176, %v265
    %vm380 = vcmp.eq.s32.totalorder %v176, %v269
    %vm381 = vcmp.eq.s32.totalorder %v176, %v273
    %vm382 = vcmp.eq.s32.totalorder %v177, %v261
    %vm383 = vcmp.eq.s32.totalorder %v177, %v265
    %vm384 = vcmp.eq.s32.totalorder %v177, %v269
    %vm385 = vcmp.eq.s32.totalorder %v177, %v273
    %vm386 = vcmp.eq.s32.totalorder %v178, %v261
    %vm387 = vcmp.eq.s32.totalorder %v178, %v265
    %vm388 = vcmp.eq.s32.totalorder %v178, %v269
    %vm389 = vcmp.eq.s32.totalorder %v178, %v273
    %vm390 = vcmp.eq.s32.totalorder %v179, %v261
    %vm391 = vcmp.eq.s32.totalorder %v179, %v265
    %vm392 = vcmp.eq.s32.totalorder %v179, %v269
    %vm393 = vcmp.eq.s32.totalorder %v179, %v273
    %vm394 = vcmp.eq.s32.totalorder %v180, %v261
    %vm395 = vcmp.eq.s32.totalorder %v180, %v265
    %vm396 = vcmp.eq.s32.totalorder %v180, %v269
    %vm397 = vcmp.eq.s32.totalorder %v180, %v273
    %vm398 = vcmp.eq.s32.totalorder %v181, %v261
    %vm399 = vcmp.eq.s32.totalorder %v181, %v265
    %vm400 = vcmp.eq.s32.totalorder %v181, %v269
    %vm401 = vcmp.eq.s32.totalorder %v181, %v273
    %vm402 = vcmp.eq.s32.totalorder %v182, %v261
    %vm403 = vcmp.eq.s32.totalorder %v182, %v265
    %vm404 = vcmp.eq.s32.totalorder %v182, %v269
    %vm405 = vcmp.eq.s32.totalorder %v182, %v273
    %vm406 = vcmp.eq.s32.totalorder %v183, %v261
    %vm407 = vcmp.eq.s32.totalorder %v183, %v265
    %vm408 = vcmp.eq.s32.totalorder %v183, %v269
    %vm409 = vcmp.eq.s32.totalorder %v183, %v273
    %vm410 = vcmp.eq.s32.totalorder %v184, %v261
    %vm411 = vcmp.eq.s32.totalorder %v184, %v265
    %vm412 = vcmp.eq.s32.totalorder %v184, %v269
    %vm413 = vcmp.eq.s32.totalorder %v184, %v273
    %vm414 = vcmp.eq.s32.totalorder %v185, %v261
    %vm415 = vcmp.eq.s32.totalorder %v185, %v265
    %vm416 = vcmp.eq.s32.totalorder %v185, %v269
    %vm417 = vcmp.eq.s32.totalorder %v185, %v273
    %vm418 = vcmp.eq.s32.totalorder %v186, %v261
    %vm419 = vcmp.eq.s32.totalorder %v186, %v265
    %vm420 = vcmp.eq.s32.totalorder %v186, %v269
    %vm421 = vcmp.eq.s32.totalorder %v186, %v273
    %vm422 = vcmp.eq.s32.totalorder %v187, %v261
    %vm423 = vcmp.eq.s32.totalorder %v187, %v265
    %vm424 = vcmp.eq.s32.totalorder %v187, %v269
    %vm425 = vcmp.eq.s32.totalorder %v187, %v273
    %vm426 = vcmp.eq.s32.totalorder %v188, %v261
    %vm427 = vcmp.eq.s32.totalorder %v188, %v265
    %vm428 = vcmp.eq.s32.totalorder %v188, %v269
    %vm429 = vcmp.eq.s32.totalorder %v188, %v273
    %vm430 = vcmp.eq.s32.totalorder %v189, %v261
    %vm431 = vcmp.eq.s32.totalorder %v189, %v265
    %vm432 = vcmp.eq.s32.totalorder %v189, %v269
    %vm433 = vcmp.eq.s32.totalorder %v189, %v273
    %vm434 = vcmp.eq.s32.totalorder %v190, %v261
    %vm435 = vcmp.eq.s32.totalorder %v190, %v265
    %vm436 = vcmp.eq.s32.totalorder %v190, %v269
    %vm437 = vcmp.eq.s32.totalorder %v190, %v273
    %vm438 = vcmp.eq.s32.totalorder %v191, %v261
    %vm439 = vcmp.eq.s32.totalorder %v191, %v265
    %vm440 = vcmp.eq.s32.totalorder %v191, %v269
    %vm441 = vcmp.eq.s32.totalorder %v191, %v273
    %vm442 = vcmp.eq.s32.totalorder %v192, %v261
    %vm443 = vcmp.eq.s32.totalorder %v192, %v265
    %vm444 = vcmp.eq.s32.totalorder %v192, %v269
    %vm445 = vcmp.eq.s32.totalorder %v192, %v273
    %vm446 = vcmp.eq.s32.totalorder %v193, %v261
    %vm447 = vcmp.eq.s32.totalorder %v193, %v265
    %vm448 = vcmp.eq.s32.totalorder %v193, %v269
    %vm449 = vcmp.eq.s32.totalorder %v193, %v273
    %vm450 = vcmp.eq.s32.totalorder %v194, %v261
    %vm451 = vcmp.eq.s32.totalorder %v194, %v265
    %vm452 = vcmp.eq.s32.totalorder %v194, %v269
    %vm453 = vcmp.eq.s32.totalorder %v194, %v273
    %vm454 = vcmp.eq.s32.totalorder %v195, %v261
    %vm455 = vcmp.eq.s32.totalorder %v195, %v265
    %vm456 = vcmp.eq.s32.totalorder %v195, %v269
    %vm457 = vcmp.eq.s32.totalorder %v195, %v273
    %vm458 = vcmp.eq.s32.totalorder %v196, %v261
    %vm459 = vcmp.eq.s32.totalorder %v196, %v265
    %vm460 = vcmp.eq.s32.totalorder %v196, %v269
    %vm461 = vcmp.eq.s32.totalorder %v196, %v273
    %vm462 = vcmp.eq.s32.totalorder %v197, %v261
    %vm463 = vcmp.eq.s32.totalorder %v197, %v265
    %vm464 = vcmp.eq.s32.totalorder %v197, %v269
    %vm465 = vcmp.eq.s32.totalorder %v197, %v273
    %v466 = vlaneseq
    %v467 = vshrl.u32 %v466, 7
    %v468 = vsub.s32 1, %v467
    %v469 = vrot.slane %v210, %v468
    %v470 = vlaneseq
    %v471 = vshrl.u32 %v470, 7
    %v472 = vsub.s32 1, %v471
    %v473 = vrot.slane %v211, %v472
    %v474 = vlaneseq
    %v475 = vshrl.u32 %v474, 7
    %v476 = vsub.s32 1, %v475
    %v477 = vrot.slane %v212, %v476
    %v478 = vlaneseq
    %v479 = vshrl.u32 %v478, 7
    %v480 = vsub.s32 1, %v479
    %v481 = vrot.slane %v213, %v480
    %v482 = vsel %vm274, %v469, 0.0
    %v483 = vsel %vm275, %v473, 0.0
    %v484 = vsel %vm276, %v477, 0.0
    %v485 = vsel %vm277, %v481, 0.0
    %v486 = vsel %vm278, %v469, 0.0
    %v487 = vsel %vm279, %v473, 0.0
    %v488 = vsel %vm280, %v477, 0.0
    %v489 = vsel %vm281, %v481, 0.0
    %v490 = vsel %vm282, %v469, 0.0
    %v491 = vsel %vm283, %v473, 0.0
    %v492 = vsel %vm284, %v477, 0.0
    %v493 = vsel %vm285, %v481, 0.0
    %v494 = vsel %vm286, %v469, 0.0
    %v495 = vsel %vm287, %v473, 0.0
    %v496 = vsel %vm288, %v477, 0.0
    %v497 = vsel %vm289, %v481, 0.0
    %v498 = vsel %vm290, %v469, 0.0
    %v499 = vsel %vm291, %v473, 0.0
    %v500 = vsel %vm292, %v477, 0.0
    %v501 = vsel %vm293, %v481, 0.0
    %v502 = vsel %vm294, %v469, 0.0
    %v503 = vsel %vm295, %v473, 0.0
    %v504 = vsel %vm296, %v477, 0.0
    %v505 = vsel %vm297, %v481, 0.0
    %v506 = vsel %vm298, %v469, 0.0
    %v507 = vsel %vm299, %v473, 0.0
    %v508 = vsel %vm300, %v477, 0.0
    %v509 = vsel %vm301, %v481, 0.0
    %v510 = vsel %vm302, %v469, 0.0
    %v511 = vsel %vm303, %v473, 0.0
    %v512 = vsel %vm304, %v477, 0.0
    %v513 = vsel %vm305, %v481, 0.0
    %v514 = vsel %vm306, %v469, 0.0
    %v515 = vsel %vm307, %v473, 0.0
    %v516 = vsel %vm308, %v477, 0.0
    %v517 = vsel %vm309, %v481, 0.0
    %v518 = vsel %vm310, %v469, 0.0
    %v519 = vsel %vm311, %v473, 0.0
    %v520 = vsel %vm312, %v477, 0.0
    %v521 = vsel %vm313, %v481, 0.0
    %v522 = vsel %vm314, %v469, 0.0
    %v523 = vsel %vm315, %v473, 0.0
    %v524 = vsel %vm316, %v477, 0.0
    %v525 = vsel %vm317, %v481, 0.0
    %v526 = vsel %vm318, %v469, 0.0
    %v527 = vsel %vm319, %v473, 0.0
    %v528 = vsel %vm320, %v477, 0.0
    %v529 = vsel %vm321, %v481, 0.0
    %v530 = vsel %vm322, %v469, 0.0
    %v531 = vsel %vm323, %v473, 0.0
    %v532 = vsel %vm324, %v477, 0.0
    %v533 = vsel %vm325, %v481, 0.0
    %v534 = vsel %vm326, %v469, 0.0
    %v535 = vsel %vm327, %v473, 0.0
    %v536 = vsel %vm328, %v477, 0.0
    %v537 = vsel %vm329, %v481, 0.0
    %v538 = vsel %vm330, %v469, 0.0
    %v539 = vsel %vm331, %v473, 0.0
    %v540 = vsel %vm332, %v477, 0.0
    %v541 = vsel %vm333, %v481, 0.0
    %v542 = vsel %vm334, %v469, 0.0
    %v543 = vsel %vm335, %v473, 0.0
    %v544 = vsel %vm336, %v477, 0.0
    %v545 = vsel %vm337, %v481, 0.0
    %v546 = vsel %vm338, %v469, 0.0
    %v547 = vsel %vm339, %v473, 0.0
    %v548 = vsel %vm340, %v477, 0.0
    %v549 = vsel %vm341, %v481, 0.0
    %v550 = vsel %vm342, %v469, 0.0
    %v551 = vsel %vm343, %v473, 0.0
    %v552 = vsel %vm344, %v477, 0.0
    %v553 = vsel %vm345, %v481, 0.0
    %v554 = vsel %vm346, %v469, 0.0
    %v555 = vsel %vm347, %v473, 0.0
    %v556 = vsel %vm348, %v477, 0.0
    %v557 = vsel %vm349, %v481, 0.0
    %v558 = vsel %vm350, %v469, 0.0
    %v559 = vsel %vm351, %v473, 0.0
    %v560 = vsel %vm352, %v477, 0.0
    %v561 = vsel %vm353, %v481, 0.0
    %v562 = vsel %vm354, %v469, 0.0
    %v563 = vsel %vm355, %v473, 0.0
    %v564 = vsel %vm356, %v477, 0.0
    %v565 = vsel %vm357, %v481, 0.0
    %v566 = vsel %vm358, %v469, 0.0
    %v567 = vsel %vm359, %v473, 0.0
    %v568 = vsel %vm360, %v477, 0.0
    %v569 = vsel %vm361, %v481, 0.0
    %v570 = vsel %vm362, %v469, 0.0
    %v571 = vsel %vm363, %v473, 0.0
    %v572 = vsel %vm364, %v477, 0.0
    %v573 = vsel %vm365, %v481, 0.0
    %v574 = vsel %vm366, %v469, 0.0
    %v575 = vsel %vm367, %v473, 0.0
    %v576 = vsel %vm368, %v477, 0.0
    %v577 = vsel %vm369, %v481, 0.0
    %v578 = vsel %vm370, %v469, 0.0
    %v579 = vsel %vm371, %v473, 0.0
    %v580 = vsel %vm372, %v477, 0.0
    %v581 = vsel %vm373, %v481, 0.0
    %v582 = vsel %vm374, %v469, 0.0
    %v583 = vsel %vm375, %v473, 0.0
    %v584 = vsel %vm376, %v477, 0.0
    %v585 = vsel %vm377, %v481, 0.0
    %v586 = vsel %vm378, %v469, 0.0
    %v587 = vsel %vm379, %v473, 0.0
    %v588 = vsel %vm380, %v477, 0.0
    %v589 = vsel %vm381, %v481, 0.0
    %v590 = vsel %vm382, %v469, 0.0
    %v591 = vsel %vm383, %v473, 0.0
    %v592 = vsel %vm384, %v477, 0.0
    %v593 = vsel %vm385, %v481, 0.0
    %v594 = vsel %vm386, %v469, 0.0
    %v595 = vsel %vm387, %v473, 0.0
    %v596 = vsel %vm388, %v477, 0.0
    %v597 = vsel %vm389, %v481, 0.0
    %v598 = vsel %vm390, %v469, 0.0
    %v599 = vsel %vm391, %v473, 0.0
    %v600 = vsel %vm392, %v477, 0.0
    %v601 = vsel %vm393, %v481, 0.0
    %v602 = vsel %vm394, %v469, 0.0
    %v603 = vsel %vm395, %v473, 0.0
    %v604 = vsel %vm396, %v477, 0.0
    %v605 = vsel %vm397, %v481, 0.0
    %v606 = vsel %vm398, %v469, 0.0
    %v607 = vsel %vm399, %v473, 0.0
    %v608 = vsel %vm400, %v477, 0.0
    %v609 = vsel %vm401, %v481, 0.0
    %v610 = vsel %vm402, %v469, 0.0
    %v611 = vsel %vm403, %v473, 0.0
    %v612 = vsel %vm404, %v477, 0.0
    %v613 = vsel %vm405, %v481, 0.0
    %v614 = vsel %vm406, %v469, 0.0
    %v615 = vsel %vm407, %v473, 0.0
    %v616 = vsel %vm408, %v477, 0.0
    %v617 = vsel %vm409, %v481, 0.0
    %v618 = vsel %vm410, %v469, 0.0
    %v619 = vsel %vm411, %v473, 0.0
    %v620 = vsel %vm412, %v477, 0.0
    %v621 = vsel %vm413, %v481, 0.0
    %v622 = vsel %vm414, %v469, 0.0
    %v623 = vsel %vm415, %v473, 0.0
    %v624 = vsel %vm416, %v477, 0.0
    %v625 = vsel %vm417, %v481, 0.0
    %v626 = vsel %vm418, %v469, 0.0
    %v627 = vsel %vm419, %v473, 0.0
    %v628 = vsel %vm420, %v477, 0.0
    %v629 = vsel %vm421, %v481, 0.0
    %v630 = vsel %vm422, %v469, 0.0
    %v631 = vsel %vm423, %v473, 0.0
    %v632 = vsel %vm424, %v477, 0.0
    %v633 = vsel %vm425, %v481, 0.0
    %v634 = vsel %vm426, %v469, 0.0
    %v635 = vsel %vm427, %v473, 0.0
    %v636 = vsel %vm428, %v477, 0.0
    %v637 = vsel %vm429, %v481, 0.0
    %v638 = vsel %vm430, %v469, 0.0
    %v639 = vsel %vm431, %v473, 0.0
    %v640 = vsel %vm432, %v477, 0.0
    %v641 = vsel %vm433, %v481, 0.0
    %v642 = vsel %vm434, %v469, 0.0
    %v643 = vsel %vm435, %v473, 0.0
    %v644 = vsel %vm436, %v477, 0.0
    %v645 = vsel %vm437, %v481, 0.0
    %v646 = vsel %vm438, %v469, 0.0
    %v647 = vsel %vm439, %v473, 0.0
    %v648 = vsel %vm440, %v477, 0.0
    %v649 = vsel %vm441, %v481, 0.0
    %v650 = vsel %vm442, %v469, 0.0
    %v651 = vsel %vm443, %v473, 0.0
    %v652 = vsel %vm444, %v477, 0.0
    %v653 = vsel %vm445, %v481, 0.0
    %v654 = vsel %vm446, %v469, 0.0
    %v655 = vsel %vm447, %v473, 0.0
    %v656 = vsel %vm448, %v477, 0.0
    %v657 = vsel %vm449, %v481, 0.0
    %v658 = vsel %vm450, %v469, 0.0
    %v659 = vsel %vm451, %v473, 0.0
    %v660 = vsel %vm452, %v477, 0.0
    %v661 = vsel %vm453, %v481, 0.0
    %v662 = vsel %vm454, %v469, 0.0
    %v663 = vsel %vm455, %v473, 0.0
    %v664 = vsel %vm456, %v477, 0.0
    %v665 = vsel %vm457, %v481, 0.0
    %v666 = vsel %vm458, %v469, 0.0
    %v667 = vsel %vm459, %v473, 0.0
    %v668 = vsel %vm460, %v477, 0.0
    %v669 = vsel %vm461, %v481, 0.0
    %v670 = vsel %vm462, %v469, 0.0
    %v671 = vsel %vm463, %v473, 0.0
    %v672 = vsel %vm464, %v477, 0.0
    %v673 = vsel %vm465, %v481, 0.0
    %674 = vst [vmem:[#allocation3] sm:$0xff] %v482
    %675 = vst [vmem:[#allocation3 + $0x8] sm:$0xff] %v483
    %676 = vst [vmem:[#allocation3 + $0x10] sm:$0xff] %v484
    %677 = vst [vmem:[#allocation3 + $0x18] sm:$0xff] %v485
    %678 = vst [vmem:[#allocation3 + $0x20] sm:$0xff] %v486
    %679 = vst [vmem:[#allocation3 + $0x28] sm:$0xff] %v487
    %680 = vst [vmem:[#allocation3 + $0x30] sm:$0xff] %v488
    %681 = vst [vmem:[#allocation3 + $0x38] sm:$0xff] %v489
    %682 = vst [vmem:[#allocation3 + $0x40] sm:$0xff] %v490
    %683 = vst [vmem:[#allocation3 + $0x48] sm:$0xff] %v491
    %684 = vst [vmem:[#allocation3 + $0x50] sm:$0xff] %v492
    %685 = vst [vmem:[#allocation3 + $0x58] sm:$0xff] %v493
    %686 = vst [vmem:[#allocation3 + $0x60] sm:$0xff] %v494
    %687 = vst [vmem:[#allocation3 + $0x68] sm:$0xff] %v495
    %688 = vst [vmem:[#allocation3 + $0x70] sm:$0xff] %v496
    %689 = vst [vmem:[#allocation3 + $0x78] sm:$0xff] %v497
    %690 = vst [vmem:[#allocation3 + $0x80] sm:$0xff] %v498
    %691 = vst [vmem:[#allocation3 + $0x88] sm:$0xff] %v499
    %692 = vst [vmem:[#allocation3 + $0x90] sm:$0xff] %v500
    %693 = vst [vmem:[#allocation3 + $0x98] sm:$0xff] %v501
    %694 = vst [vmem:[#allocation3 + $0xa0] sm:$0xff] %v502
    %695 = vst [vmem:[#allocation3 + $0xa8] sm:$0xff] %v503
    %696 = vst [vmem:[#allocation3 + $0xb0] sm:$0xff] %v504
    %697 = vst [vmem:[#allocation3 + $0xb8] sm:$0xff] %v505
    %698 = vst [vmem:[#allocation3 + $0xc0] sm:$0xff] %v506
    %699 = vst [vmem:[#allocation3 + $0xc8] sm:$0xff] %v507
    %700 = vst [vmem:[#allocation3 + $0xd0] sm:$0xff] %v508
    %701 = vst [vmem:[#allocation3 + $0xd8] sm:$0xff] %v509
    %702 = vst [vmem:[#allocation3 + $0xe0] sm:$0xff] %v510
    %703 = vst [vmem:[#allocation3 + $0xe8] sm:$0xff] %v511
    %704 = vst [vmem:[#allocation3 + $0xf0] sm:$0xff] %v512
    %705 = vst [vmem:[#allocation3 + $0xf8] sm:$0xff] %v513
    %706 = vst [vmem:[#allocation3 + $0x100] sm:$0xff] %v514
    %707 = vst [vmem:[#allocation3 + $0x108] sm:$0xff] %v515
    %708 = vst [vmem:[#allocation3 + $0x110] sm:$0xff] %v516
    %709 = vst [vmem:[#allocation3 + $0x118] sm:$0xff] %v517
    %710 = vst [vmem:[#allocation3 + $0x120] sm:$0xff] %v518
    %711 = vst [vmem:[#allocation3 + $0x128] sm:$0xff] %v519
    %712 = vst [vmem:[#allocation3 + $0x130] sm:$0xff] %v520
    %713 = vst [vmem:[#allocation3 + $0x138] sm:$0xff] %v521
    %714 = vst [vmem:[#allocation3 + $0x140] sm:$0xff] %v522
    %715 = vst [vmem:[#allocation3 + $0x148] sm:$0xff] %v523
    %716 = vst [vmem:[#allocation3 + $0x150] sm:$0xff] %v524
    %717 = vst [vmem:[#allocation3 + $0x158] sm:$0xff] %v525
    %718 = vst [vmem:[#allocation3 + $0x160] sm:$0xff] %v526
    %719 = vst [vmem:[#allocation3 + $0x168] sm:$0xff] %v527
    %720 = vst [vmem:[#allocation3 + $0x170] sm:$0xff] %v528
    %721 = vst [vmem:[#allocation3 + $0x178] sm:$0xff] %v529
    %722 = vst [vmem:[#allocation3 + $0x180] sm:$0xff] %v530
    %723 = vst [vmem:[#allocation3 + $0x188] sm:$0xff] %v531
    %724 = vst [vmem:[#allocation3 + $0x190] sm:$0xff] %v532
    %725 = vst [vmem:[#allocation3 + $0x198] sm:$0xff] %v533
    %726 = vst [vmem:[#allocation3 + $0x1a0] sm:$0xff] %v534
    %727 = vst [vmem:[#allocation3 + $0x1a8] sm:$0xff] %v535
    %728 = vst [vmem:[#allocation3 + $0x1b0] sm:$0xff] %v536
    %729 = vst [vmem:[#allocation3 + $0x1b8] sm:$0xff] %v537
    %730 = vst [vmem:[#allocation3 + $0x1c0] sm:$0xff] %v538
    %731 = vst [vmem:[#allocation3 + $0x1c8] sm:$0xff] %v539
    %732 = vst [vmem:[#allocation3 + $0x1d0] sm:$0xff] %v540
    %733 = vst [vmem:[#allocation3 + $0x1d8] sm:$0xff] %v541
    %734 = vst [vmem:[#allocation3 + $0x1e0] sm:$0xff] %v542
    %735 = vst [vmem:[#allocation3 + $0x1e8] sm:$0xff] %v543
    %736 = vst [vmem:[#allocation3 + $0x1f0] sm:$0xff] %v544
    %737 = vst [vmem:[#allocation3 + $0x1f8] sm:$0xff] %v545
    %738 = vst [vmem:[#allocation3 + $0x200] sm:$0xff] %v546
    %739 = vst [vmem:[#allocation3 + $0x208] sm:$0xff] %v547
    %740 = vst [vmem:[#allocation3 + $0x210] sm:$0xff] %v548
    %741 = vst [vmem:[#allocation3 + $0x218] sm:$0xff] %v549
    %742 = vst [vmem:[#allocation3 + $0x220] sm:$0xff] %v550
    %743 = vst [vmem:[#allocation3 + $0x228] sm:$0xff] %v551
    %744 = vst [vmem:[#allocation3 + $0x230] sm:$0xff] %v552
    %745 = vst [vmem:[#allocation3 + $0x238] sm:$0xff] %v553
    %746 = vst [vmem:[#allocation3 + $0x240] sm:$0xff] %v554
    %747 = vst [vmem:[#allocation3 + $0x248] sm:$0xff] %v555
    %748 = vst [vmem:[#allocation3 + $0x250] sm:$0xff] %v556
    %749 = vst [vmem:[#allocation3 + $0x258] sm:$0xff] %v557
    %750 = vst [vmem:[#allocation3 + $0x260] sm:$0xff] %v558
    %751 = vst [vmem:[#allocation3 + $0x268] sm:$0xff] %v559
    %752 = vst [vmem:[#allocation3 + $0x270] sm:$0xff] %v560
    %753 = vst [vmem:[#allocation3 + $0x278] sm:$0xff] %v561
    %754 = vst [vmem:[#allocation3 + $0x280] sm:$0xff] %v562
    %755 = vst [vmem:[#allocation3 + $0x288] sm:$0xff] %v563
    %756 = vst [vmem:[#allocation3 + $0x290] sm:$0xff] %v564
    %757 = vst [vmem:[#allocation3 + $0x298] sm:$0xff] %v565
    %758 = vst [vmem:[#allocation3 + $0x2a0] sm:$0xff] %v566
    %759 = vst [vmem:[#allocation3 + $0x2a8] sm:$0xff] %v567
    %760 = vst [vmem:[#allocation3 + $0x2b0] sm:$0xff] %v568
    %761 = vst [vmem:[#allocation3 + $0x2b8] sm:$0xff] %v569
    %762 = vst [vmem:[#allocation3 + $0x2c0] sm:$0xff] %v570
    %763 = vst [vmem:[#allocation3 + $0x2c8] sm:$0xff] %v571
    %764 = vst [vmem:[#allocation3 + $0x2d0] sm:$0xff] %v572
    %765 = vst [vmem:[#allocation3 + $0x2d8] sm:$0xff] %v573
    %766 = vst [vmem:[#allocation3 + $0x2e0] sm:$0xff] %v574
    %767 = vst [vmem:[#allocation3 + $0x2e8] sm:$0xff] %v575
    %768 = vst [vmem:[#allocation3 + $0x2f0] sm:$0xff] %v576
    %769 = vst [vmem:[#allocation3 + $0x2f8] sm:$0xff] %v577
    %770 = vst [vmem:[#allocation3 + $0x300] sm:$0xff] %v578
    %771 = vst [vmem:[#allocation3 + $0x308] sm:$0xff] %v579
    %772 = vst [vmem:[#allocation3 + $0x310] sm:$0xff] %v580
    %773 = vst [vmem:[#allocation3 + $0x318] sm:$0xff] %v581
    %774 = vst [vmem:[#allocation3 + $0x320] sm:$0xff] %v582
    %775 = vst [vmem:[#allocation3 + $0x328] sm:$0xff] %v583
    %776 = vst [vmem:[#allocation3 + $0x330] sm:$0xff] %v584
    %777 = vst [vmem:[#allocation3 + $0x338] sm:$0xff] %v585
    %778 = vst [vmem:[#allocation3 + $0x340] sm:$0xff] %v586
    %779 = vst [vmem:[#allocation3 + $0x348] sm:$0xff] %v587
    %780 = vst [vmem:[#allocation3 + $0x350] sm:$0xff] %v588
    %781 = vst [vmem:[#allocation3 + $0x358] sm:$0xff] %v589
    %782 = vst [vmem:[#allocation3 + $0x360] sm:$0xff] %v590
    %783 = vst [vmem:[#allocation3 + $0x368] sm:$0xff] %v591
    %784 = vst [vmem:[#allocation3 + $0x370] sm:$0xff] %v592
    %785 = vst [vmem:[#allocation3 + $0x378] sm:$0xff] %v593
    %786 = vst [vmem:[#allocation3 + $0x380] sm:$0xff] %v594
    %787 = vst [vmem:[#allocation3 + $0x388] sm:$0xff] %v595
    %788 = vst [vmem:[#allocation3 + $0x390] sm:$0xff] %v596
    %789 = vst [vmem:[#allocation3 + $0x398] sm:$0xff] %v597
    %790 = vst [vmem:[#allocation3 + $0x3a0] sm:$0xff] %v598
    %791 = vst [vmem:[#allocation3 + $0x3a8] sm:$0xff] %v599
    %792 = vst [vmem:[#allocation3 + $0x3b0] sm:$0xff] %v600
    %793 = vst [vmem:[#allocation3 + $0x3b8] sm:$0xff] %v601
    %794 = vst [vmem:[#allocation3 + $0x3c0] sm:$0xff] %v602
    %795 = vst [vmem:[#allocation3 + $0x3c8] sm:$0xff] %v603
    %796 = vst [vmem:[#allocation3 + $0x3d0] sm:$0xff] %v604
    %797 = vst [vmem:[#allocation3 + $0x3d8] sm:$0xff] %v605
    %798 = vst [vmem:[#allocation3 + $0x3e0] sm:$0xff] %v606
    %799 = vst [vmem:[#allocation3 + $0x3e8] sm:$0xff] %v607
    %800 = vst [vmem:[#allocation3 + $0x3f0] sm:$0xff] %v608
    %801 = vst [vmem:[#allocation3 + $0x3f8] sm:$0xff] %v609
    %802 = vst [vmem:[#allocation3 + $0x400] sm:$0xff] %v610
    %803 = vst [vmem:[#allocation3 + $0x408] sm:$0xff] %v611
    %804 = vst [vmem:[#allocation3 + $0x410] sm:$0xff] %v612
    %805 = vst [vmem:[#allocation3 + $0x418] sm:$0xff] %v613
    %806 = vst [vmem:[#allocation3 + $0x420] sm:$0xff] %v614
    %807 = vst [vmem:[#allocation3 + $0x428] sm:$0xff] %v615
    %808 = vst [vmem:[#allocation3 + $0x430] sm:$0xff] %v616
    %809 = vst [vmem:[#allocation3 + $0x438] sm:$0xff] %v617
    %810 = vst [vmem:[#allocation3 + $0x440] sm:$0xff] %v618
    %811 = vst [vmem:[#allocation3 + $0x448] sm:$0xff] %v619
    %812 = vst [vmem:[#allocation3 + $0x450] sm:$0xff] %v620
    %813 = vst [vmem:[#allocation3 + $0x458] sm:$0xff] %v621
    %814 = vst [vmem:[#allocation3 + $0x460] sm:$0xff] %v622
    %815 = vst [vmem:[#allocation3 + $0x468] sm:$0xff] %v623
    %816 = vst [vmem:[#allocation3 + $0x470] sm:$0xff] %v624
    %817 = vst [vmem:[#allocation3 + $0x478] sm:$0xff] %v625
    %818 = vst [vmem:[#allocation3 + $0x480] sm:$0xff] %v626
    %819 = vst [vmem:[#allocation3 + $0x488] sm:$0xff] %v627
    %820 = vst [vmem:[#allocation3 + $0x490] sm:$0xff] %v628
    %821 = vst [vmem:[#allocation3 + $0x498] sm:$0xff] %v629
    %822 = vst [vmem:[#allocation3 + $0x4a0] sm:$0xff] %v630
    %823 = vst [vmem:[#allocation3 + $0x4a8] sm:$0xff] %v631
    %824 = vst [vmem:[#allocation3 + $0x4b0] sm:$0xff] %v632
    %825 = vst [vmem:[#allocation3 + $0x4b8] sm:$0xff] %v633
    %826 = vst [vmem:[#allocation3 + $0x4c0] sm:$0xff] %v634
    %827 = vst [vmem:[#allocation3 + $0x4c8] sm:$0xff] %v635
    %828 = vst [vmem:[#allocation3 + $0x4d0] sm:$0xff] %v636
    %829 = vst [vmem:[#allocation3 + $0x4d8] sm:$0xff] %v637
    %830 = vst [vmem:[#allocation3 + $0x4e0] sm:$0xff] %v638
    %831 = vst [vmem:[#allocation3 + $0x4e8] sm:$0xff] %v639
    %832 = vst [vmem:[#allocation3 + $0x4f0] sm:$0xff] %v640
    %833 = vst [vmem:[#allocation3 + $0x4f8] sm:$0xff] %v641
    %834 = vst [vmem:[#allocation3 + $0x500] sm:$0xff] %v642
    %835 = vst [vmem:[#allocation3 + $0x508] sm:$0xff] %v643
    %836 = vst [vmem:[#allocation3 + $0x510] sm:$0xff] %v644
    %837 = vst [vmem:[#allocation3 + $0x518] sm:$0xff] %v645
    %838 = vst [vmem:[#allocation3 + $0x520] sm:$0xff] %v646
    %839 = vst [vmem:[#allocation3 + $0x528] sm:$0xff] %v647
    %840 = vst [vmem:[#allocation3 + $0x530] sm:$0xff] %v648
    %841 = vst [vmem:[#allocation3 + $0x538] sm:$0xff] %v649
    %842 = vst [vmem:[#allocation3 + $0x540] sm:$0xff] %v650
    %843 = vst [vmem:[#allocation3 + $0x548] sm:$0xff] %v651
    %844 = vst [vmem:[#allocation3 + $0x550] sm:$0xff] %v652
    %845 = vst [vmem:[#allocation3 + $0x558] sm:$0xff] %v653
    %846 = vst [vmem:[#allocation3 + $0x560] sm:$0xff] %v654
    %847 = vst [vmem:[#allocation3 + $0x568] sm:$0xff] %v655
    %848 = vst [vmem:[#allocation3 + $0x570] sm:$0xff] %v656
    %849 = vst [vmem:[#allocation3 + $0x578] sm:$0xff] %v657
    %850 = vst [vmem:[#allocation3 + $0x580] sm:$0xff] %v658
    %851 = vst [vmem:[#allocation3 + $0x588] sm:$0xff] %v659
    %852 = vst [vmem:[#allocation3 + $0x590] sm:$0xff] %v660
    %853 = vst [vmem:[#allocation3 + $0x598] sm:$0xff] %v661
    %854 = vst [vmem:[#allocation3 + $0x5a0] sm:$0xff] %v662
    %855 = vst [vmem:[#allocation3 + $0x5a8] sm:$0xff] %v663
    %856 = vst [vmem:[#allocation3 + $0x5b0] sm:$0xff] %v664
    %857 = vst [vmem:[#allocation3 + $0x5b8] sm:$0xff] %v665
    %858 = vst [vmem:[#allocation3 + $0x5c0] sm:$0xff] %v666
    %859 = vst [vmem:[#allocation3 + $0x5c8] sm:$0xff] %v667
    %860 = vst [vmem:[#allocation3 + $0x5d0] sm:$0xff] %v668
    %861 = vst [vmem:[#allocation3 + $0x5d8] sm:$0xff] %v669
    %862 = vst [vmem:[#allocation3 + $0x5e0] sm:$0xff] %v670
    %863 = vst [vmem:[#allocation3 + $0x5e8] sm:$0xff] %v671
    %864 = vst [vmem:[#allocation3 + $0x5f0] sm:$0xff] %v672
    %865 = vst [vmem:[#allocation3 + $0x5f8] sm:$0xff] %v673
    %v866 = vrot.slane %v87, 7
    %v867 = vrot.slane %v88, 7
    %v868 = vrot.slane %v89, 7
    %v869 = vrot.slane %v90, 7
    %v870 = vadd.s32 %v246, %v866
    %v871 = vadd.s32 %v247, %v867
    %v872 = vadd.s32 %v248, %v868
    %v873 = vadd.s32 %v249, %v869
    %v874 = vlaneseq
    %v875 = vshrl.u32 %v874, 7
    %v876 = vsub.s32 1, %v875
    %v877 = vrot.slane %v870, %v876
    %v878 = vlaneseq
    %v879 = vshrl.u32 %v878, 7
    %v880 = vsub.s32 1, %v879
    %v881 = vrot.slane %v871, %v880
    %v882 = vlaneseq
    %v883 = vshrl.u32 %v882, 7
    %v884 = vsub.s32 1, %v883
    %v885 = vrot.slane %v872, %v884
    %v886 = vlaneseq
    %v887 = vshrl.u32 %v886, 7
    %v888 = vsub.s32 1, %v887
    %v889 = vrot.slane %v873, %v888
    %vm890 = vcmp.eq.s32.totalorder %v150, %v877
    %vm891 = vcmp.eq.s32.totalorder %v150, %v881
    %vm892 = vcmp.eq.s32.totalorder %v150, %v885
    %vm893 = vcmp.eq.s32.totalorder %v150, %v889
    %vm894 = vcmp.eq.s32.totalorder %v151, %v877
    %vm895 = vcmp.eq.s32.totalorder %v151, %v881
    %vm896 = vcmp.eq.s32.totalorder %v151, %v885
    %vm897 = vcmp.eq.s32.totalorder %v151, %v889
    %vm898 = vcmp.eq.s32.totalorder %v152, %v877
    %vm899 = vcmp.eq.s32.totalorder %v152, %v881
    %vm900 = vcmp.eq.s32.totalorder %v152, %v885
    %vm901 = vcmp.eq.s32.totalorder %v152, %v889
    %vm902 = vcmp.eq.s32.totalorder %v153, %v877
    %vm903 = vcmp.eq.s32.totalorder %v153, %v881
    %vm904 = vcmp.eq.s32.totalorder %v153, %v885
    %vm905 = vcmp.eq.s32.totalorder %v153, %v889
    %vm906 = vcmp.eq.s32.totalorder %v154, %v877
    %vm907 = vcmp.eq.s32.totalorder %v154, %v881
    %vm908 = vcmp.eq.s32.totalorder %v154, %v885
    %vm909 = vcmp.eq.s32.totalorder %v154, %v889
    %vm910 = vcmp.eq.s32.totalorder %v155, %v877
    %vm911 = vcmp.eq.s32.totalorder %v155, %v881
    %vm912 = vcmp.eq.s32.totalorder %v155, %v885
    %vm913 = vcmp.eq.s32.totalorder %v155, %v889
    %vm914 = vcmp.eq.s32.totalorder %v156, %v877
    %vm915 = vcmp.eq.s32.totalorder %v156, %v881
    %vm916 = vcmp.eq.s32.totalorder %v156, %v885
    %vm917 = vcmp.eq.s32.totalorder %v156, %v889
    %vm918 = vcmp.eq.s32.totalorder %v157, %v877
    %vm919 = vcmp.eq.s32.totalorder %v157, %v881
    %vm920 = vcmp.eq.s32.totalorder %v157, %v885
    %vm921 = vcmp.eq.s32.totalorder %v157, %v889
    %vm922 = vcmp.eq.s32.totalorder %v158, %v877
    %vm923 = vcmp.eq.s32.totalorder %v158, %v881
    %vm924 = vcmp.eq.s32.totalorder %v158, %v885
    %vm925 = vcmp.eq.s32.totalorder %v158, %v889
    %vm926 = vcmp.eq.s32.totalorder %v159, %v877
    %vm927 = vcmp.eq.s32.totalorder %v159, %v881
    %vm928 = vcmp.eq.s32.totalorder %v159, %v885
    %vm929 = vcmp.eq.s32.totalorder %v159, %v889
    %vm930 = vcmp.eq.s32.totalorder %v160, %v877
    %vm931 = vcmp.eq.s32.totalorder %v160, %v881
    %vm932 = vcmp.eq.s32.totalorder %v160, %v885
    %vm933 = vcmp.eq.s32.totalorder %v160, %v889
    %vm934 = vcmp.eq.s32.totalorder %v161, %v877
    %vm935 = vcmp.eq.s32.totalorder %v161, %v881
    %vm936 = vcmp.eq.s32.totalorder %v161, %v885
    %vm937 = vcmp.eq.s32.totalorder %v161, %v889
    %vm938 = vcmp.eq.s32.totalorder %v162, %v877
    %vm939 = vcmp.eq.s32.totalorder %v162, %v881
    %vm940 = vcmp.eq.s32.totalorder %v162, %v885
    %vm941 = vcmp.eq.s32.totalorder %v162, %v889
    %vm942 = vcmp.eq.s32.totalorder %v163, %v877
    %vm943 = vcmp.eq.s32.totalorder %v163, %v881
    %vm944 = vcmp.eq.s32.totalorder %v163, %v885
    %vm945 = vcmp.eq.s32.totalorder %v163, %v889
    %vm946 = vcmp.eq.s32.totalorder %v164, %v877
    %vm947 = vcmp.eq.s32.totalorder %v164, %v881
    %vm948 = vcmp.eq.s32.totalorder %v164, %v885
    %vm949 = vcmp.eq.s32.totalorder %v164, %v889
    %vm950 = vcmp.eq.s32.totalorder %v165, %v877
    %vm951 = vcmp.eq.s32.totalorder %v165, %v881
    %vm952 = vcmp.eq.s32.totalorder %v165, %v885
    %vm953 = vcmp.eq.s32.totalorder %v165, %v889
    %vm954 = vcmp.eq.s32.totalorder %v166, %v877
    %vm955 = vcmp.eq.s32.totalorder %v166, %v881
    %vm956 = vcmp.eq.s32.totalorder %v166, %v885
    %vm957 = vcmp.eq.s32.totalorder %v166, %v889
    %vm958 = vcmp.eq.s32.totalorder %v167, %v877
    %vm959 = vcmp.eq.s32.totalorder %v167, %v881
    %vm960 = vcmp.eq.s32.totalorder %v167, %v885
    %vm961 = vcmp.eq.s32.totalorder %v167, %v889
    %vm962 = vcmp.eq.s32.totalorder %v168, %v877
    %vm963 = vcmp.eq.s32.totalorder %v168, %v881
    %vm964 = vcmp.eq.s32.totalorder %v168, %v885
    %vm965 = vcmp.eq.s32.totalorder %v168, %v889
    %vm966 = vcmp.eq.s32.totalorder %v169, %v877
    %vm967 = vcmp.eq.s32.totalorder %v169, %v881
    %vm968 = vcmp.eq.s32.totalorder %v169, %v885
    %vm969 = vcmp.eq.s32.totalorder %v169, %v889
    %vm970 = vcmp.eq.s32.totalorder %v170, %v877
    %vm971 = vcmp.eq.s32.totalorder %v170, %v881
    %vm972 = vcmp.eq.s32.totalorder %v170, %v885
    %vm973 = vcmp.eq.s32.totalorder %v170, %v889
    %vm974 = vcmp.eq.s32.totalorder %v171, %v877
    %vm975 = vcmp.eq.s32.totalorder %v171, %v881
    %vm976 = vcmp.eq.s32.totalorder %v171, %v885
    %vm977 = vcmp.eq.s32.totalorder %v171, %v889
    %vm978 = vcmp.eq.s32.totalorder %v172, %v877
    %vm979 = vcmp.eq.s32.totalorder %v172, %v881
    %vm980 = vcmp.eq.s32.totalorder %v172, %v885
    %vm981 = vcmp.eq.s32.totalorder %v172, %v889
    %vm982 = vcmp.eq.s32.totalorder %v173, %v877
    %vm983 = vcmp.eq.s32.totalorder %v173, %v881
    %vm984 = vcmp.eq.s32.totalorder %v173, %v885
    %vm985 = vcmp.eq.s32.totalorder %v173, %v889
    %vm986 = vcmp.eq.s32.totalorder %v174, %v877
    %vm987 = vcmp.eq.s32.totalorder %v174, %v881
    %vm988 = vcmp.eq.s32.totalorder %v174, %v885
    %vm989 = vcmp.eq.s32.totalorder %v174, %v889
    %vm990 = vcmp.eq.s32.totalorder %v175, %v877
    %vm991 = vcmp.eq.s32.totalorder %v175, %v881
    %vm992 = vcmp.eq.s32.totalorder %v175, %v885
    %vm993 = vcmp.eq.s32.totalorder %v175, %v889
    %vm994 = vcmp.eq.s32.totalorder %v176, %v877
    %vm995 = vcmp.eq.s32.totalorder %v176, %v881
    %vm996 = vcmp.eq.s32.totalorder %v176, %v885
    %vm997 = vcmp.eq.s32.totalorder %v176, %v889
    %vm998 = vcmp.eq.s32.totalorder %v177, %v877
    %vm999 = vcmp.eq.s32.totalorder %v177, %v881
    %vm1000 = vcmp.eq.s32.totalorder %v177, %v885
    %vm1001 = vcmp.eq.s32.totalorder %v177, %v889
    %vm1002 = vcmp.eq.s32.totalorder %v178, %v877
    %vm1003 = vcmp.eq.s32.totalorder %v178, %v881
    %vm1004 = vcmp.eq.s32.totalorder %v178, %v885
    %vm1005 = vcmp.eq.s32.totalorder %v178, %v889
    %vm1006 = vcmp.eq.s32.totalorder %v179, %v877
    %vm1007 = vcmp.eq.s32.totalorder %v179, %v881
    %vm1008 = vcmp.eq.s32.totalorder %v179, %v885
    %vm1009 = vcmp.eq.s32.totalorder %v179, %v889
    %vm1010 = vcmp.eq.s32.totalorder %v180, %v877
    %vm1011 = vcmp.eq.s32.totalorder %v180, %v881
    %vm1012 = vcmp.eq.s32.totalorder %v180, %v885
    %vm1013 = vcmp.eq.s32.totalorder %v180, %v889
    %vm1014 = vcmp.eq.s32.totalorder %v181, %v877
    %vm1015 = vcmp.eq.s32.totalorder %v181, %v881
    %vm1016 = vcmp.eq.s32.totalorder %v181, %v885
    %vm1017 = vcmp.eq.s32.totalorder %v181, %v889
    %vm1018 = vcmp.eq.s32.totalorder %v182, %v877
    %vm1019 = vcmp.eq.s32.totalorder %v182, %v881
    %vm1020 = vcmp.eq.s32.totalorder %v182, %v885
    %vm1021 = vcmp.eq.s32.totalorder %v182, %v889
    %vm1022 = vcmp.eq.s32.totalorder %v183, %v877
    %vm1023 = vcmp.eq.s32.totalorder %v183, %v881
    %vm1024 = vcmp.eq.s32.totalorder %v183, %v885
    %vm1025 = vcmp.eq.s32.totalorder %v183, %v889
    %vm1026 = vcmp.eq.s32.totalorder %v184, %v877
    %vm1027 = vcmp.eq.s32.totalorder %v184, %v881
    %vm1028 = vcmp.eq.s32.totalorder %v184, %v885
    %vm1029 = vcmp.eq.s32.totalorder %v184, %v889
    %vm1030 = vcmp.eq.s32.totalorder %v185, %v877
    %vm1031 = vcmp.eq.s32.totalorder %v185, %v881
    %vm1032 = vcmp.eq.s32.totalorder %v185, %v885
    %vm1033 = vcmp.eq.s32.totalorder %v185, %v889
    %vm1034 = vcmp.eq.s32.totalorder %v186, %v877
    %vm1035 = vcmp.eq.s32.totalorder %v186, %v881
    %vm1036 = vcmp.eq.s32.totalorder %v186, %v885
    %vm1037 = vcmp.eq.s32.totalorder %v186, %v889
    %vm1038 = vcmp.eq.s32.totalorder %v187, %v877
    %vm1039 = vcmp.eq.s32.totalorder %v187, %v881
    %vm1040 = vcmp.eq.s32.totalorder %v187, %v885
    %vm1041 = vcmp.eq.s32.totalorder %v187, %v889
    %vm1042 = vcmp.eq.s32.totalorder %v188, %v877
    %vm1043 = vcmp.eq.s32.totalorder %v188, %v881
    %vm1044 = vcmp.eq.s32.totalorder %v188, %v885
    %vm1045 = vcmp.eq.s32.totalorder %v188, %v889
    %vm1046 = vcmp.eq.s32.totalorder %v189, %v877
    %vm1047 = vcmp.eq.s32.totalorder %v189, %v881
    %vm1048 = vcmp.eq.s32.totalorder %v189, %v885
    %vm1049 = vcmp.eq.s32.totalorder %v189, %v889
    %vm1050 = vcmp.eq.s32.totalorder %v190, %v877
    %vm1051 = vcmp.eq.s32.totalorder %v190, %v881
    %vm1052 = vcmp.eq.s32.totalorder %v190, %v885
    %vm1053 = vcmp.eq.s32.totalorder %v190, %v889
    %vm1054 = vcmp.eq.s32.totalorder %v191, %v877
    %vm1055 = vcmp.eq.s32.totalorder %v191, %v881
    %vm1056 = vcmp.eq.s32.totalorder %v191, %v885
    %vm1057 = vcmp.eq.s32.totalorder %v191, %v889
    %vm1058 = vcmp.eq.s32.totalorder %v192, %v877
    %vm1059 = vcmp.eq.s32.totalorder %v192, %v881
    %vm1060 = vcmp.eq.s32.totalorder %v192, %v885
    %vm1061 = vcmp.eq.s32.totalorder %v192, %v889
    %vm1062 = vcmp.eq.s32.totalorder %v193, %v877
    %vm1063 = vcmp.eq.s32.totalorder %v193, %v881
    %vm1064 = vcmp.eq.s32.totalorder %v193, %v885
    %vm1065 = vcmp.eq.s32.totalorder %v193, %v889
    %vm1066 = vcmp.eq.s32.totalorder %v194, %v877
    %vm1067 = vcmp.eq.s32.totalorder %v194, %v881
    %vm1068 = vcmp.eq.s32.totalorder %v194, %v885
    %vm1069 = vcmp.eq.s32.totalorder %v194, %v889
    %vm1070 = vcmp.eq.s32.totalorder %v195, %v877
    %vm1071 = vcmp.eq.s32.totalorder %v195, %v881
    %vm1072 = vcmp.eq.s32.totalorder %v195, %v885
    %vm1073 = vcmp.eq.s32.totalorder %v195, %v889
    %vm1074 = vcmp.eq.s32.totalorder %v196, %v877
    %vm1075 = vcmp.eq.s32.totalorder %v196, %v881
    %vm1076 = vcmp.eq.s32.totalorder %v196, %v885
    %vm1077 = vcmp.eq.s32.totalorder %v196, %v889
    %vm1078 = vcmp.eq.s32.totalorder %v197, %v877
    %vm1079 = vcmp.eq.s32.totalorder %v197, %v881
    %vm1080 = vcmp.eq.s32.totalorder %v197, %v885
    %vm1081 = vcmp.eq.s32.totalorder %v197, %v889
    %v1082 = vlaneseq
    %v1083 = vshrl.u32 %v1082, 7
    %v1084 = vsub.s32 1, %v1083
    %v1085 = vrot.slane %v226, %v1084
    %v1086 = vlaneseq
    %v1087 = vshrl.u32 %v1086, 7
    %v1088 = vsub.s32 1, %v1087
    %v1089 = vrot.slane %v227, %v1088
    %v1090 = vlaneseq
    %v1091 = vshrl.u32 %v1090, 7
    %v1092 = vsub.s32 1, %v1091
    %v1093 = vrot.slane %v228, %v1092
    %v1094 = vlaneseq
    %v1095 = vshrl.u32 %v1094, 7
    %v1096 = vsub.s32 1, %v1095
    %v1097 = vrot.slane %v229, %v1096
    %v1098 = vsel %vm890, %v1085, 0.0
    %v1099 = vsel %vm891, %v1089, 0.0
    %v1100 = vsel %vm892, %v1093, 0.0
    %v1101 = vsel %vm893, %v1097, 0.0
    %v1102 = vsel %vm894, %v1085, 0.0
    %v1103 = vsel %vm895, %v1089, 0.0
    %v1104 = vsel %vm896, %v1093, 0.0
    %v1105 = vsel %vm897, %v1097, 0.0
    %v1106 = vsel %vm898, %v1085, 0.0
    %v1107 = vsel %vm899, %v1089, 0.0
    %v1108 = vsel %vm900, %v1093, 0.0
    %v1109 = vsel %vm901, %v1097, 0.0
    %v1110 = vsel %vm902, %v1085, 0.0
    %v1111 = vsel %vm903, %v1089, 0.0
    %v1112 = vsel %vm904, %v1093, 0.0
    %v1113 = vsel %vm905, %v1097, 0.0
    %v1114 = vsel %vm906, %v1085, 0.0
    %v1115 = vsel %vm907, %v1089, 0.0
    %v1116 = vsel %vm908, %v1093, 0.0
    %v1117 = vsel %vm909, %v1097, 0.0
    %v1118 = vsel %vm910, %v1085, 0.0
    %v1119 = vsel %vm911, %v1089, 0.0
    %v1120 = vsel %vm912, %v1093, 0.0
    %v1121 = vsel %vm913, %v1097, 0.0
    %v1122 = vsel %vm914, %v1085, 0.0
    %v1123 = vsel %vm915, %v1089, 0.0
    %v1124 = vsel %vm916, %v1093, 0.0
    %v1125 = vsel %vm917, %v1097, 0.0
    %v1126 = vsel %vm918, %v1085, 0.0
    %v1127 = vsel %vm919, %v1089, 0.0
    %v1128 = vsel %vm920, %v1093, 0.0
    %v1129 = vsel %vm921, %v1097, 0.0
    %v1130 = vsel %vm922, %v1085, 0.0
    %v1131 = vsel %vm923, %v1089, 0.0
    %v1132 = vsel %vm924, %v1093, 0.0
    %v1133 = vsel %vm925, %v1097, 0.0
    %v1134 = vsel %vm926, %v1085, 0.0
    %v1135 = vsel %vm927, %v1089, 0.0
    %v1136 = vsel %vm928, %v1093, 0.0
    %v1137 = vsel %vm929, %v1097, 0.0
    %v1138 = vsel %vm930, %v1085, 0.0
    %v1139 = vsel %vm931, %v1089, 0.0
    %v1140 = vsel %vm932, %v1093, 0.0
    %v1141 = vsel %vm933, %v1097, 0.0
    %v1142 = vsel %vm934, %v1085, 0.0
    %v1143 = vsel %vm935, %v1089, 0.0
    %v1144 = vsel %vm936, %v1093, 0.0
    %v1145 = vsel %vm937, %v1097, 0.0
    %v1146 = vsel %vm938, %v1085, 0.0
    %v1147 = vsel %vm939, %v1089, 0.0
    %v1148 = vsel %vm940, %v1093, 0.0
    %v1149 = vsel %vm941, %v1097, 0.0
    %v1150 = vsel %vm942, %v1085, 0.0
    %v1151 = vsel %vm943, %v1089, 0.0
    %v1152 = vsel %vm944, %v1093, 0.0
    %v1153 = vsel %vm945, %v1097, 0.0
    %v1154 = vsel %vm946, %v1085, 0.0
    %v1155 = vsel %vm947, %v1089, 0.0
    %v1156 = vsel %vm948, %v1093, 0.0
    %v1157 = vsel %vm949, %v1097, 0.0
    %v1158 = vsel %vm950, %v1085, 0.0
    %v1159 = vsel %vm951, %v1089, 0.0
    %v1160 = vsel %vm952, %v1093, 0.0
    %v1161 = vsel %vm953, %v1097, 0.0
    %v1162 = vsel %vm954, %v1085, 0.0
    %v1163 = vsel %vm955, %v1089, 0.0
    %v1164 = vsel %vm956, %v1093, 0.0
    %v1165 = vsel %vm957, %v1097, 0.0
    %v1166 = vsel %vm958, %v1085, 0.0
    %v1167 = vsel %vm959, %v1089, 0.0
    %v1168 = vsel %vm960, %v1093, 0.0
    %v1169 = vsel %vm961, %v1097, 0.0
    %v1170 = vsel %vm962, %v1085, 0.0
    %v1171 = vsel %vm963, %v1089, 0.0
    %v1172 = vsel %vm964, %v1093, 0.0
    %v1173 = vsel %vm965, %v1097, 0.0
    %v1174 = vsel %vm966, %v1085, 0.0
    %v1175 = vsel %vm967, %v1089, 0.0
    %v1176 = vsel %vm968, %v1093, 0.0
    %v1177 = vsel %vm969, %v1097, 0.0
    %v1178 = vsel %vm970, %v1085, 0.0
    %v1179 = vsel %vm971, %v1089, 0.0
    %v1180 = vsel %vm972, %v1093, 0.0
    %v1181 = vsel %vm973, %v1097, 0.0
    %v1182 = vsel %vm974, %v1085, 0.0
    %v1183 = vsel %vm975, %v1089, 0.0
    %v1184 = vsel %vm976, %v1093, 0.0
    %v1185 = vsel %vm977, %v1097, 0.0
    %v1186 = vsel %vm978, %v1085, 0.0
    %v1187 = vsel %vm979, %v1089, 0.0
    %v1188 = vsel %vm980, %v1093, 0.0
    %v1189 = vsel %vm981, %v1097, 0.0
    %v1190 = vsel %vm982, %v1085, 0.0
    %v1191 = vsel %vm983, %v1089, 0.0
    %v1192 = vsel %vm984, %v1093, 0.0
    %v1193 = vsel %vm985, %v1097, 0.0
    %v1194 = vsel %vm986, %v1085, 0.0
    %v1195 = vsel %vm987, %v1089, 0.0
    %v1196 = vsel %vm988, %v1093, 0.0
    %v1197 = vsel %vm989, %v1097, 0.0
    %v1198 = vsel %vm990, %v1085, 0.0
    %v1199 = vsel %vm991, %v1089, 0.0
    %v1200 = vsel %vm992, %v1093, 0.0
    %v1201 = vsel %vm993, %v1097, 0.0
    %v1202 = vsel %vm994, %v1085, 0.0
    %v1203 = vsel %vm995, %v1089, 0.0
    %v1204 = vsel %vm996, %v1093, 0.0
    %v1205 = vsel %vm997, %v1097, 0.0
    %v1206 = vsel %vm998, %v1085, 0.0
    %v1207 = vsel %vm999, %v1089, 0.0
    %v1208 = vsel %vm1000, %v1093, 0.0
    %v1209 = vsel %vm1001, %v1097, 0.0
    %v1210 = vsel %vm1002, %v1085, 0.0
    %v1211 = vsel %vm1003, %v1089, 0.0
    %v1212 = vsel %vm1004, %v1093, 0.0
    %v1213 = vsel %vm1005, %v1097, 0.0
    %v1214 = vsel %vm1006, %v1085, 0.0
    %v1215 = vsel %vm1007, %v1089, 0.0
    %v1216 = vsel %vm1008, %v1093, 0.0
    %v1217 = vsel %vm1009, %v1097, 0.0
    %v1218 = vsel %vm1010, %v1085, 0.0
    %v1219 = vsel %vm1011, %v1089, 0.0
    %v1220 = vsel %vm1012, %v1093, 0.0
    %v1221 = vsel %vm1013, %v1097, 0.0
    %v1222 = vsel %vm1014, %v1085, 0.0
    %v1223 = vsel %vm1015, %v1089, 0.0
    %v1224 = vsel %vm1016, %v1093, 0.0
    %v1225 = vsel %vm1017, %v1097, 0.0
    %v1226 = vsel %vm1018, %v1085, 0.0
    %v1227 = vsel %vm1019, %v1089, 0.0
    %v1228 = vsel %vm1020, %v1093, 0.0
    %v1229 = vsel %vm1021, %v1097, 0.0
    %v1230 = vsel %vm1022, %v1085, 0.0
    %v1231 = vsel %vm1023, %v1089, 0.0
    %v1232 = vsel %vm1024, %v1093, 0.0
    %v1233 = vsel %vm1025, %v1097, 0.0
    %v1234 = vsel %vm1026, %v1085, 0.0
    %v1235 = vsel %vm1027, %v1089, 0.0
    %v1236 = vsel %vm1028, %v1093, 0.0
    %v1237 = vsel %vm1029, %v1097, 0.0
    %v1238 = vsel %vm1030, %v1085, 0.0
    %v1239 = vsel %vm1031, %v1089, 0.0
    %v1240 = vsel %vm1032, %v1093, 0.0
    %v1241 = vsel %vm1033, %v1097, 0.0
    %v1242 = vsel %vm1034, %v1085, 0.0
    %v1243 = vsel %vm1035, %v1089, 0.0
    %v1244 = vsel %vm1036, %v1093, 0.0
    %v1245 = vsel %vm1037, %v1097, 0.0
    %v1246 = vsel %vm1038, %v1085, 0.0
    %v1247 = vsel %vm1039, %v1089, 0.0
    %v1248 = vsel %vm1040, %v1093, 0.0
    %v1249 = vsel %vm1041, %v1097, 0.0
    %v1250 = vsel %vm1042, %v1085, 0.0
    %v1251 = vsel %vm1043, %v1089, 0.0
    %v1252 = vsel %vm1044, %v1093, 0.0
    %v1253 = vsel %vm1045, %v1097, 0.0
    %v1254 = vsel %vm1046, %v1085, 0.0
    %v1255 = vsel %vm1047, %v1089, 0.0
    %v1256 = vsel %vm1048, %v1093, 0.0
    %v1257 = vsel %vm1049, %v1097, 0.0
    %v1258 = vsel %vm1050, %v1085, 0.0
    %v1259 = vsel %vm1051, %v1089, 0.0
    %v1260 = vsel %vm1052, %v1093, 0.0
    %v1261 = vsel %vm1053, %v1097, 0.0
    %v1262 = vsel %vm1054, %v1085, 0.0
    %v1263 = vsel %vm1055, %v1089, 0.0
    %v1264 = vsel %vm1056, %v1093, 0.0
    %v1265 = vsel %vm1057, %v1097, 0.0
    %v1266 = vsel %vm1058, %v1085, 0.0
    %v1267 = vsel %vm1059, %v1089, 0.0
    %v1268 = vsel %vm1060, %v1093, 0.0
    %v1269 = vsel %vm1061, %v1097, 0.0
    %v1270 = vsel %vm1062, %v1085, 0.0
    %v1271 = vsel %vm1063, %v1089, 0.0
    %v1272 = vsel %vm1064, %v1093, 0.0
    %v1273 = vsel %vm1065, %v1097, 0.0
    %v1274 = vsel %vm1066, %v1085, 0.0
    %v1275 = vsel %vm1067, %v1089, 0.0
    %v1276 = vsel %vm1068, %v1093, 0.0
    %v1277 = vsel %vm1069, %v1097, 0.0
    %v1278 = vsel %vm1070, %v1085, 0.0
    %v1279 = vsel %vm1071, %v1089, 0.0
    %v1280 = vsel %vm1072, %v1093, 0.0
    %v1281 = vsel %vm1073, %v1097, 0.0
    %v1282 = vsel %vm1074, %v1085, 0.0
    %v1283 = vsel %vm1075, %v1089, 0.0
    %v1284 = vsel %vm1076, %v1093, 0.0
    %v1285 = vsel %vm1077, %v1097, 0.0
    %v1286 = vsel %vm1078, %v1085, 0.0
    %v1287 = vsel %vm1079, %v1089, 0.0
    %v1288 = vsel %vm1080, %v1093, 0.0
    %v1289 = vsel %vm1081, %v1097, 0.0
    %v1290 = vld [vmem:[#allocation3] sm:$0xff]
    %v1291 = vld [vmem:[#allocation3 + $0x8] sm:$0xff]
    %v1292 = vld [vmem:[#allocation3 + $0x10] sm:$0xff]
    %v1293 = vld [vmem:[#allocation3 + $0x18] sm:$0xff]
    %v1294 = vld [vmem:[#allocation3 + $0x20] sm:$0xff]
    %v1295 = vld [vmem:[#allocation3 + $0x28] sm:$0xff]
    %v1296 = vld [vmem:[#allocation3 + $0x30] sm:$0xff]
    %v1297 = vld [vmem:[#allocation3 + $0x38] sm:$0xff]
    %v1298 = vld [vmem:[#allocation3 + $0x40] sm:$0xff]
    %v1299 = vld [vmem:[#allocation3 + $0x48] sm:$0xff]
    %v1300 = vld [vmem:[#allocation3 + $0x50] sm:$0xff]
    %v1301 = vld [vmem:[#allocation3 + $0x58] sm:$0xff]
    %v1302 = vld [vmem:[#allocation3 + $0x60] sm:$0xff]
    %v1303 = vld [vmem:[#allocation3 + $0x68] sm:$0xff]
    %v1304 = vld [vmem:[#allocation3 + $0x70] sm:$0xff]
    %v1305 = vld [vmem:[#allocation3 + $0x78] sm:$0xff]
    %v1306 = vld [vmem:[#allocation3 + $0x80] sm:$0xff]
    %v1307 = vld [vmem:[#allocation3 + $0x88] sm:$0xff]
    %v1308 = vld [vmem:[#allocation3 + $0x90] sm:$0xff]
    %v1309 = vld [vmem:[#allocation3 + $0x98] sm:$0xff]
    %v1310 = vld [vmem:[#allocation3 + $0xa0] sm:$0xff]
    %v1311 = vld [vmem:[#allocation3 + $0xa8] sm:$0xff]
    %v1312 = vld [vmem:[#allocation3 + $0xb0] sm:$0xff]
    %v1313 = vld [vmem:[#allocation3 + $0xb8] sm:$0xff]
    %v1314 = vld [vmem:[#allocation3 + $0xc0] sm:$0xff]
    %v1315 = vld [vmem:[#allocation3 + $0xc8] sm:$0xff]
    %v1316 = vld [vmem:[#allocation3 + $0xd0] sm:$0xff]
    %v1317 = vld [vmem:[#allocation3 + $0xd8] sm:$0xff]
    %v1318 = vld [vmem:[#allocation3 + $0xe0] sm:$0xff]
    %v1319 = vld [vmem:[#allocation3 + $0xe8] sm:$0xff]
    %v1320 = vld [vmem:[#allocation3 + $0xf0] sm:$0xff]
    %v1321 = vld [vmem:[#allocation3 + $0xf8] sm:$0xff]
    %v1322 = vld [vmem:[#allocation3 + $0x100] sm:$0xff]
    %v1323 = vld [vmem:[#allocation3 + $0x108] sm:$0xff]
    %v1324 = vld [vmem:[#allocation3 + $0x110] sm:$0xff]
    %v1325 = vld [vmem:[#allocation3 + $0x118] sm:$0xff]
    %v1326 = vld [vmem:[#allocation3 + $0x120] sm:$0xff]
    %v1327 = vld [vmem:[#allocation3 + $0x128] sm:$0xff]
    %v1328 = vld [vmem:[#allocation3 + $0x130] sm:$0xff]
    %v1329 = vld [vmem:[#allocation3 + $0x138] sm:$0xff]
    %v1330 = vld [vmem:[#allocation3 + $0x140] sm:$0xff]
    %v1331 = vld [vmem:[#allocation3 + $0x148] sm:$0xff]
    %v1332 = vld [vmem:[#allocation3 + $0x150] sm:$0xff]
    %v1333 = vld [vmem:[#allocation3 + $0x158] sm:$0xff]
    %v1334 = vld [vmem:[#allocation3 + $0x160] sm:$0xff]
    %v1335 = vld [vmem:[#allocation3 + $0x168] sm:$0xff]
    %v1336 = vld [vmem:[#allocation3 + $0x170] sm:$0xff]
    %v1337 = vld [vmem:[#allocation3 + $0x178] sm:$0xff]
    %v1338 = vld [vmem:[#allocation3 + $0x180] sm:$0xff]
    %v1339 = vld [vmem:[#allocation3 + $0x188] sm:$0xff]
    %v1340 = vld [vmem:[#allocation3 + $0x190] sm:$0xff]
    %v1341 = vld [vmem:[#allocation3 + $0x198] sm:$0xff]
    %v1342 = vld [vmem:[#allocation3 + $0x1a0] sm:$0xff]
    %v1343 = vld [vmem:[#allocation3 + $0x1a8] sm:$0xff]
    %v1344 = vld [vmem:[#allocation3 + $0x1b0] sm:$0xff]
    %v1345 = vld [vmem:[#allocation3 + $0x1b8] sm:$0xff]
    %v1346 = vld [vmem:[#allocation3 + $0x1c0] sm:$0xff]
    %v1347 = vld [vmem:[#allocation3 + $0x1c8] sm:$0xff]
    %v1348 = vld [vmem:[#allocation3 + $0x1d0] sm:$0xff]
    %v1349 = vld [vmem:[#allocation3 + $0x1d8] sm:$0xff]
    %v1350 = vld [vmem:[#allocation3 + $0x1e0] sm:$0xff]
    %v1351 = vld [vmem:[#allocation3 + $0x1e8] sm:$0xff]
    %v1352 = vld [vmem:[#allocation3 + $0x1f0] sm:$0xff]
    %v1353 = vld [vmem:[#allocation3 + $0x1f8] sm:$0xff]
    %v1354 = vld [vmem:[#allocation3 + $0x200] sm:$0xff]
    %v1355 = vld [vmem:[#allocation3 + $0x208] sm:$0xff]
    %v1356 = vld [vmem:[#allocation3 + $0x210] sm:$0xff]
    %v1357 = vld [vmem:[#allocation3 + $0x218] sm:$0xff]
    %v1358 = vld [vmem:[#allocation3 + $0x220] sm:$0xff]
    %v1359 = vld [vmem:[#allocation3 + $0x228] sm:$0xff]
    %v1360 = vld [vmem:[#allocation3 + $0x230] sm:$0xff]
    %v1361 = vld [vmem:[#allocation3 + $0x238] sm:$0xff]
    %v1362 = vld [vmem:[#allocation3 + $0x240] sm:$0xff]
    %v1363 = vld [vmem:[#allocation3 + $0x248] sm:$0xff]
    %v1364 = vld [vmem:[#allocation3 + $0x250] sm:$0xff]
    %v1365 = vld [vmem:[#allocation3 + $0x258] sm:$0xff]
    %v1366 = vld [vmem:[#allocation3 + $0x260] sm:$0xff]
    %v1367 = vld [vmem:[#allocation3 + $0x268] sm:$0xff]
    %v1368 = vld [vmem:[#allocation3 + $0x270] sm:$0xff]
    %v1369 = vld [vmem:[#allocation3 + $0x278] sm:$0xff]
    %v1370 = vld [vmem:[#allocation3 + $0x280] sm:$0xff]
    %v1371 = vld [vmem:[#allocation3 + $0x288] sm:$0xff]
    %v1372 = vld [vmem:[#allocation3 + $0x290] sm:$0xff]
    %v1373 = vld [vmem:[#allocation3 + $0x298] sm:$0xff]
    %v1374 = vld [vmem:[#allocation3 + $0x2a0] sm:$0xff]
    %v1375 = vld [vmem:[#allocation3 + $0x2a8] sm:$0xff]
    %v1376 = vld [vmem:[#allocation3 + $0x2b0] sm:$0xff]
    %v1377 = vld [vmem:[#allocation3 + $0x2b8] sm:$0xff]
    %v1378 = vld [vmem:[#allocation3 + $0x2c0] sm:$0xff]
    %v1379 = vld [vmem:[#allocation3 + $0x2c8] sm:$0xff]
    %v1380 = vld [vmem:[#allocation3 + $0x2d0] sm:$0xff]
    %v1381 = vld [vmem:[#allocation3 + $0x2d8] sm:$0xff]
    %v1382 = vld [vmem:[#allocation3 + $0x2e0] sm:$0xff]
    %v1383 = vld [vmem:[#allocation3 + $0x2e8] sm:$0xff]
    %v1384 = vld [vmem:[#allocation3 + $0x2f0] sm:$0xff]
    %v1385 = vld [vmem:[#allocation3 + $0x2f8] sm:$0xff]
    %v1386 = vld [vmem:[#allocation3 + $0x300] sm:$0xff]
    %v1387 = vld [vmem:[#allocation3 + $0x308] sm:$0xff]
    %v1388 = vld [vmem:[#allocation3 + $0x310] sm:$0xff]
    %v1389 = vld [vmem:[#allocation3 + $0x318] sm:$0xff]
    %v1390 = vld [vmem:[#allocation3 + $0x320] sm:$0xff]
    %v1391 = vld [vmem:[#allocation3 + $0x328] sm:$0xff]
    %v1392 = vld [vmem:[#allocation3 + $0x330] sm:$0xff]
    %v1393 = vld [vmem:[#allocation3 + $0x338] sm:$0xff]
    %v1394 = vld [vmem:[#allocation3 + $0x340] sm:$0xff]
    %v1395 = vld [vmem:[#allocation3 + $0x348] sm:$0xff]
    %v1396 = vld [vmem:[#allocation3 + $0x350] sm:$0xff]
    %v1397 = vld [vmem:[#allocation3 + $0x358] sm:$0xff]
    %v1398 = vld [vmem:[#allocation3 + $0x360] sm:$0xff]
    %v1399 = vld [vmem:[#allocation3 + $0x368] sm:$0xff]
    %v1400 = vld [vmem:[#allocation3 + $0x370] sm:$0xff]
    %v1401 = vld [vmem:[#allocation3 + $0x378] sm:$0xff]
    %v1402 = vld [vmem:[#allocation3 + $0x380] sm:$0xff]
    %v1403 = vld [vmem:[#allocation3 + $0x388] sm:$0xff]
    %v1404 = vld [vmem:[#allocation3 + $0x390] sm:$0xff]
    %v1405 = vld [vmem:[#allocation3 + $0x398] sm:$0xff]
    %v1406 = vld [vmem:[#allocation3 + $0x3a0] sm:$0xff]
    %v1407 = vld [vmem:[#allocation3 + $0x3a8] sm:$0xff]
    %v1408 = vld [vmem:[#allocation3 + $0x3b0] sm:$0xff]
    %v1409 = vld [vmem:[#allocation3 + $0x3b8] sm:$0xff]
    %v1410 = vld [vmem:[#allocation3 + $0x3c0] sm:$0xff]
    %v1411 = vld [vmem:[#allocation3 + $0x3c8] sm:$0xff]
    %v1412 = vld [vmem:[#allocation3 + $0x3d0] sm:$0xff]
    %v1413 = vld [vmem:[#allocation3 + $0x3d8] sm:$0xff]
    %v1414 = vld [vmem:[#allocation3 + $0x3e0] sm:$0xff]
    %v1415 = vld [vmem:[#allocation3 + $0x3e8] sm:$0xff]
    %v1416 = vld [vmem:[#allocation3 + $0x3f0] sm:$0xff]
    %v1417 = vld [vmem:[#allocation3 + $0x3f8] sm:$0xff]
    %v1418 = vld [vmem:[#allocation3 + $0x400] sm:$0xff]
    %v1419 = vld [vmem:[#allocation3 + $0x408] sm:$0xff]
    %v1420 = vld [vmem:[#allocation3 + $0x410] sm:$0xff]
    %v1421 = vld [vmem:[#allocation3 + $0x418] sm:$0xff]
    %v1422 = vld [vmem:[#allocation3 + $0x420] sm:$0xff]
    %v1423 = vld [vmem:[#allocation3 + $0x428] sm:$0xff]
    %v1424 = vld [vmem:[#allocation3 + $0x430] sm:$0xff]
    %v1425 = vld [vmem:[#allocation3 + $0x438] sm:$0xff]
    %v1426 = vld [vmem:[#allocation3 + $0x440] sm:$0xff]
    %v1427 = vld [vmem:[#allocation3 + $0x448] sm:$0xff]
    %v1428 = vld [vmem:[#allocation3 + $0x450] sm:$0xff]
    %v1429 = vld [vmem:[#allocation3 + $0x458] sm:$0xff]
    %v1430 = vld [vmem:[#allocation3 + $0x460] sm:$0xff]
    %v1431 = vld [vmem:[#allocation3 + $0x468] sm:$0xff]
    %v1432 = vld [vmem:[#allocation3 + $0x470] sm:$0xff]
    %v1433 = vld [vmem:[#allocation3 + $0x478] sm:$0xff]
    %v1434 = vld [vmem:[#allocation3 + $0x480] sm:$0xff]
    %v1435 = vld [vmem:[#allocation3 + $0x488] sm:$0xff]
    %v1436 = vld [vmem:[#allocation3 + $0x490] sm:$0xff]
    %v1437 = vld [vmem:[#allocation3 + $0x498] sm:$0xff]
    %v1438 = vld [vmem:[#allocation3 + $0x4a0] sm:$0xff]
    %v1439 = vld [vmem:[#allocation3 + $0x4a8] sm:$0xff]
    %v1440 = vld [vmem:[#allocation3 + $0x4b0] sm:$0xff]
    %v1441 = vld [vmem:[#allocation3 + $0x4b8] sm:$0xff]
    %v1442 = vld [vmem:[#allocation3 + $0x4c0] sm:$0xff]
    %v1443 = vld [vmem:[#allocation3 + $0x4c8] sm:$0xff]
    %v1444 = vld [vmem:[#allocation3 + $0x4d0] sm:$0xff]
    %v1445 = vld [vmem:[#allocation3 + $0x4d8] sm:$0xff]
    %v1446 = vld [vmem:[#allocation3 + $0x4e0] sm:$0xff]
    %v1447 = vld [vmem:[#allocation3 + $0x4e8] sm:$0xff]
    %v1448 = vld [vmem:[#allocation3 + $0x4f0] sm:$0xff]
    %v1449 = vld [vmem:[#allocation3 + $0x4f8] sm:$0xff]
    %v1450 = vld [vmem:[#allocation3 + $0x500] sm:$0xff]
    %v1451 = vld [vmem:[#allocation3 + $0x508] sm:$0xff]
    %v1452 = vld [vmem:[#allocation3 + $0x510] sm:$0xff]
    %v1453 = vld [vmem:[#allocation3 + $0x518] sm:$0xff]
    %v1454 = vld [vmem:[#allocation3 + $0x520] sm:$0xff]
    %v1455 = vld [vmem:[#allocation3 + $0x528] sm:$0xff]
    %v1456 = vld [vmem:[#allocation3 + $0x530] sm:$0xff]
    %v1457 = vld [vmem:[#allocation3 + $0x538] sm:$0xff]
    %v1458 = vld [vmem:[#allocation3 + $0x540] sm:$0xff]
    %v1459 = vld [vmem:[#allocation3 + $0x548] sm:$0xff]
    %v1460 = vld [vmem:[#allocation3 + $0x550] sm:$0xff]
    %v1461 = vld [vmem:[#allocation3 + $0x558] sm:$0xff]
    %v1462 = vld [vmem:[#allocation3 + $0x560] sm:$0xff]
    %v1463 = vld [vmem:[#allocation3 + $0x568] sm:$0xff]
    %v1464 = vld [vmem:[#allocation3 + $0x570] sm:$0xff]
    %v1465 = vld [vmem:[#allocation3 + $0x578] sm:$0xff]
    %v1466 = vld [vmem:[#allocation3 + $0x580] sm:$0xff]
    %v1467 = vld [vmem:[#allocation3 + $0x588] sm:$0xff]
    %v1468 = vld [vmem:[#allocation3 + $0x590] sm:$0xff]
    %v1469 = vld [vmem:[#allocation3 + $0x598] sm:$0xff]
    %v1470 = vld [vmem:[#allocation3 + $0x5a0] sm:$0xff]
    %v1471 = vld [vmem:[#allocation3 + $0x5a8] sm:$0xff]
    %v1472 = vld [vmem:[#allocation3 + $0x5b0] sm:$0xff]
    %v1473 = vld [vmem:[#allocation3 + $0x5b8] sm:$0xff]
    %v1474 = vld [vmem:[#allocation3 + $0x5c0] sm:$0xff]
    %v1475 = vld [vmem:[#allocation3 + $0x5c8] sm:$0xff]
    %v1476 = vld [vmem:[#allocation3 + $0x5d0] sm:$0xff]
    %v1477 = vld [vmem:[#allocation3 + $0x5d8] sm:$0xff]
    %v1478 = vld [vmem:[#allocation3 + $0x5e0] sm:$0xff]
    %v1479 = vld [vmem:[#allocation3 + $0x5e8] sm:$0xff]
    %v1480 = vld [vmem:[#allocation3 + $0x5f0] sm:$0xff]
    %v1481 = vld [vmem:[#allocation3 + $0x5f8] sm:$0xff]
    %v1482 = vadd.f32 %v1290, %v1098
    %v1483 = vadd.f32 %v1291, %v1099
    %v1484 = vadd.f32 %v1292, %v1100
    %v1485 = vadd.f32 %v1293, %v1101
    %v1486 = vadd.f32 %v1294, %v1102
    %v1487 = vadd.f32 %v1295, %v1103
    %v1488 = vadd.f32 %v1296, %v1104
    %v1489 = vadd.f32 %v1297, %v1105
    %v1490 = vadd.f32 %v1298, %v1106
    %v1491 = vadd.f32 %v1299, %v1107
    %v1492 = vadd.f32 %v1300, %v1108
    %v1493 = vadd.f32 %v1301, %v1109
    %v1494 = vadd.f32 %v1302, %v1110
    %v1495 = vadd.f32 %v1303, %v1111
    %v1496 = vadd.f32 %v1304, %v1112
    %v1497 = vadd.f32 %v1305, %v1113
    %v1498 = vadd.f32 %v1306, %v1114
    %v1499 = vadd.f32 %v1307, %v1115
    %v1500 = vadd.f32 %v1308, %v1116
    %v1501 = vadd.f32 %v1309, %v1117
    %v1502 = vadd.f32 %v1310, %v1118
    %v1503 = vadd.f32 %v1311, %v1119
    %v1504 = vadd.f32 %v1312, %v1120
    %v1505 = vadd.f32 %v1313, %v1121
    %v1506 = vadd.f32 %v1314, %v1122
    %v1507 = vadd.f32 %v1315, %v1123
    %v1508 = vadd.f32 %v1316, %v1124
    %v1509 = vadd.f32 %v1317, %v1125
    %v1510 = vadd.f32 %v1318, %v1126
    %v1511 = vadd.f32 %v1319, %v1127
    %v1512 = vadd.f32 %v1320, %v1128
    %v1513 = vadd.f32 %v1321, %v1129
    %v1514 = vadd.f32 %v1322, %v1130
    %v1515 = vadd.f32 %v1323, %v1131
    %v1516 = vadd.f32 %v1324, %v1132
    %v1517 = vadd.f32 %v1325, %v1133
    %v1518 = vadd.f32 %v1326, %v1134
    %v1519 = vadd.f32 %v1327, %v1135
    %v1520 = vadd.f32 %v1328, %v1136
    %v1521 = vadd.f32 %v1329, %v1137
    %v1522 = vadd.f32 %v1330, %v1138
    %v1523 = vadd.f32 %v1331, %v1139
    %v1524 = vadd.f32 %v1332, %v1140
    %v1525 = vadd.f32 %v1333, %v1141
    %v1526 = vadd.f32 %v1334, %v1142
    %v1527 = vadd.f32 %v1335, %v1143
    %v1528 = vadd.f32 %v1336, %v1144
    %v1529 = vadd.f32 %v1337, %v1145
    %v1530 = vadd.f32 %v1338, %v1146
    %v1531 = vadd.f32 %v1339, %v1147
    %v1532 = vadd.f32 %v1340, %v1148
    %v1533 = vadd.f32 %v1341, %v1149
    %v1534 = vadd.f32 %v1342, %v1150
    %v1535 = vadd.f32 %v1343, %v1151
    %v1536 = vadd.f32 %v1344, %v1152
    %v1537 = vadd.f32 %v1345, %v1153
    %v1538 = vadd.f32 %v1346, %v1154
    %v1539 = vadd.f32 %v1347, %v1155
    %v1540 = vadd.f32 %v1348, %v1156
    %v1541 = vadd.f32 %v1349, %v1157
    %v1542 = vadd.f32 %v1350, %v1158
    %v1543 = vadd.f32 %v1351, %v1159
    %v1544 = vadd.f32 %v1352, %v1160
    %v1545 = vadd.f32 %v1353, %v1161
    %v1546 = vadd.f32 %v1354, %v1162
    %v1547 = vadd.f32 %v1355, %v1163
    %v1548 = vadd.f32 %v1356, %v1164
    %v1549 = vadd.f32 %v1357, %v1165
    %v1550 = vadd.f32 %v1358, %v1166
    %v1551 = vadd.f32 %v1359, %v1167
    %v1552 = vadd.f32 %v1360, %v1168
    %v1553 = vadd.f32 %v1361, %v1169
    %v1554 = vadd.f32 %v1362, %v1170
    %v1555 = vadd.f32 %v1363, %v1171
    %v1556 = vadd.f32 %v1364, %v1172
    %v1557 = vadd.f32 %v1365, %v1173
    %v1558 = vadd.f32 %v1366, %v1174
    %v1559 = vadd.f32 %v1367, %v1175
    %v1560 = vadd.f32 %v1368, %v1176
    %v1561 = vadd.f32 %v1369, %v1177
    %v1562 = vadd.f32 %v1370, %v1178
    %v1563 = vadd.f32 %v1371, %v1179
    %v1564 = vadd.f32 %v1372, %v1180
    %v1565 = vadd.f32 %v1373, %v1181
    %v1566 = vadd.f32 %v1374, %v1182
    %v1567 = vadd.f32 %v1375, %v1183
    %v1568 = vadd.f32 %v1376, %v1184
    %v1569 = vadd.f32 %v1377, %v1185
    %v1570 = vadd.f32 %v1378, %v1186
    %v1571 = vadd.f32 %v1379, %v1187
    %v1572 = vadd.f32 %v1380, %v1188
    %v1573 = vadd.f32 %v1381, %v1189
    %v1574 = vadd.f32 %v1382, %v1190
    %v1575 = vadd.f32 %v1383, %v1191
    %v1576 = vadd.f32 %v1384, %v1192
    %v1577 = vadd.f32 %v1385, %v1193
    %v1578 = vadd.f32 %v1386, %v1194
    %v1579 = vadd.f32 %v1387, %v1195
    %v1580 = vadd.f32 %v1388, %v1196
    %v1581 = vadd.f32 %v1389, %v1197
    %v1582 = vadd.f32 %v1390, %v1198
    %v1583 = vadd.f32 %v1391, %v1199
    %v1584 = vadd.f32 %v1392, %v1200
    %v1585 = vadd.f32 %v1393, %v1201
    %v1586 = vadd.f32 %v1394, %v1202
    %v1587 = vadd.f32 %v1395, %v1203
    %v1588 = vadd.f32 %v1396, %v1204
    %v1589 = vadd.f32 %v1397, %v1205
    %v1590 = vadd.f32 %v1398, %v1206
    %v1591 = vadd.f32 %v1399, %v1207
    %v1592 = vadd.f32 %v1400, %v1208
    %v1593 = vadd.f32 %v1401, %v1209
    %v1594 = vadd.f32 %v1402, %v1210
    %v1595 = vadd.f32 %v1403, %v1211
    %v1596 = vadd.f32 %v1404, %v1212
    %v1597 = vadd.f32 %v1405, %v1213
    %v1598 = vadd.f32 %v1406, %v1214
    %v1599 = vadd.f32 %v1407, %v1215
    %v1600 = vadd.f32 %v1408, %v1216
    %v1601 = vadd.f32 %v1409, %v1217
    %v1602 = vadd.f32 %v1410, %v1218
    %v1603 = vadd.f32 %v1411, %v1219
    %v1604 = vadd.f32 %v1412, %v1220
    %v1605 = vadd.f32 %v1413, %v1221
    %v1606 = vadd.f32 %v1414, %v1222
    %v1607 = vadd.f32 %v1415, %v1223
    %v1608 = vadd.f32 %v1416, %v1224
    %v1609 = vadd.f32 %v1417, %v1225
    %v1610 = vadd.f32 %v1418, %v1226
    %v1611 = vadd.f32 %v1419, %v1227
    %v1612 = vadd.f32 %v1420, %v1228
    %v1613 = vadd.f32 %v1421, %v1229
    %v1614 = vadd.f32 %v1422, %v1230
    %v1615 = vadd.f32 %v1423, %v1231
    %v1616 = vadd.f32 %v1424, %v1232
    %v1617 = vadd.f32 %v1425, %v1233
    %v1618 = vadd.f32 %v1426, %v1234
    %v1619 = vadd.f32 %v1427, %v1235
    %v1620 = vadd.f32 %v1428, %v1236
    %v1621 = vadd.f32 %v1429, %v1237
    %v1622 = vadd.f32 %v1430, %v1238
    %v1623 = vadd.f32 %v1431, %v1239
    %v1624 = vadd.f32 %v1432, %v1240
    %v1625 = vadd.f32 %v1433, %v1241
    %v1626 = vadd.f32 %v1434, %v1242
    %v1627 = vadd.f32 %v1435, %v1243
    %v1628 = vadd.f32 %v1436, %v1244
    %v1629 = vadd.f32 %v1437, %v1245
    %v1630 = vadd.f32 %v1438, %v1246
    %v1631 = vadd.f32 %v1439, %v1247
    %v1632 = vadd.f32 %v1440, %v1248
    %v1633 = vadd.f32 %v1441, %v1249
    %v1634 = vadd.f32 %v1442, %v1250
    %v1635 = vadd.f32 %v1443, %v1251
    %v1636 = vadd.f32 %v1444, %v1252
    %v1637 = vadd.f32 %v1445, %v1253
    %v1638 = vadd.f32 %v1446, %v1254
    %v1639 = vadd.f32 %v1447, %v1255
    %v1640 = vadd.f32 %v1448, %v1256
    %v1641 = vadd.f32 %v1449, %v1257
    %v1642 = vadd.f32 %v1450, %v1258
    %v1643 = vadd.f32 %v1451, %v1259
    %v1644 = vadd.f32 %v1452, %v1260
    %v1645 = vadd.f32 %v1453, %v1261
    %v1646 = vadd.f32 %v1454, %v1262
    %v1647 = vadd.f32 %v1455, %v1263
    %v1648 = vadd.f32 %v1456, %v1264
    %v1649 = vadd.f32 %v1457, %v1265
    %v1650 = vadd.f32 %v1458, %v1266
    %v1651 = vadd.f32 %v1459, %v1267
    %v1652 = vadd.f32 %v1460, %v1268
    %v1653 = vadd.f32 %v1461, %v1269
    %v1654 = vadd.f32 %v1462, %v1270
    %v1655 = vadd.f32 %v1463, %v1271
    %v1656 = vadd.f32 %v1464, %v1272
    %v1657 = vadd.f32 %v1465, %v1273
    %v1658 = vadd.f32 %v1466, %v1274
    %v1659 = vadd.f32 %v1467, %v1275
    %v1660 = vadd.f32 %v1468, %v1276
    %v1661 = vadd.f32 %v1469, %v1277
    %v1662 = vadd.f32 %v1470, %v1278
    %v1663 = vadd.f32 %v1471, %v1279
    %v1664 = vadd.f32 %v1472, %v1280
    %v1665 = vadd.f32 %v1473, %v1281
    %v1666 = vadd.f32 %v1474, %v1282
    %v1667 = vadd.f32 %v1475, %v1283
    %v1668 = vadd.f32 %v1476, %v1284
    %v1669 = vadd.f32 %v1477, %v1285
    %v1670 = vadd.f32 %v1478, %v1286
    %v1671 = vadd.f32 %v1479, %v1287
    %v1672 = vadd.f32 %v1480, %v1288
    %v1673 = vadd.f32 %v1481, %v1289
    %1674 = vst [vmem:[#allocation3] sm:$0xff] %v1482
    %1675 = vst [vmem:[#allocation3 + $0x8] sm:$0xff] %v1483
    %1676 = vst [vmem:[#allocation3 + $0x10] sm:$0xff] %v1484
    %1677 = vst [vmem:[#allocation3 + $0x18] sm:$0xff] %v1485
    %1678 = vst [vmem:[#allocation3 + $0x20] sm:$0xff] %v1486
    %1679 = vst [vmem:[#allocation3 + $0x28] sm:$0xff] %v1487
    %1680 = vst [vmem:[#allocation3 + $0x30] sm:$0xff] %v1488
    %1681 = vst [vmem:[#allocation3 + $0x38] sm:$0xff] %v1489
    %1682 = vst [vmem:[#allocation3 + $0x40] sm:$0xff] %v1490
    %1683 = vst [vmem:[#allocation3 + $0x48] sm:$0xff] %v1491
    %1684 = vst [vmem:[#allocation3 + $0x50] sm:$0xff] %v1492
    %1685 = vst [vmem:[#allocation3 + $0x58] sm:$0xff] %v1493
    %1686 = vst [vmem:[#allocation3 + $0x60] sm:$0xff] %v1494
    %1687 = vst [vmem:[#allocation3 + $0x68] sm:$0xff] %v1495
    %1688 = vst [vmem:[#allocation3 + $0x70] sm:$0xff] %v1496
    %1689 = vst [vmem:[#allocation3 + $0x78] sm:$0xff] %v1497
    %1690 = vst [vmem:[#allocation3 + $0x80] sm:$0xff] %v1498
    %1691 = vst [vmem:[#allocation3 + $0x88] sm:$0xff] %v1499
    %1692 = vst [vmem:[#allocation3 + $0x90] sm:$0xff] %v1500
    %1693 = vst [vmem:[#allocation3 + $0x98] sm:$0xff] %v1501
    %1694 = vst [vmem:[#allocation3 + $0xa0] sm:$0xff] %v1502
    %1695 = vst [vmem:[#allocation3 + $0xa8] sm:$0xff] %v1503
    %1696 = vst [vmem:[#allocation3 + $0xb0] sm:$0xff] %v1504
    %1697 = vst [vmem:[#allocation3 + $0xb8] sm:$0xff] %v1505
    %1698 = vst [vmem:[#allocation3 + $0xc0] sm:$0xff] %v1506
    %1699 = vst [vmem:[#allocation3 + $0xc8] sm:$0xff] %v1507
    %1700 = vst [vmem:[#allocation3 + $0xd0] sm:$0xff] %v1508
    %1701 = vst [vmem:[#allocation3 + $0xd8] sm:$0xff] %v1509
    %1702 = vst [vmem:[#allocation3 + $0xe0] sm:$0xff] %v1510
    %1703 = vst [vmem:[#allocation3 + $0xe8] sm:$0xff] %v1511
    %1704 = vst [vmem:[#allocation3 + $0xf0] sm:$0xff] %v1512
    %1705 = vst [vmem:[#allocation3 + $0xf8] sm:$0xff] %v1513
    %1706 = vst [vmem:[#allocation3 + $0x100] sm:$0xff] %v1514
    %1707 = vst [vmem:[#allocation3 + $0x108] sm:$0xff] %v1515
    %1708 = vst [vmem:[#allocation3 + $0x110] sm:$0xff] %v1516
    %1709 = vst [vmem:[#allocation3 + $0x118] sm:$0xff] %v1517
    %1710 = vst [vmem:[#allocation3 + $0x120] sm:$0xff] %v1518
    %1711 = vst [vmem:[#allocation3 + $0x128] sm:$0xff] %v1519
    %1712 = vst [vmem:[#allocation3 + $0x130] sm:$0xff] %v1520
    %1713 = vst [vmem:[#allocation3 + $0x138] sm:$0xff] %v1521
    %1714 = vst [vmem:[#allocation3 + $0x140] sm:$0xff] %v1522
    %1715 = vst [vmem:[#allocation3 + $0x148] sm:$0xff] %v1523
    %1716 = vst [vmem:[#allocation3 + $0x150] sm:$0xff] %v1524
    %1717 = vst [vmem:[#allocation3 + $0x158] sm:$0xff] %v1525
    %1718 = vst [vmem:[#allocation3 + $0x160] sm:$0xff] %v1526
    %1719 = vst [vmem:[#allocation3 + $0x168] sm:$0xff] %v1527
    %1720 = vst [vmem:[#allocation3 + $0x170] sm:$0xff] %v1528
    %1721 = vst [vmem:[#allocation3 + $0x178] sm:$0xff] %v1529
    %1722 = vst [vmem:[#allocation3 + $0x180] sm:$0xff] %v1530
    %1723 = vst [vmem:[#allocation3 + $0x188] sm:$0xff] %v1531
    %1724 = vst [vmem:[#allocation3 + $0x190] sm:$0xff] %v1532
    %1725 = vst [vmem:[#allocation3 + $0x198] sm:$0xff] %v1533
    %1726 = vst [vmem:[#allocation3 + $0x1a0] sm:$0xff] %v1534
    %1727 = vst [vmem:[#allocation3 + $0x1a8] sm:$0xff] %v1535
    %1728 = vst [vmem:[#allocation3 + $0x1b0] sm:$0xff] %v1536
    %1729 = vst [vmem:[#allocation3 + $0x1b8] sm:$0xff] %v1537
    %1730 = vst [vmem:[#allocation3 + $0x1c0] sm:$0xff] %v1538
    %1731 = vst [vmem:[#allocation3 + $0x1c8] sm:$0xff] %v1539
    %1732 = vst [vmem:[#allocation3 + $0x1d0] sm:$0xff] %v1540
    %1733 = vst [vmem:[#allocation3 + $0x1d8] sm:$0xff] %v1541
    %1734 = vst [vmem:[#allocation3 + $0x1e0] sm:$0xff] %v1542
    %1735 = vst [vmem:[#allocation3 + $0x1e8] sm:$0xff] %v1543
    %1736 = vst [vmem:[#allocation3 + $0x1f0] sm:$0xff] %v1544
    %1737 = vst [vmem:[#allocation3 + $0x1f8] sm:$0xff] %v1545
    %1738 = vst [vmem:[#allocation3 + $0x200] sm:$0xff] %v1546
    %1739 = vst [vmem:[#allocation3 + $0x208] sm:$0xff] %v1547
    %1740 = vst [vmem:[#allocation3 + $0x210] sm:$0xff] %v1548
    %1741 = vst [vmem:[#allocation3 + $0x218] sm:$0xff] %v1549
    %1742 = vst [vmem:[#allocation3 + $0x220] sm:$0xff] %v1550
    %1743 = vst [vmem:[#allocation3 + $0x228] sm:$0xff] %v1551
    %1744 = vst [vmem:[#allocation3 + $0x230] sm:$0xff] %v1552
    %1745 = vst [vmem:[#allocation3 + $0x238] sm:$0xff] %v1553
    %1746 = vst [vmem:[#allocation3 + $0x240] sm:$0xff] %v1554
    %1747 = vst [vmem:[#allocation3 + $0x248] sm:$0xff] %v1555
    %1748 = vst [vmem:[#allocation3 + $0x250] sm:$0xff] %v1556
    %1749 = vst [vmem:[#allocation3 + $0x258] sm:$0xff] %v1557
    %1750 = vst [vmem:[#allocation3 + $0x260] sm:$0xff] %v1558
    %1751 = vst [vmem:[#allocation3 + $0x268] sm:$0xff] %v1559
    %1752 = vst [vmem:[#allocation3 + $0x270] sm:$0xff] %v1560
    %1753 = vst [vmem:[#allocation3 + $0x278] sm:$0xff] %v1561
    %1754 = vst [vmem:[#allocation3 + $0x280] sm:$0xff] %v1562
    %1755 = vst [vmem:[#allocation3 + $0x288] sm:$0xff] %v1563
    %1756 = vst [vmem:[#allocation3 + $0x290] sm:$0xff] %v1564
    %1757 = vst [vmem:[#allocation3 + $0x298] sm:$0xff] %v1565
    %1758 = vst [vmem:[#allocation3 + $0x2a0] sm:$0xff] %v1566
    %1759 = vst [vmem:[#allocation3 + $0x2a8] sm:$0xff] %v1567
    %1760 = vst [vmem:[#allocation3 + $0x2b0] sm:$0xff] %v1568
    %1761 = vst [vmem:[#allocation3 + $0x2b8] sm:$0xff] %v1569
    %1762 = vst [vmem:[#allocation3 + $0x2c0] sm:$0xff] %v1570
    %1763 = vst [vmem:[#allocation3 + $0x2c8] sm:$0xff] %v1571
    %1764 = vst [vmem:[#allocation3 + $0x2d0] sm:$0xff] %v1572
    %1765 = vst [vmem:[#allocation3 + $0x2d8] sm:$0xff] %v1573
    %1766 = vst [vmem:[#allocation3 + $0x2e0] sm:$0xff] %v1574
    %1767 = vst [vmem:[#allocation3 + $0x2e8] sm:$0xff] %v1575
    %1768 = vst [vmem:[#allocation3 + $0x2f0] sm:$0xff] %v1576
    %1769 = vst [vmem:[#allocation3 + $0x2f8] sm:$0xff] %v1577
    %1770 = vst [vmem:[#allocation3 + $0x300] sm:$0xff] %v1578
    %1771 = vst [vmem:[#allocation3 + $0x308] sm:$0xff] %v1579
    %1772 = vst [vmem:[#allocation3 + $0x310] sm:$0xff] %v1580
    %1773 = vst [vmem:[#allocation3 + $0x318] sm:$0xff] %v1581
    %1774 = vst [vmem:[#allocation3 + $0x320] sm:$0xff] %v1582
    %1775 = vst [vmem:[#allocation3 + $0x328] sm:$0xff] %v1583
    %1776 = vst [vmem:[#allocation3 + $0x330] sm:$0xff] %v1584
    %1777 = vst [vmem:[#allocation3 + $0x338] sm:$0xff] %v1585
    %1778 = vst [vmem:[#allocation3 + $0x340] sm:$0xff] %v1586
    %1779 = vst [vmem:[#allocation3 + $0x348] sm:$0xff] %v1587
    %1780 = vst [vmem:[#allocation3 + $0x350] sm:$0xff] %v1588
    %1781 = vst [vmem:[#allocation3 + $0x358] sm:$0xff] %v1589
    %1782 = vst [vmem:[#allocation3 + $0x360] sm:$0xff] %v1590
    %1783 = vst [vmem:[#allocation3 + $0x368] sm:$0xff] %v1591
    %1784 = vst [vmem:[#allocation3 + $0x370] sm:$0xff] %v1592
    %1785 = vst [vmem:[#allocation3 + $0x378] sm:$0xff] %v1593
    %1786 = vst [vmem:[#allocation3 + $0x380] sm:$0xff] %v1594
    %1787 = vst [vmem:[#allocation3 + $0x388] sm:$0xff] %v1595
    %1788 = vst [vmem:[#allocation3 + $0x390] sm:$0xff] %v1596
    %1789 = vst [vmem:[#allocation3 + $0x398] sm:$0xff] %v1597
    %1790 = vst [vmem:[#allocation3 + $0x3a0] sm:$0xff] %v1598
    %1791 = vst [vmem:[#allocation3 + $0x3a8] sm:$0xff] %v1599
    %1792 = vst [vmem:[#allocation3 + $0x3b0] sm:$0xff] %v1600
    %1793 = vst [vmem:[#allocation3 + $0x3b8] sm:$0xff] %v1601
    %1794 = vst [vmem:[#allocation3 + $0x3c0] sm:$0xff] %v1602
    %1795 = vst [vmem:[#allocation3 + $0x3c8] sm:$0xff] %v1603
    %1796 = vst [vmem:[#allocation3 + $0x3d0] sm:$0xff] %v1604
    %1797 = vst [vmem:[#allocation3 + $0x3d8] sm:$0xff] %v1605
    %1798 = vst [vmem:[#allocation3 + $0x3e0] sm:$0xff] %v1606
    %1799 = vst [vmem:[#allocation3 + $0x3e8] sm:$0xff] %v1607
    %1800 = vst [vmem:[#allocation3 + $0x3f0] sm:$0xff] %v1608
    %1801 = vst [vmem:[#allocation3 + $0x3f8] sm:$0xff] %v1609
    %1802 = vst [vmem:[#allocation3 + $0x400] sm:$0xff] %v1610
    %1803 = vst [vmem:[#allocation3 + $0x408] sm:$0xff] %v1611
    %1804 = vst [vmem:[#allocation3 + $0x410] sm:$0xff] %v1612
    %1805 = vst [vmem:[#allocation3 + $0x418] sm:$0xff] %v1613
    %1806 = vst [vmem:[#allocation3 + $0x420] sm:$0xff] %v1614
    %1807 = vst [vmem:[#allocation3 + $0x428] sm:$0xff] %v1615
    %1808 = vst [vmem:[#allocation3 + $0x430] sm:$0xff] %v1616
    %1809 = vst [vmem:[#allocation3 + $0x438] sm:$0xff] %v1617
    %1810 = vst [vmem:[#allocation3 + $0x440] sm:$0xff] %v1618
    %1811 = vst [vmem:[#allocation3 + $0x448] sm:$0xff] %v1619
    %1812 = vst [vmem:[#allocation3 + $0x450] sm:$0xff] %v1620
    %1813 = vst [vmem:[#allocation3 + $0x458] sm:$0xff] %v1621
    %1814 = vst [vmem:[#allocation3 + $0x460] sm:$0xff] %v1622
    %1815 = vst [vmem:[#allocation3 + $0x468] sm:$0xff] %v1623
    %1816 = vst [vmem:[#allocation3 + $0x470] sm:$0xff] %v1624
    %1817 = vst [vmem:[#allocation3 + $0x478] sm:$0xff] %v1625
    %1818 = vst [vmem:[#allocation3 + $0x480] sm:$0xff] %v1626
    %1819 = vst [vmem:[#allocation3 + $0x488] sm:$0xff] %v1627
    %1820 = vst [vmem:[#allocation3 + $0x490] sm:$0xff] %v1628
    %1821 = vst [vmem:[#allocation3 + $0x498] sm:$0xff] %v1629
    %1822 = vst [vmem:[#allocation3 + $0x4a0] sm:$0xff] %v1630
    %1823 = vst [vmem:[#allocation3 + $0x4a8] sm:$0xff] %v1631
    %1824 = vst [vmem:[#allocation3 + $0x4b0] sm:$0xff] %v1632
    %1825 = vst [vmem:[#allocation3 + $0x4b8] sm:$0xff] %v1633
    %1826 = vst [vmem:[#allocation3 + $0x4c0] sm:$0xff] %v1634
    %1827 = vst [vmem:[#allocation3 + $0x4c8] sm:$0xff] %v1635
    %1828 = vst [vmem:[#allocation3 + $0x4d0] sm:$0xff] %v1636
    %1829 = vst [vmem:[#allocation3 + $0x4d8] sm:$0xff] %v1637
    %1830 = vst [vmem:[#allocation3 + $0x4e0] sm:$0xff] %v1638
    %1831 = vst [vmem:[#allocation3 + $0x4e8] sm:$0xff] %v1639
    %1832 = vst [vmem:[#allocation3 + $0x4f0] sm:$0xff] %v1640
    %1833 = vst [vmem:[#allocation3 + $0x4f8] sm:$0xff] %v1641
    %1834 = vst [vmem:[#allocation3 + $0x500] sm:$0xff] %v1642
    %1835 = vst [vmem:[#allocation3 + $0x508] sm:$0xff] %v1643
    %1836 = vst [vmem:[#allocation3 + $0x510] sm:$0xff] %v1644
    %1837 = vst [vmem:[#allocation3 + $0x518] sm:$0xff] %v1645
    %1838 = vst [vmem:[#allocation3 + $0x520] sm:$0xff] %v1646
    %1839 = vst [vmem:[#allocation3 + $0x528] sm:$0xff] %v1647
    %1840 = vst [vmem:[#allocation3 + $0x530] sm:$0xff] %v1648
    %1841 = vst [vmem:[#allocation3 + $0x538] sm:$0xff] %v1649
    %1842 = vst [vmem:[#allocation3 + $0x540] sm:$0xff] %v1650
    %1843 = vst [vmem:[#allocation3 + $0x548] sm:$0xff] %v1651
    %1844 = vst [vmem:[#allocation3 + $0x550] sm:$0xff] %v1652
    %1845 = vst [vmem:[#allocation3 + $0x558] sm:$0xff] %v1653
    %1846 = vst [vmem:[#allocation3 + $0x560] sm:$0xff] %v1654
    %1847 = vst [vmem:[#allocation3 + $0x568] sm:$0xff] %v1655
    %1848 = vst [vmem:[#allocation3 + $0x570] sm:$0xff] %v1656
    %1849 = vst [vmem:[#allocation3 + $0x578] sm:$0xff] %v1657
    %1850 = vst [vmem:[#allocation3 + $0x580] sm:$0xff] %v1658
    %1851 = vst [vmem:[#allocation3 + $0x588] sm:$0xff] %v1659
    %1852 = vst [vmem:[#allocation3 + $0x590] sm:$0xff] %v1660
    %1853 = vst [vmem:[#allocation3 + $0x598] sm:$0xff] %v1661
    %1854 = vst [vmem:[#allocation3 + $0x5a0] sm:$0xff] %v1662
    %1855 = vst [vmem:[#allocation3 + $0x5a8] sm:$0xff] %v1663
    %1856 = vst [vmem:[#allocation3 + $0x5b0] sm:$0xff] %v1664
    %1857 = vst [vmem:[#allocation3 + $0x5b8] sm:$0xff] %v1665
    %1858 = vst [vmem:[#allocation3 + $0x5c0] sm:$0xff] %v1666
    %1859 = vst [vmem:[#allocation3 + $0x5c8] sm:$0xff] %v1667
    %1860 = vst [vmem:[#allocation3 + $0x5d0] sm:$0xff] %v1668
    %1861 = vst [vmem:[#allocation3 + $0x5d8] sm:$0xff] %v1669
    %1862 = vst [vmem:[#allocation3 + $0x5e0] sm:$0xff] %v1670
    %1863 = vst [vmem:[#allocation3 + $0x5e8] sm:$0xff] %v1671
    %1864 = vst [vmem:[#allocation3 + $0x5f0] sm:$0xff] %v1672
    %1865 = vst [vmem:[#allocation3 + $0x5f8] sm:$0xff] %v1673
    %v1866 = vmul.u32 %v87, 48
    %v1867 = vmul.u32 %v88, 48
    %v1868 = vmul.u32 %v89, 48
    %v1869 = vmul.u32 %v90, 48
    %v1870 = vadd.s32 %v1866, %v242
    %v1871 = vadd.s32 %v1867, %v243
    %v1872 = vadd.s32 %v1868, %v244
    %v1873 = vadd.s32 %v1869, %v245
    %v1874 = vadd.s32 %v1870, %v250
    %v1875 = vadd.s32 %v1871, %v251
    %v1876 = vadd.s32 %v1872, %v252
    %v1877 = vadd.s32 %v1873, %v253
    %v1878 = vlaneseq
    %v1879 = vshrl.u32 %v1878, 7
    %v1880 = vsub.s32 1, %v1879
    %v1881 = vrot.slane %v1874, %v1880
    %v1882 = vlaneseq
    %v1883 = vshrl.u32 %v1882, 7
    %v1884 = vsub.s32 1, %v1883
    %v1885 = vrot.slane %v1875, %v1884
    %v1886 = vlaneseq
    %v1887 = vshrl.u32 %v1886, 7
    %v1888 = vsub.s32 1, %v1887
    %v1889 = vrot.slane %v1876, %v1888
    %v1890 = vlaneseq
    %v1891 = vshrl.u32 %v1890, 7
    %v1892 = vsub.s32 1, %v1891
    %v1893 = vrot.slane %v1877, %v1892
    %vm1894 = vcmp.eq.s32.totalorder %v150, %v1881
    %vm1895 = vcmp.eq.s32.totalorder %v150, %v1885
    %vm1896 = vcmp.eq.s32.totalorder %v150, %v1889
    %vm1897 = vcmp.eq.s32.totalorder %v150, %v1893
    %vm1898 = vcmp.eq.s32.totalorder %v151, %v1881
    %vm1899 = vcmp.eq.s32.totalorder %v151, %v1885
    %vm1900 = vcmp.eq.s32.totalorder %v151, %v1889
    %vm1901 = vcmp.eq.s32.totalorder %v151, %v1893
    %vm1902 = vcmp.eq.s32.totalorder %v152, %v1881
    %vm1903 = vcmp.eq.s32.totalorder %v152, %v1885
    %vm1904 = vcmp.eq.s32.totalorder %v152, %v1889
    %vm1905 = vcmp.eq.s32.totalorder %v152, %v1893
    %vm1906 = vcmp.eq.s32.totalorder %v153, %v1881
    %vm1907 = vcmp.eq.s32.totalorder %v153, %v1885
    %vm1908 = vcmp.eq.s32.totalorder %v153, %v1889
    %vm1909 = vcmp.eq.s32.totalorder %v153, %v1893
    %vm1910 = vcmp.eq.s32.totalorder %v154, %v1881
    %vm1911 = vcmp.eq.s32.totalorder %v154, %v1885
    %vm1912 = vcmp.eq.s32.totalorder %v154, %v1889
    %vm1913 = vcmp.eq.s32.totalorder %v154, %v1893
    %vm1914 = vcmp.eq.s32.totalorder %v155, %v1881
    %vm1915 = vcmp.eq.s32.totalorder %v155, %v1885
    %vm1916 = vcmp.eq.s32.totalorder %v155, %v1889
    %vm1917 = vcmp.eq.s32.totalorder %v155, %v1893
    %vm1918 = vcmp.eq.s32.totalorder %v156, %v1881
    %vm1919 = vcmp.eq.s32.totalorder %v156, %v1885
    %vm1920 = vcmp.eq.s32.totalorder %v156, %v1889
    %vm1921 = vcmp.eq.s32.totalorder %v156, %v1893
    %vm1922 = vcmp.eq.s32.totalorder %v157, %v1881
    %vm1923 = vcmp.eq.s32.totalorder %v157, %v1885
    %vm1924 = vcmp.eq.s32.totalorder %v157, %v1889
    %vm1925 = vcmp.eq.s32.totalorder %v157, %v1893
    %vm1926 = vcmp.eq.s32.totalorder %v158, %v1881
    %vm1927 = vcmp.eq.s32.totalorder %v158, %v1885
    %vm1928 = vcmp.eq.s32.totalorder %v158, %v1889
    %vm1929 = vcmp.eq.s32.totalorder %v158, %v1893
    %vm1930 = vcmp.eq.s32.totalorder %v159, %v1881
    %vm1931 = vcmp.eq.s32.totalorder %v159, %v1885
    %vm1932 = vcmp.eq.s32.totalorder %v159, %v1889
    %vm1933 = vcmp.eq.s32.totalorder %v159, %v1893
    %vm1934 = vcmp.eq.s32.totalorder %v160, %v1881
    %vm1935 = vcmp.eq.s32.totalorder %v160, %v1885
    %vm1936 = vcmp.eq.s32.totalorder %v160, %v1889
    %vm1937 = vcmp.eq.s32.totalorder %v160, %v1893
    %vm1938 = vcmp.eq.s32.totalorder %v161, %v1881
    %vm1939 = vcmp.eq.s32.totalorder %v161, %v1885
    %vm1940 = vcmp.eq.s32.totalorder %v161, %v1889
    %vm1941 = vcmp.eq.s32.totalorder %v161, %v1893
    %vm1942 = vcmp.eq.s32.totalorder %v162, %v1881
    %vm1943 = vcmp.eq.s32.totalorder %v162, %v1885
    %vm1944 = vcmp.eq.s32.totalorder %v162, %v1889
    %vm1945 = vcmp.eq.s32.totalorder %v162, %v1893
    %vm1946 = vcmp.eq.s32.totalorder %v163, %v1881
    %vm1947 = vcmp.eq.s32.totalorder %v163, %v1885
    %vm1948 = vcmp.eq.s32.totalorder %v163, %v1889
    %vm1949 = vcmp.eq.s32.totalorder %v163, %v1893
    %vm1950 = vcmp.eq.s32.totalorder %v164, %v1881
    %vm1951 = vcmp.eq.s32.totalorder %v164, %v1885
    %vm1952 = vcmp.eq.s32.totalorder %v164, %v1889
    %vm1953 = vcmp.eq.s32.totalorder %v164, %v1893
    %vm1954 = vcmp.eq.s32.totalorder %v165, %v1881
    %vm1955 = vcmp.eq.s32.totalorder %v165, %v1885
    %vm1956 = vcmp.eq.s32.totalorder %v165, %v1889
    %vm1957 = vcmp.eq.s32.totalorder %v165, %v1893
    %vm1958 = vcmp.eq.s32.totalorder %v166, %v1881
    %vm1959 = vcmp.eq.s32.totalorder %v166, %v1885
    %vm1960 = vcmp.eq.s32.totalorder %v166, %v1889
    %vm1961 = vcmp.eq.s32.totalorder %v166, %v1893
    %vm1962 = vcmp.eq.s32.totalorder %v167, %v1881
    %vm1963 = vcmp.eq.s32.totalorder %v167, %v1885
    %vm1964 = vcmp.eq.s32.totalorder %v167, %v1889
    %vm1965 = vcmp.eq.s32.totalorder %v167, %v1893
    %vm1966 = vcmp.eq.s32.totalorder %v168, %v1881
    %vm1967 = vcmp.eq.s32.totalorder %v168, %v1885
    %vm1968 = vcmp.eq.s32.totalorder %v168, %v1889
    %vm1969 = vcmp.eq.s32.totalorder %v168, %v1893
    %vm1970 = vcmp.eq.s32.totalorder %v169, %v1881
    %vm1971 = vcmp.eq.s32.totalorder %v169, %v1885
    %vm1972 = vcmp.eq.s32.totalorder %v169, %v1889
    %vm1973 = vcmp.eq.s32.totalorder %v169, %v1893
    %vm1974 = vcmp.eq.s32.totalorder %v170, %v1881
    %vm1975 = vcmp.eq.s32.totalorder %v170, %v1885
    %vm1976 = vcmp.eq.s32.totalorder %v170, %v1889
    %vm1977 = vcmp.eq.s32.totalorder %v170, %v1893
    %vm1978 = vcmp.eq.s32.totalorder %v171, %v1881
    %vm1979 = vcmp.eq.s32.totalorder %v171, %v1885
    %vm1980 = vcmp.eq.s32.totalorder %v171, %v1889
    %vm1981 = vcmp.eq.s32.totalorder %v171, %v1893
    %vm1982 = vcmp.eq.s32.totalorder %v172, %v1881
    %vm1983 = vcmp.eq.s32.totalorder %v172, %v1885
    %vm1984 = vcmp.eq.s32.totalorder %v172, %v1889
    %vm1985 = vcmp.eq.s32.totalorder %v172, %v1893
    %vm1986 = vcmp.eq.s32.totalorder %v173, %v1881
    %vm1987 = vcmp.eq.s32.totalorder %v173, %v1885
    %vm1988 = vcmp.eq.s32.totalorder %v173, %v1889
    %vm1989 = vcmp.eq.s32.totalorder %v173, %v1893
    %vm1990 = vcmp.eq.s32.totalorder %v174, %v1881
    %vm1991 = vcmp.eq.s32.totalorder %v174, %v1885
    %vm1992 = vcmp.eq.s32.totalorder %v174, %v1889
    %vm1993 = vcmp.eq.s32.totalorder %v174, %v1893
    %vm1994 = vcmp.eq.s32.totalorder %v175, %v1881
    %vm1995 = vcmp.eq.s32.totalorder %v175, %v1885
    %vm1996 = vcmp.eq.s32.totalorder %v175, %v1889
    %vm1997 = vcmp.eq.s32.totalorder %v175, %v1893
    %vm1998 = vcmp.eq.s32.totalorder %v176, %v1881
    %vm1999 = vcmp.eq.s32.totalorder %v176, %v1885
    %vm2000 = vcmp.eq.s32.totalorder %v176, %v1889
    %vm2001 = vcmp.eq.s32.totalorder %v176, %v1893
    %vm2002 = vcmp.eq.s32.totalorder %v177, %v1881
    %vm2003 = vcmp.eq.s32.totalorder %v177, %v1885
    %vm2004 = vcmp.eq.s32.totalorder %v177, %v1889
    %vm2005 = vcmp.eq.s32.totalorder %v177, %v1893
    %vm2006 = vcmp.eq.s32.totalorder %v178, %v1881
    %vm2007 = vcmp.eq.s32.totalorder %v178, %v1885
    %vm2008 = vcmp.eq.s32.totalorder %v178, %v1889
    %vm2009 = vcmp.eq.s32.totalorder %v178, %v1893
    %vm2010 = vcmp.eq.s32.totalorder %v179, %v1881
    %vm2011 = vcmp.eq.s32.totalorder %v179, %v1885
    %vm2012 = vcmp.eq.s32.totalorder %v179, %v1889
    %vm2013 = vcmp.eq.s32.totalorder %v179, %v1893
    %vm2014 = vcmp.eq.s32.totalorder %v180, %v1881
    %vm2015 = vcmp.eq.s32.totalorder %v180, %v1885
    %vm2016 = vcmp.eq.s32.totalorder %v180, %v1889
    %vm2017 = vcmp.eq.s32.totalorder %v180, %v1893
    %vm2018 = vcmp.eq.s32.totalorder %v181, %v1881
    %vm2019 = vcmp.eq.s32.totalorder %v181, %v1885
    %vm2020 = vcmp.eq.s32.totalorder %v181, %v1889
    %vm2021 = vcmp.eq.s32.totalorder %v181, %v1893
    %vm2022 = vcmp.eq.s32.totalorder %v182, %v1881
    %vm2023 = vcmp.eq.s32.totalorder %v182, %v1885
    %vm2024 = vcmp.eq.s32.totalorder %v182, %v1889
    %vm2025 = vcmp.eq.s32.totalorder %v182, %v1893
    %vm2026 = vcmp.eq.s32.totalorder %v183, %v1881
    %vm2027 = vcmp.eq.s32.totalorder %v183, %v1885
    %vm2028 = vcmp.eq.s32.totalorder %v183, %v1889
    %vm2029 = vcmp.eq.s32.totalorder %v183, %v1893
    %vm2030 = vcmp.eq.s32.totalorder %v184, %v1881
    %vm2031 = vcmp.eq.s32.totalorder %v184, %v1885
    %vm2032 = vcmp.eq.s32.totalorder %v184, %v1889
    %vm2033 = vcmp.eq.s32.totalorder %v184, %v1893
    %vm2034 = vcmp.eq.s32.totalorder %v185, %v1881
    %vm2035 = vcmp.eq.s32.totalorder %v185, %v1885
    %vm2036 = vcmp.eq.s32.totalorder %v185, %v1889
    %vm2037 = vcmp.eq.s32.totalorder %v185, %v1893
    %vm2038 = vcmp.eq.s32.totalorder %v186, %v1881
    %vm2039 = vcmp.eq.s32.totalorder %v186, %v1885
    %vm2040 = vcmp.eq.s32.totalorder %v186, %v1889
    %vm2041 = vcmp.eq.s32.totalorder %v186, %v1893
    %vm2042 = vcmp.eq.s32.totalorder %v187, %v1881
    %vm2043 = vcmp.eq.s32.totalorder %v187, %v1885
    %vm2044 = vcmp.eq.s32.totalorder %v187, %v1889
    %vm2045 = vcmp.eq.s32.totalorder %v187, %v1893
    %vm2046 = vcmp.eq.s32.totalorder %v188, %v1881
    %vm2047 = vcmp.eq.s32.totalorder %v188, %v1885
    %vm2048 = vcmp.eq.s32.totalorder %v188, %v1889
    %vm2049 = vcmp.eq.s32.totalorder %v188, %v1893
    %vm2050 = vcmp.eq.s32.totalorder %v189, %v1881
    %vm2051 = vcmp.eq.s32.totalorder %v189, %v1885
    %vm2052 = vcmp.eq.s32.totalorder %v189, %v1889
    %vm2053 = vcmp.eq.s32.totalorder %v189, %v1893
    %vm2054 = vcmp.eq.s32.totalorder %v190, %v1881
    %vm2055 = vcmp.eq.s32.totalorder %v190, %v1885
    %vm2056 = vcmp.eq.s32.totalorder %v190, %v1889
    %vm2057 = vcmp.eq.s32.totalorder %v190, %v1893
    %vm2058 = vcmp.eq.s32.totalorder %v191, %v1881
    %vm2059 = vcmp.eq.s32.totalorder %v191, %v1885
    %vm2060 = vcmp.eq.s32.totalorder %v191, %v1889
    %vm2061 = vcmp.eq.s32.totalorder %v191, %v1893
    %vm2062 = vcmp.eq.s32.totalorder %v192, %v1881
    %vm2063 = vcmp.eq.s32.totalorder %v192, %v1885
    %vm2064 = vcmp.eq.s32.totalorder %v192, %v1889
    %vm2065 = vcmp.eq.s32.totalorder %v192, %v1893
    %vm2066 = vcmp.eq.s32.totalorder %v193, %v1881
    %vm2067 = vcmp.eq.s32.totalorder %v193, %v1885
    %vm2068 = vcmp.eq.s32.totalorder %v193, %v1889
    %vm2069 = vcmp.eq.s32.totalorder %v193, %v1893
    %vm2070 = vcmp.eq.s32.totalorder %v194, %v1881
    %vm2071 = vcmp.eq.s32.totalorder %v194, %v1885
    %vm2072 = vcmp.eq.s32.totalorder %v194, %v1889
    %vm2073 = vcmp.eq.s32.totalorder %v194, %v1893
    %vm2074 = vcmp.eq.s32.totalorder %v195, %v1881
    %vm2075 = vcmp.eq.s32.totalorder %v195, %v1885
    %vm2076 = vcmp.eq.s32.totalorder %v195, %v1889
    %vm2077 = vcmp.eq.s32.totalorder %v195, %v1893
    %vm2078 = vcmp.eq.s32.totalorder %v196, %v1881
    %vm2079 = vcmp.eq.s32.totalorder %v196, %v1885
    %vm2080 = vcmp.eq.s32.totalorder %v196, %v1889
    %vm2081 = vcmp.eq.s32.totalorder %v196, %v1893
    %vm2082 = vcmp.eq.s32.totalorder %v197, %v1881
    %vm2083 = vcmp.eq.s32.totalorder %v197, %v1885
    %vm2084 = vcmp.eq.s32.totalorder %v197, %v1889
    %vm2085 = vcmp.eq.s32.totalorder %v197, %v1893
    %v2086 = vlaneseq
    %v2087 = vshrl.u32 %v2086, 7
    %v2088 = vsub.s32 1, %v2087
    %v2089 = vrot.slane %v230, %v2088
    %v2090 = vlaneseq
    %v2091 = vshrl.u32 %v2090, 7
    %v2092 = vsub.s32 1, %v2091
    %v2093 = vrot.slane %v231, %v2092
    %v2094 = vlaneseq
    %v2095 = vshrl.u32 %v2094, 7
    %v2096 = vsub.s32 1, %v2095
    %v2097 = vrot.slane %v232, %v2096
    %v2098 = vlaneseq
    %v2099 = vshrl.u32 %v2098, 7
    %v2100 = vsub.s32 1, %v2099
    %v2101 = vrot.slane %v233, %v2100
    %v2102 = vsel %vm1894, %v2089, 0.0
    %v2103 = vsel %vm1895, %v2093, 0.0
    %v2104 = vsel %vm1896, %v2097, 0.0
    %v2105 = vsel %vm1897, %v2101, 0.0
    %v2106 = vsel %vm1898, %v2089, 0.0
    %v2107 = vsel %vm1899, %v2093, 0.0
    %v2108 = vsel %vm1900, %v2097, 0.0
    %v2109 = vsel %vm1901, %v2101, 0.0
    %v2110 = vsel %vm1902, %v2089, 0.0
    %v2111 = vsel %vm1903, %v2093, 0.0
    %v2112 = vsel %vm1904, %v2097, 0.0
    %v2113 = vsel %vm1905, %v2101, 0.0
    %v2114 = vsel %vm1906, %v2089, 0.0
    %v2115 = vsel %vm1907, %v2093, 0.0
    %v2116 = vsel %vm1908, %v2097, 0.0
    %v2117 = vsel %vm1909, %v2101, 0.0
    %v2118 = vsel %vm1910, %v2089, 0.0
    %v2119 = vsel %vm1911, %v2093, 0.0
    %v2120 = vsel %vm1912, %v2097, 0.0
    %v2121 = vsel %vm1913, %v2101, 0.0
    %v2122 = vsel %vm1914, %v2089, 0.0
    %v2123 = vsel %vm1915, %v2093, 0.0
    %v2124 = vsel %vm1916, %v2097, 0.0
    %v2125 = vsel %vm1917, %v2101, 0.0
    %v2126 = vsel %vm1918, %v2089, 0.0
    %v2127 = vsel %vm1919, %v2093, 0.0
    %v2128 = vsel %vm1920, %v2097, 0.0
    %v2129 = vsel %vm1921, %v2101, 0.0
    %v2130 = vsel %vm1922, %v2089, 0.0
    %v2131 = vsel %vm1923, %v2093, 0.0
    %v2132 = vsel %vm1924, %v2097, 0.0
    %v2133 = vsel %vm1925, %v2101, 0.0
    %v2134 = vsel %vm1926, %v2089, 0.0
    %v2135 = vsel %vm1927, %v2093, 0.0
    %v2136 = vsel %vm1928, %v2097, 0.0
    %v2137 = vsel %vm1929, %v2101, 0.0
    %v2138 = vsel %vm1930, %v2089, 0.0
    %v2139 = vsel %vm1931, %v2093, 0.0
    %v2140 = vsel %vm1932, %v2097, 0.0
    %v2141 = vsel %vm1933, %v2101, 0.0
    %v2142 = vsel %vm1934, %v2089, 0.0
    %v2143 = vsel %vm1935, %v2093, 0.0
    %v2144 = vsel %vm1936, %v2097, 0.0
    %v2145 = vsel %vm1937, %v2101, 0.0
    %v2146 = vsel %vm1938, %v2089, 0.0
    %v2147 = vsel %vm1939, %v2093, 0.0
    %v2148 = vsel %vm1940, %v2097, 0.0
    %v2149 = vsel %vm1941, %v2101, 0.0
    %v2150 = vsel %vm1942, %v2089, 0.0
    %v2151 = vsel %vm1943, %v2093, 0.0
    %v2152 = vsel %vm1944, %v2097, 0.0
    %v2153 = vsel %vm1945, %v2101, 0.0
    %v2154 = vsel %vm1946, %v2089, 0.0
    %v2155 = vsel %vm1947, %v2093, 0.0
    %v2156 = vsel %vm1948, %v2097, 0.0
    %v2157 = vsel %vm1949, %v2101, 0.0
    %v2158 = vsel %vm1950, %v2089, 0.0
    %v2159 = vsel %vm1951, %v2093, 0.0
    %v2160 = vsel %vm1952, %v2097, 0.0
    %v2161 = vsel %vm1953, %v2101, 0.0
    %v2162 = vsel %vm1954, %v2089, 0.0
    %v2163 = vsel %vm1955, %v2093, 0.0
    %v2164 = vsel %vm1956, %v2097, 0.0
    %v2165 = vsel %vm1957, %v2101, 0.0
    %v2166 = vsel %vm1958, %v2089, 0.0
    %v2167 = vsel %vm1959, %v2093, 0.0
    %v2168 = vsel %vm1960, %v2097, 0.0
    %v2169 = vsel %vm1961, %v2101, 0.0
    %v2170 = vsel %vm1962, %v2089, 0.0
    %v2171 = vsel %vm1963, %v2093, 0.0
    %v2172 = vsel %vm1964, %v2097, 0.0
    %v2173 = vsel %vm1965, %v2101, 0.0
    %v2174 = vsel %vm1966, %v2089, 0.0
    %v2175 = vsel %vm1967, %v2093, 0.0
    %v2176 = vsel %vm1968, %v2097, 0.0
    %v2177 = vsel %vm1969, %v2101, 0.0
    %v2178 = vsel %vm1970, %v2089, 0.0
    %v2179 = vsel %vm1971, %v2093, 0.0
    %v2180 = vsel %vm1972, %v2097, 0.0
    %v2181 = vsel %vm1973, %v2101, 0.0
    %v2182 = vsel %vm1974, %v2089, 0.0
    %v2183 = vsel %vm1975, %v2093, 0.0
    %v2184 = vsel %vm1976, %v2097, 0.0
    %v2185 = vsel %vm1977, %v2101, 0.0
    %v2186 = vsel %vm1978, %v2089, 0.0
    %v2187 = vsel %vm1979, %v2093, 0.0
    %v2188 = vsel %vm1980, %v2097, 0.0
    %v2189 = vsel %vm1981, %v2101, 0.0
    %v2190 = vsel %vm1982, %v2089, 0.0
    %v2191 = vsel %vm1983, %v2093, 0.0
    %v2192 = vsel %vm1984, %v2097, 0.0
    %v2193 = vsel %vm1985, %v2101, 0.0
    %v2194 = vsel %vm1986, %v2089, 0.0
    %v2195 = vsel %vm1987, %v2093, 0.0
    %v2196 = vsel %vm1988, %v2097, 0.0
    %v2197 = vsel %vm1989, %v2101, 0.0
    %v2198 = vsel %vm1990, %v2089, 0.0
    %v2199 = vsel %vm1991, %v2093, 0.0
    %v2200 = vsel %vm1992, %v2097, 0.0
    %v2201 = vsel %vm1993, %v2101, 0.0
    %v2202 = vsel %vm1994, %v2089, 0.0
    %v2203 = vsel %vm1995, %v2093, 0.0
    %v2204 = vsel %vm1996, %v2097, 0.0
    %v2205 = vsel %vm1997, %v2101, 0.0
    %v2206 = vsel %vm1998, %v2089, 0.0
    %v2207 = vsel %vm1999, %v2093, 0.0
    %v2208 = vsel %vm2000, %v2097, 0.0
    %v2209 = vsel %vm2001, %v2101, 0.0
    %v2210 = vsel %vm2002, %v2089, 0.0
    %v2211 = vsel %vm2003, %v2093, 0.0
    %v2212 = vsel %vm2004, %v2097, 0.0
    %v2213 = vsel %vm2005, %v2101, 0.0
    %v2214 = vsel %vm2006, %v2089, 0.0
    %v2215 = vsel %vm2007, %v2093, 0.0
    %v2216 = vsel %vm2008, %v2097, 0.0
    %v2217 = vsel %vm2009, %v2101, 0.0
    %v2218 = vsel %vm2010, %v2089, 0.0
    %v2219 = vsel %vm2011, %v2093, 0.0
    %v2220 = vsel %vm2012, %v2097, 0.0
    %v2221 = vsel %vm2013, %v2101, 0.0
    %v2222 = vsel %vm2014, %v2089, 0.0
    %v2223 = vsel %vm2015, %v2093, 0.0
    %v2224 = vsel %vm2016, %v2097, 0.0
    %v2225 = vsel %vm2017, %v2101, 0.0
    %v2226 = vsel %vm2018, %v2089, 0.0
    %v2227 = vsel %vm2019, %v2093, 0.0
    %v2228 = vsel %vm2020, %v2097, 0.0
    %v2229 = vsel %vm2021, %v2101, 0.0
    %v2230 = vsel %vm2022, %v2089, 0.0
    %v2231 = vsel %vm2023, %v2093, 0.0
    %v2232 = vsel %vm2024, %v2097, 0.0
    %v2233 = vsel %vm2025, %v2101, 0.0
    %v2234 = vsel %vm2026, %v2089, 0.0
    %v2235 = vsel %vm2027, %v2093, 0.0
    %v2236 = vsel %vm2028, %v2097, 0.0
    %v2237 = vsel %vm2029, %v2101, 0.0
    %v2238 = vsel %vm2030, %v2089, 0.0
    %v2239 = vsel %vm2031, %v2093, 0.0
    %v2240 = vsel %vm2032, %v2097, 0.0
    %v2241 = vsel %vm2033, %v2101, 0.0
    %v2242 = vsel %vm2034, %v2089, 0.0
    %v2243 = vsel %vm2035, %v2093, 0.0
    %v2244 = vsel %vm2036, %v2097, 0.0
    %v2245 = vsel %vm2037, %v2101, 0.0
    %v2246 = vsel %vm2038, %v2089, 0.0
    %v2247 = vsel %vm2039, %v2093, 0.0
    %v2248 = vsel %vm2040, %v2097, 0.0
    %v2249 = vsel %vm2041, %v2101, 0.0
    %v2250 = vsel %vm2042, %v2089, 0.0
    %v2251 = vsel %vm2043, %v2093, 0.0
    %v2252 = vsel %vm2044, %v2097, 0.0
    %v2253 = vsel %vm2045, %v2101, 0.0
    %v2254 = vsel %vm2046, %v2089, 0.0
    %v2255 = vsel %vm2047, %v2093, 0.0
    %v2256 = vsel %vm2048, %v2097, 0.0
    %v2257 = vsel %vm2049, %v2101, 0.0
    %v2258 = vsel %vm2050, %v2089, 0.0
    %v2259 = vsel %vm2051, %v2093, 0.0
    %v2260 = vsel %vm2052, %v2097, 0.0
    %v2261 = vsel %vm2053, %v2101, 0.0
    %v2262 = vsel %vm2054, %v2089, 0.0
    %v2263 = vsel %vm2055, %v2093, 0.0
    %v2264 = vsel %vm2056, %v2097, 0.0
    %v2265 = vsel %vm2057, %v2101, 0.0
    %v2266 = vsel %vm2058, %v2089, 0.0
    %v2267 = vsel %vm2059, %v2093, 0.0
    %v2268 = vsel %vm2060, %v2097, 0.0
    %v2269 = vsel %vm2061, %v2101, 0.0
    %v2270 = vsel %vm2062, %v2089, 0.0
    %v2271 = vsel %vm2063, %v2093, 0.0
    %v2272 = vsel %vm2064, %v2097, 0.0
    %v2273 = vsel %vm2065, %v2101, 0.0
    %v2274 = vsel %vm2066, %v2089, 0.0
    %v2275 = vsel %vm2067, %v2093, 0.0
    %v2276 = vsel %vm2068, %v2097, 0.0
    %v2277 = vsel %vm2069, %v2101, 0.0
    %v2278 = vsel %vm2070, %v2089, 0.0
    %v2279 = vsel %vm2071, %v2093, 0.0
    %v2280 = vsel %vm2072, %v2097, 0.0
    %v2281 = vsel %vm2073, %v2101, 0.0
    %v2282 = vsel %vm2074, %v2089, 0.0
    %v2283 = vsel %vm2075, %v2093, 0.0
    %v2284 = vsel %vm2076, %v2097, 0.0
    %v2285 = vsel %vm2077, %v2101, 0.0
    %v2286 = vsel %vm2078, %v2089, 0.0
    %v2287 = vsel %vm2079, %v2093, 0.0
    %v2288 = vsel %vm2080, %v2097, 0.0
    %v2289 = vsel %vm2081, %v2101, 0.0
    %v2290 = vsel %vm2082, %v2089, 0.0
    %v2291 = vsel %vm2083, %v2093, 0.0
    %v2292 = vsel %vm2084, %v2097, 0.0
    %v2293 = vsel %vm2085, %v2101, 0.0
    %v2294 = vld [vmem:[#allocation3] sm:$0xff]
    %v2295 = vld [vmem:[#allocation3 + $0x8] sm:$0xff]
    %v2296 = vld [vmem:[#allocation3 + $0x10] sm:$0xff]
    %v2297 = vld [vmem:[#allocation3 + $0x18] sm:$0xff]
    %v2298 = vld [vmem:[#allocation3 + $0x20] sm:$0xff]
    %v2299 = vld [vmem:[#allocation3 + $0x28] sm:$0xff]
    %v2300 = vld [vmem:[#allocation3 + $0x30] sm:$0xff]
    %v2301 = vld [vmem:[#allocation3 + $0x38] sm:$0xff]
    %v2302 = vld [vmem:[#allocation3 + $0x40] sm:$0xff]
    %v2303 = vld [vmem:[#allocation3 + $0x48] sm:$0xff]
    %v2304 = vld [vmem:[#allocation3 + $0x50] sm:$0xff]
    %v2305 = vld [vmem:[#allocation3 + $0x58] sm:$0xff]
    %v2306 = vld [vmem:[#allocation3 + $0x60] sm:$0xff]
    %v2307 = vld [vmem:[#allocation3 + $0x68] sm:$0xff]
    %v2308 = vld [vmem:[#allocation3 + $0x70] sm:$0xff]
    %v2309 = vld [vmem:[#allocation3 + $0x78] sm:$0xff]
    %v2310 = vld [vmem:[#allocation3 + $0x80] sm:$0xff]
    %v2311 = vld [vmem:[#allocation3 + $0x88] sm:$0xff]
    %v2312 = vld [vmem:[#allocation3 + $0x90] sm:$0xff]
    %v2313 = vld [vmem:[#allocation3 + $0x98] sm:$0xff]
    %v2314 = vld [vmem:[#allocation3 + $0xa0] sm:$0xff]
    %v2315 = vld [vmem:[#allocation3 + $0xa8] sm:$0xff]
    %v2316 = vld [vmem:[#allocation3 + $0xb0] sm:$0xff]
    %v2317 = vld [vmem:[#allocation3 + $0xb8] sm:$0xff]
    %v2318 = vld [vmem:[#allocation3 + $0xc0] sm:$0xff]
    %v2319 = vld [vmem:[#allocation3 + $0xc8] sm:$0xff]
    %v2320 = vld [vmem:[#allocation3 + $0xd0] sm:$0xff]
    %v2321 = vld [vmem:[#allocation3 + $0xd8] sm:$0xff]
    %v2322 = vld [vmem:[#allocation3 + $0xe0] sm:$0xff]
    %v2323 = vld [vmem:[#allocation3 + $0xe8] sm:$0xff]
    %v2324 = vld [vmem:[#allocation3 + $0xf0] sm:$0xff]
    %v2325 = vld [vmem:[#allocation3 + $0xf8] sm:$0xff]
    %v2326 = vld [vmem:[#allocation3 + $0x100] sm:$0xff]
    %v2327 = vld [vmem:[#allocation3 + $0x108] sm:$0xff]
    %v2328 = vld [vmem:[#allocation3 + $0x110] sm:$0xff]
    %v2329 = vld [vmem:[#allocation3 + $0x118] sm:$0xff]
    %v2330 = vld [vmem:[#allocation3 + $0x120] sm:$0xff]
    %v2331 = vld [vmem:[#allocation3 + $0x128] sm:$0xff]
    %v2332 = vld [vmem:[#allocation3 + $0x130] sm:$0xff]
    %v2333 = vld [vmem:[#allocation3 + $0x138] sm:$0xff]
    %v2334 = vld [vmem:[#allocation3 + $0x140] sm:$0xff]
    %v2335 = vld [vmem:[#allocation3 + $0x148] sm:$0xff]
    %v2336 = vld [vmem:[#allocation3 + $0x150] sm:$0xff]
    %v2337 = vld [vmem:[#allocation3 + $0x158] sm:$0xff]
    %v2338 = vld [vmem:[#allocation3 + $0x160] sm:$0xff]
    %v2339 = vld [vmem:[#allocation3 + $0x168] sm:$0xff]
    %v2340 = vld [vmem:[#allocation3 + $0x170] sm:$0xff]
    %v2341 = vld [vmem:[#allocation3 + $0x178] sm:$0xff]
    %v2342 = vld [vmem:[#allocation3 + $0x180] sm:$0xff]
    %v2343 = vld [vmem:[#allocation3 + $0x188] sm:$0xff]
    %v2344 = vld [vmem:[#allocation3 + $0x190] sm:$0xff]
    %v2345 = vld [vmem:[#allocation3 + $0x198] sm:$0xff]
    %v2346 = vld [vmem:[#allocation3 + $0x1a0] sm:$0xff]
    %v2347 = vld [vmem:[#allocation3 + $0x1a8] sm:$0xff]
    %v2348 = vld [vmem:[#allocation3 + $0x1b0] sm:$0xff]
    %v2349 = vld [vmem:[#allocation3 + $0x1b8] sm:$0xff]
    %v2350 = vld [vmem:[#allocation3 + $0x1c0] sm:$0xff]
    %v2351 = vld [vmem:[#allocation3 + $0x1c8] sm:$0xff]
    %v2352 = vld [vmem:[#allocation3 + $0x1d0] sm:$0xff]
    %v2353 = vld [vmem:[#allocation3 + $0x1d8] sm:$0xff]
    %v2354 = vld [vmem:[#allocation3 + $0x1e0] sm:$0xff]
    %v2355 = vld [vmem:[#allocation3 + $0x1e8] sm:$0xff]
    %v2356 = vld [vmem:[#allocation3 + $0x1f0] sm:$0xff]
    %v2357 = vld [vmem:[#allocation3 + $0x1f8] sm:$0xff]
    %v2358 = vld [vmem:[#allocation3 + $0x200] sm:$0xff]
    %v2359 = vld [vmem:[#allocation3 + $0x208] sm:$0xff]
    %v2360 = vld [vmem:[#allocation3 + $0x210] sm:$0xff]
    %v2361 = vld [vmem:[#allocation3 + $0x218] sm:$0xff]
    %v2362 = vld [vmem:[#allocation3 + $0x220] sm:$0xff]
    %v2363 = vld [vmem:[#allocation3 + $0x228] sm:$0xff]
    %v2364 = vld [vmem:[#allocation3 + $0x230] sm:$0xff]
    %v2365 = vld [vmem:[#allocation3 + $0x238] sm:$0xff]
    %v2366 = vld [vmem:[#allocation3 + $0x240] sm:$0xff]
    %v2367 = vld [vmem:[#allocation3 + $0x248] sm:$0xff]
    %v2368 = vld [vmem:[#allocation3 + $0x250] sm:$0xff]
    %v2369 = vld [vmem:[#allocation3 + $0x258] sm:$0xff]
    %v2370 = vld [vmem:[#allocation3 + $0x260] sm:$0xff]
    %v2371 = vld [vmem:[#allocation3 + $0x268] sm:$0xff]
    %v2372 = vld [vmem:[#allocation3 + $0x270] sm:$0xff]
    %v2373 = vld [vmem:[#allocation3 + $0x278] sm:$0xff]
    %v2374 = vld [vmem:[#allocation3 + $0x280] sm:$0xff]
    %v2375 = vld [vmem:[#allocation3 + $0x288] sm:$0xff]
    %v2376 = vld [vmem:[#allocation3 + $0x290] sm:$0xff]
    %v2377 = vld [vmem:[#allocation3 + $0x298] sm:$0xff]
    %v2378 = vld [vmem:[#allocation3 + $0x2a0] sm:$0xff]
    %v2379 = vld [vmem:[#allocation3 + $0x2a8] sm:$0xff]
    %v2380 = vld [vmem:[#allocation3 + $0x2b0] sm:$0xff]
    %v2381 = vld [vmem:[#allocation3 + $0x2b8] sm:$0xff]
    %v2382 = vld [vmem:[#allocation3 + $0x2c0] sm:$0xff]
    %v2383 = vld [vmem:[#allocation3 + $0x2c8] sm:$0xff]
    %v2384 = vld [vmem:[#allocation3 + $0x2d0] sm:$0xff]
    %v2385 = vld [vmem:[#allocation3 + $0x2d8] sm:$0xff]
    %v2386 = vld [vmem:[#allocation3 + $0x2e0] sm:$0xff]
    %v2387 = vld [vmem:[#allocation3 + $0x2e8] sm:$0xff]
    %v2388 = vld [vmem:[#allocation3 + $0x2f0] sm:$0xff]
    %v2389 = vld [vmem:[#allocation3 + $0x2f8] sm:$0xff]
    %v2390 = vld [vmem:[#allocation3 + $0x300] sm:$0xff]
    %v2391 = vld [vmem:[#allocation3 + $0x308] sm:$0xff]
    %v2392 = vld [vmem:[#allocation3 + $0x310] sm:$0xff]
    %v2393 = vld [vmem:[#allocation3 + $0x318] sm:$0xff]
    %v2394 = vld [vmem:[#allocation3 + $0x320] sm:$0xff]
    %v2395 = vld [vmem:[#allocation3 + $0x328] sm:$0xff]
    %v2396 = vld [vmem:[#allocation3 + $0x330] sm:$0xff]
    %v2397 = vld [vmem:[#allocation3 + $0x338] sm:$0xff]
    %v2398 = vld [vmem:[#allocation3 + $0x340] sm:$0xff]
    %v2399 = vld [vmem:[#allocation3 + $0x348] sm:$0xff]
    %v2400 = vld [vmem:[#allocation3 + $0x350] sm:$0xff]
    %v2401 = vld [vmem:[#allocation3 + $0x358] sm:$0xff]
    %v2402 = vld [vmem:[#allocation3 + $0x360] sm:$0xff]
    %v2403 = vld [vmem:[#allocation3 + $0x368] sm:$0xff]
    %v2404 = vld [vmem:[#allocation3 + $0x370] sm:$0xff]
    %v2405 = vld [vmem:[#allocation3 + $0x378] sm:$0xff]
    %v2406 = vld [vmem:[#allocation3 + $0x380] sm:$0xff]
    %v2407 = vld [vmem:[#allocation3 + $0x388] sm:$0xff]
    %v2408 = vld [vmem:[#allocation3 + $0x390] sm:$0xff]
    %v2409 = vld [vmem:[#allocation3 + $0x398] sm:$0xff]
    %v2410 = vld [vmem:[#allocation3 + $0x3a0] sm:$0xff]
    %v2411 = vld [vmem:[#allocation3 + $0x3a8] sm:$0xff]
    %v2412 = vld [vmem:[#allocation3 + $0x3b0] sm:$0xff]
    %v2413 = vld [vmem:[#allocation3 + $0x3b8] sm:$0xff]
    %v2414 = vld [vmem:[#allocation3 + $0x3c0] sm:$0xff]
    %v2415 = vld [vmem:[#allocation3 + $0x3c8] sm:$0xff]
    %v2416 = vld [vmem:[#allocation3 + $0x3d0] sm:$0xff]
    %v2417 = vld [vmem:[#allocation3 + $0x3d8] sm:$0xff]
    %v2418 = vld [vmem:[#allocation3 + $0x3e0] sm:$0xff]
    %v2419 = vld [vmem:[#allocation3 + $0x3e8] sm:$0xff]
    %v2420 = vld [vmem:[#allocation3 + $0x3f0] sm:$0xff]
    %v2421 = vld [vmem:[#allocation3 + $0x3f8] sm:$0xff]
    %v2422 = vld [vmem:[#allocation3 + $0x400] sm:$0xff]
    %v2423 = vld [vmem:[#allocation3 + $0x408] sm:$0xff]
    %v2424 = vld [vmem:[#allocation3 + $0x410] sm:$0xff]
    %v2425 = vld [vmem:[#allocation3 + $0x418] sm:$0xff]
    %v2426 = vld [vmem:[#allocation3 + $0x420] sm:$0xff]
    %v2427 = vld [vmem:[#allocation3 + $0x428] sm:$0xff]
    %v2428 = vld [vmem:[#allocation3 + $0x430] sm:$0xff]
    %v2429 = vld [vmem:[#allocation3 + $0x438] sm:$0xff]
    %v2430 = vld [vmem:[#allocation3 + $0x440] sm:$0xff]
    %v2431 = vld [vmem:[#allocation3 + $0x448] sm:$0xff]
    %v2432 = vld [vmem:[#allocation3 + $0x450] sm:$0xff]
    %v2433 = vld [vmem:[#allocation3 + $0x458] sm:$0xff]
    %v2434 = vld [vmem:[#allocation3 + $0x460] sm:$0xff]
    %v2435 = vld [vmem:[#allocation3 + $0x468] sm:$0xff]
    %v2436 = vld [vmem:[#allocation3 + $0x470] sm:$0xff]
    %v2437 = vld [vmem:[#allocation3 + $0x478] sm:$0xff]
    %v2438 = vld [vmem:[#allocation3 + $0x480] sm:$0xff]
    %v2439 = vld [vmem:[#allocation3 + $0x488] sm:$0xff]
    %v2440 = vld [vmem:[#allocation3 + $0x490] sm:$0xff]
    %v2441 = vld [vmem:[#allocation3 + $0x498] sm:$0xff]
    %v2442 = vld [vmem:[#allocation3 + $0x4a0] sm:$0xff]
    %v2443 = vld [vmem:[#allocation3 + $0x4a8] sm:$0xff]
    %v2444 = vld [vmem:[#allocation3 + $0x4b0] sm:$0xff]
    %v2445 = vld [vmem:[#allocation3 + $0x4b8] sm:$0xff]
    %v2446 = vld [vmem:[#allocation3 + $0x4c0] sm:$0xff]
    %v2447 = vld [vmem:[#allocation3 + $0x4c8] sm:$0xff]
    %v2448 = vld [vmem:[#allocation3 + $0x4d0] sm:$0xff]
    %v2449 = vld [vmem:[#allocation3 + $0x4d8] sm:$0xff]
    %v2450 = vld [vmem:[#allocation3 + $0x4e0] sm:$0xff]
    %v2451 = vld [vmem:[#allocation3 + $0x4e8] sm:$0xff]
    %v2452 = vld [vmem:[#allocation3 + $0x4f0] sm:$0xff]
    %v2453 = vld [vmem:[#allocation3 + $0x4f8] sm:$0xff]
    %v2454 = vld [vmem:[#allocation3 + $0x500] sm:$0xff]
    %v2455 = vld [vmem:[#allocation3 + $0x508] sm:$0xff]
    %v2456 = vld [vmem:[#allocation3 + $0x510] sm:$0xff]
    %v2457 = vld [vmem:[#allocation3 + $0x518] sm:$0xff]
    %v2458 = vld [vmem:[#allocation3 + $0x520] sm:$0xff]
    %v2459 = vld [vmem:[#allocation3 + $0x528] sm:$0xff]
    %v2460 = vld [vmem:[#allocation3 + $0x530] sm:$0xff]
    %v2461 = vld [vmem:[#allocation3 + $0x538] sm:$0xff]
    %v2462 = vld [vmem:[#allocation3 + $0x540] sm:$0xff]
    %v2463 = vld [vmem:[#allocation3 + $0x548] sm:$0xff]
    %v2464 = vld [vmem:[#allocation3 + $0x550] sm:$0xff]
    %v2465 = vld [vmem:[#allocation3 + $0x558] sm:$0xff]
    %v2466 = vld [vmem:[#allocation3 + $0x560] sm:$0xff]
    %v2467 = vld [vmem:[#allocation3 + $0x568] sm:$0xff]
    %v2468 = vld [vmem:[#allocation3 + $0x570] sm:$0xff]
    %v2469 = vld [vmem:[#allocation3 + $0x578] sm:$0xff]
    %v2470 = vld [vmem:[#allocation3 + $0x580] sm:$0xff]
    %v2471 = vld [vmem:[#allocation3 + $0x588] sm:$0xff]
    %v2472 = vld [vmem:[#allocation3 + $0x590] sm:$0xff]
    %v2473 = vld [vmem:[#allocation3 + $0x598] sm:$0xff]
    %v2474 = vld [vmem:[#allocation3 + $0x5a0] sm:$0xff]
    %v2475 = vld [vmem:[#allocation3 + $0x5a8] sm:$0xff]
    %v2476 = vld [vmem:[#allocation3 + $0x5b0] sm:$0xff]
    %v2477 = vld [vmem:[#allocation3 + $0x5b8] sm:$0xff]
    %v2478 = vld [vmem:[#allocation3 + $0x5c0] sm:$0xff]
    %v2479 = vld [vmem:[#allocation3 + $0x5c8] sm:$0xff]
    %v2480 = vld [vmem:[#allocation3 + $0x5d0] sm:$0xff]
    %v2481 = vld [vmem:[#allocation3 + $0x5d8] sm:$0xff]
    %v2482 = vld [vmem:[#allocation3 + $0x5e0] sm:$0xff]
    %v2483 = vld [vmem:[#allocation3 + $0x5e8] sm:$0xff]
    %v2484 = vld [vmem:[#allocation3 + $0x5f0] sm:$0xff]
    %v2485 = vld [vmem:[#allocation3 + $0x5f8] sm:$0xff]
    %v2486 = vadd.f32 %v2294, %v2102
    %v2487 = vadd.f32 %v2295, %v2103
    %v2488 = vadd.f32 %v2296, %v2104
    %v2489 = vadd.f32 %v2297, %v2105
    %v2490 = vadd.f32 %v2298, %v2106
    %v2491 = vadd.f32 %v2299, %v2107
    %v2492 = vadd.f32 %v2300, %v2108
    %v2493 = vadd.f32 %v2301, %v2109
    %v2494 = vadd.f32 %v2302, %v2110
    %v2495 = vadd.f32 %v2303, %v2111
    %v2496 = vadd.f32 %v2304, %v2112
    %v2497 = vadd.f32 %v2305, %v2113
    %v2498 = vadd.f32 %v2306, %v2114
    %v2499 = vadd.f32 %v2307, %v2115
    %v2500 = vadd.f32 %v2308, %v2116
    %v2501 = vadd.f32 %v2309, %v2117
    %v2502 = vadd.f32 %v2310, %v2118
    %v2503 = vadd.f32 %v2311, %v2119
    %v2504 = vadd.f32 %v2312, %v2120
    %v2505 = vadd.f32 %v2313, %v2121
    %v2506 = vadd.f32 %v2314, %v2122
    %v2507 = vadd.f32 %v2315, %v2123
    %v2508 = vadd.f32 %v2316, %v2124
    %v2509 = vadd.f32 %v2317, %v2125
    %v2510 = vadd.f32 %v2318, %v2126
    %v2511 = vadd.f32 %v2319, %v2127
    %v2512 = vadd.f32 %v2320, %v2128
    %v2513 = vadd.f32 %v2321, %v2129
    %v2514 = vadd.f32 %v2322, %v2130
    %v2515 = vadd.f32 %v2323, %v2131
    %v2516 = vadd.f32 %v2324, %v2132
    %v2517 = vadd.f32 %v2325, %v2133
    %v2518 = vadd.f32 %v2326, %v2134
    %v2519 = vadd.f32 %v2327, %v2135
    %v2520 = vadd.f32 %v2328, %v2136
    %v2521 = vadd.f32 %v2329, %v2137
    %v2522 = vadd.f32 %v2330, %v2138
    %v2523 = vadd.f32 %v2331, %v2139
    %v2524 = vadd.f32 %v2332, %v2140
    %v2525 = vadd.f32 %v2333, %v2141
    %v2526 = vadd.f32 %v2334, %v2142
    %v2527 = vadd.f32 %v2335, %v2143
    %v2528 = vadd.f32 %v2336, %v2144
    %v2529 = vadd.f32 %v2337, %v2145
    %v2530 = vadd.f32 %v2338, %v2146
    %v2531 = vadd.f32 %v2339, %v2147
    %v2532 = vadd.f32 %v2340, %v2148
    %v2533 = vadd.f32 %v2341, %v2149
    %v2534 = vadd.f32 %v2342, %v2150
    %v2535 = vadd.f32 %v2343, %v2151
    %v2536 = vadd.f32 %v2344, %v2152
    %v2537 = vadd.f32 %v2345, %v2153
    %v2538 = vadd.f32 %v2346, %v2154
    %v2539 = vadd.f32 %v2347, %v2155
    %v2540 = vadd.f32 %v2348, %v2156
    %v2541 = vadd.f32 %v2349, %v2157
    %v2542 = vadd.f32 %v2350, %v2158
    %v2543 = vadd.f32 %v2351, %v2159
    %v2544 = vadd.f32 %v2352, %v2160
    %v2545 = vadd.f32 %v2353, %v2161
    %v2546 = vadd.f32 %v2354, %v2162
    %v2547 = vadd.f32 %v2355, %v2163
    %v2548 = vadd.f32 %v2356, %v2164
    %v2549 = vadd.f32 %v2357, %v2165
    %v2550 = vadd.f32 %v2358, %v2166
    %v2551 = vadd.f32 %v2359, %v2167
    %v2552 = vadd.f32 %v2360, %v2168
    %v2553 = vadd.f32 %v2361, %v2169
    %v2554 = vadd.f32 %v2362, %v2170
    %v2555 = vadd.f32 %v2363, %v2171
    %v2556 = vadd.f32 %v2364, %v2172
    %v2557 = vadd.f32 %v2365, %v2173
    %v2558 = vadd.f32 %v2366, %v2174
    %v2559 = vadd.f32 %v2367, %v2175
    %v2560 = vadd.f32 %v2368, %v2176
    %v2561 = vadd.f32 %v2369, %v2177
    %v2562 = vadd.f32 %v2370, %v2178
    %v2563 = vadd.f32 %v2371, %v2179
    %v2564 = vadd.f32 %v2372, %v2180
    %v2565 = vadd.f32 %v2373, %v2181
    %v2566 = vadd.f32 %v2374, %v2182
    %v2567 = vadd.f32 %v2375, %v2183
    %v2568 = vadd.f32 %v2376, %v2184
    %v2569 = vadd.f32 %v2377, %v2185
    %v2570 = vadd.f32 %v2378, %v2186
    %v2571 = vadd.f32 %v2379, %v2187
    %v2572 = vadd.f32 %v2380, %v2188
    %v2573 = vadd.f32 %v2381, %v2189
    %v2574 = vadd.f32 %v2382, %v2190
    %v2575 = vadd.f32 %v2383, %v2191
    %v2576 = vadd.f32 %v2384, %v2192
    %v2577 = vadd.f32 %v2385, %v2193
    %v2578 = vadd.f32 %v2386, %v2194
    %v2579 = vadd.f32 %v2387, %v2195
    %v2580 = vadd.f32 %v2388, %v2196
    %v2581 = vadd.f32 %v2389, %v2197
    %v2582 = vadd.f32 %v2390, %v2198
    %v2583 = vadd.f32 %v2391, %v2199
    %v2584 = vadd.f32 %v2392, %v2200
    %v2585 = vadd.f32 %v2393, %v2201
    %v2586 = vadd.f32 %v2394, %v2202
    %v2587 = vadd.f32 %v2395, %v2203
    %v2588 = vadd.f32 %v2396, %v2204
    %v2589 = vadd.f32 %v2397, %v2205
    %v2590 = vadd.f32 %v2398, %v2206
    %v2591 = vadd.f32 %v2399, %v2207
    %v2592 = vadd.f32 %v2400, %v2208
    %v2593 = vadd.f32 %v2401, %v2209
    %v2594 = vadd.f32 %v2402, %v2210
    %v2595 = vadd.f32 %v2403, %v2211
    %v2596 = vadd.f32 %v2404, %v2212
    %v2597 = vadd.f32 %v2405, %v2213
    %v2598 = vadd.f32 %v2406, %v2214
    %v2599 = vadd.f32 %v2407, %v2215
    %v2600 = vadd.f32 %v2408, %v2216
    %v2601 = vadd.f32 %v2409, %v2217
    %v2602 = vadd.f32 %v2410, %v2218
    %v2603 = vadd.f32 %v2411, %v2219
    %v2604 = vadd.f32 %v2412, %v2220
    %v2605 = vadd.f32 %v2413, %v2221
    %v2606 = vadd.f32 %v2414, %v2222
    %v2607 = vadd.f32 %v2415, %v2223
    %v2608 = vadd.f32 %v2416, %v2224
    %v2609 = vadd.f32 %v2417, %v2225
    %v2610 = vadd.f32 %v2418, %v2226
    %v2611 = vadd.f32 %v2419, %v2227
    %v2612 = vadd.f32 %v2420, %v2228
    %v2613 = vadd.f32 %v2421, %v2229
    %v2614 = vadd.f32 %v2422, %v2230
    %v2615 = vadd.f32 %v2423, %v2231
    %v2616 = vadd.f32 %v2424, %v2232
    %v2617 = vadd.f32 %v2425, %v2233
    %v2618 = vadd.f32 %v2426, %v2234
    %v2619 = vadd.f32 %v2427, %v2235
    %v2620 = vadd.f32 %v2428, %v2236
    %v2621 = vadd.f32 %v2429, %v2237
    %v2622 = vadd.f32 %v2430, %v2238
    %v2623 = vadd.f32 %v2431, %v2239
    %v2624 = vadd.f32 %v2432, %v2240
    %v2625 = vadd.f32 %v2433, %v2241
    %v2626 = vadd.f32 %v2434, %v2242
    %v2627 = vadd.f32 %v2435, %v2243
    %v2628 = vadd.f32 %v2436, %v2244
    %v2629 = vadd.f32 %v2437, %v2245
    %v2630 = vadd.f32 %v2438, %v2246
    %v2631 = vadd.f32 %v2439, %v2247
    %v2632 = vadd.f32 %v2440, %v2248
    %v2633 = vadd.f32 %v2441, %v2249
    %v2634 = vadd.f32 %v2442, %v2250
    %v2635 = vadd.f32 %v2443, %v2251
    %v2636 = vadd.f32 %v2444, %v2252
    %v2637 = vadd.f32 %v2445, %v2253
    %v2638 = vadd.f32 %v2446, %v2254
    %v2639 = vadd.f32 %v2447, %v2255
    %v2640 = vadd.f32 %v2448, %v2256
    %v2641 = vadd.f32 %v2449, %v2257
    %v2642 = vadd.f32 %v2450, %v2258
    %v2643 = vadd.f32 %v2451, %v2259
    %v2644 = vadd.f32 %v2452, %v2260
    %v2645 = vadd.f32 %v2453, %v2261
    %v2646 = vadd.f32 %v2454, %v2262
    %v2647 = vadd.f32 %v2455, %v2263
    %v2648 = vadd.f32 %v2456, %v2264
    %v2649 = vadd.f32 %v2457, %v2265
    %v2650 = vadd.f32 %v2458, %v2266
    %v2651 = vadd.f32 %v2459, %v2267
    %v2652 = vadd.f32 %v2460, %v2268
    %v2653 = vadd.f32 %v2461, %v2269
    %v2654 = vadd.f32 %v2462, %v2270
    %v2655 = vadd.f32 %v2463, %v2271
    %v2656 = vadd.f32 %v2464, %v2272
    %v2657 = vadd.f32 %v2465, %v2273
    %v2658 = vadd.f32 %v2466, %v2274
    %v2659 = vadd.f32 %v2467, %v2275
    %v2660 = vadd.f32 %v2468, %v2276
    %v2661 = vadd.f32 %v2469, %v2277
    %v2662 = vadd.f32 %v2470, %v2278
    %v2663 = vadd.f32 %v2471, %v2279
    %v2664 = vadd.f32 %v2472, %v2280
    %v2665 = vadd.f32 %v2473, %v2281
    %v2666 = vadd.f32 %v2474, %v2282
    %v2667 = vadd.f32 %v2475, %v2283
    %v2668 = vadd.f32 %v2476, %v2284
    %v2669 = vadd.f32 %v2477, %v2285
    %v2670 = vadd.f32 %v2478, %v2286
    %v2671 = vadd.f32 %v2479, %v2287
    %v2672 = vadd.f32 %v2480, %v2288
    %v2673 = vadd.f32 %v2481, %v2289
    %v2674 = vadd.f32 %v2482, %v2290
    %v2675 = vadd.f32 %v2483, %v2291
    %v2676 = vadd.f32 %v2484, %v2292
    %v2677 = vadd.f32 %v2485, %v2293
    %2678 = vst [vmem:[#allocation3] sm:$0xff] %v2486
    %2679 = vst [vmem:[#allocation3 + $0x8] sm:$0xff] %v2487
    %2680 = vst [vmem:[#allocation3 + $0x10] sm:$0xff] %v2488
    %2681 = vst [vmem:[#allocation3 + $0x18] sm:$0xff] %v2489
    %2682 = vst [vmem:[#allocation3 + $0x20] sm:$0xff] %v2490
    %2683 = vst [vmem:[#allocation3 + $0x28] sm:$0xff] %v2491
    %2684 = vst [vmem:[#allocation3 + $0x30] sm:$0xff] %v2492
    %2685 = vst [vmem:[#allocation3 + $0x38] sm:$0xff] %v2493
    %2686 = vst [vmem:[#allocation3 + $0x40] sm:$0xff] %v2494
    %2687 = vst [vmem:[#allocation3 + $0x48] sm:$0xff] %v2495
    %2688 = vst [vmem:[#allocation3 + $0x50] sm:$0xff] %v2496
    %2689 = vst [vmem:[#allocation3 + $0x58] sm:$0xff] %v2497
    %2690 = vst [vmem:[#allocation3 + $0x60] sm:$0xff] %v2498
    %2691 = vst [vmem:[#allocation3 + $0x68] sm:$0xff] %v2499
    %2692 = vst [vmem:[#allocation3 + $0x70] sm:$0xff] %v2500
    %2693 = vst [vmem:[#allocation3 + $0x78] sm:$0xff] %v2501
    %2694 = vst [vmem:[#allocation3 + $0x80] sm:$0xff] %v2502
    %2695 = vst [vmem:[#allocation3 + $0x88] sm:$0xff] %v2503
    %2696 = vst [vmem:[#allocation3 + $0x90] sm:$0xff] %v2504
    %2697 = vst [vmem:[#allocation3 + $0x98] sm:$0xff] %v2505
    %2698 = vst [vmem:[#allocation3 + $0xa0] sm:$0xff] %v2506
    %2699 = vst [vmem:[#allocation3 + $0xa8] sm:$0xff] %v2507
    %2700 = vst [vmem:[#allocation3 + $0xb0] sm:$0xff] %v2508
    %2701 = vst [vmem:[#allocation3 + $0xb8] sm:$0xff] %v2509
    %2702 = vst [vmem:[#allocation3 + $0xc0] sm:$0xff] %v2510
    %2703 = vst [vmem:[#allocation3 + $0xc8] sm:$0xff] %v2511
    %2704 = vst [vmem:[#allocation3 + $0xd0] sm:$0xff] %v2512
    %2705 = vst [vmem:[#allocation3 + $0xd8] sm:$0xff] %v2513
    %2706 = vst [vmem:[#allocation3 + $0xe0] sm:$0xff] %v2514
    %2707 = vst [vmem:[#allocation3 + $0xe8] sm:$0xff] %v2515
    %2708 = vst [vmem:[#allocation3 + $0xf0] sm:$0xff] %v2516
    %2709 = vst [vmem:[#allocation3 + $0xf8] sm:$0xff] %v2517
    %2710 = vst [vmem:[#allocation3 + $0x100] sm:$0xff] %v2518
    %2711 = vst [vmem:[#allocation3 + $0x108] sm:$0xff] %v2519
    %2712 = vst [vmem:[#allocation3 + $0x110] sm:$0xff] %v2520
    %2713 = vst [vmem:[#allocation3 + $0x118] sm:$0xff] %v2521
    %2714 = vst [vmem:[#allocation3 + $0x120] sm:$0xff] %v2522
    %2715 = vst [vmem:[#allocation3 + $0x128] sm:$0xff] %v2523
    %2716 = vst [vmem:[#allocation3 + $0x130] sm:$0xff] %v2524
    %2717 = vst [vmem:[#allocation3 + $0x138] sm:$0xff] %v2525
    %2718 = vst [vmem:[#allocation3 + $0x140] sm:$0xff] %v2526
    %2719 = vst [vmem:[#allocation3 + $0x148] sm:$0xff] %v2527
    %2720 = vst [vmem:[#allocation3 + $0x150] sm:$0xff] %v2528
    %2721 = vst [vmem:[#allocation3 + $0x158] sm:$0xff] %v2529
    %2722 = vst [vmem:[#allocation3 + $0x160] sm:$0xff] %v2530
    %2723 = vst [vmem:[#allocation3 + $0x168] sm:$0xff] %v2531
    %2724 = vst [vmem:[#allocation3 + $0x170] sm:$0xff] %v2532
    %2725 = vst [vmem:[#allocation3 + $0x178] sm:$0xff] %v2533
    %2726 = vst [vmem:[#allocation3 + $0x180] sm:$0xff] %v2534
    %2727 = vst [vmem:[#allocation3 + $0x188] sm:$0xff] %v2535
    %2728 = vst [vmem:[#allocation3 + $0x190] sm:$0xff] %v2536
    %2729 = vst [vmem:[#allocation3 + $0x198] sm:$0xff] %v2537
    %2730 = vst [vmem:[#allocation3 + $0x1a0] sm:$0xff] %v2538
    %2731 = vst [vmem:[#allocation3 + $0x1a8] sm:$0xff] %v2539
    %2732 = vst [vmem:[#allocation3 + $0x1b0] sm:$0xff] %v2540
    %2733 = vst [vmem:[#allocation3 + $0x1b8] sm:$0xff] %v2541
    %2734 = vst [vmem:[#allocation3 + $0x1c0] sm:$0xff] %v2542
    %2735 = vst [vmem:[#allocation3 + $0x1c8] sm:$0xff] %v2543
    %2736 = vst [vmem:[#allocation3 + $0x1d0] sm:$0xff] %v2544
    %2737 = vst [vmem:[#allocation3 + $0x1d8] sm:$0xff] %v2545
    %2738 = vst [vmem:[#allocation3 + $0x1e0] sm:$0xff] %v2546
    %2739 = vst [vmem:[#allocation3 + $0x1e8] sm:$0xff] %v2547
    %2740 = vst [vmem:[#allocation3 + $0x1f0] sm:$0xff] %v2548
    %2741 = vst [vmem:[#allocation3 + $0x1f8] sm:$0xff] %v2549
    %2742 = vst [vmem:[#allocation3 + $0x200] sm:$0xff] %v2550
    %2743 = vst [vmem:[#allocation3 + $0x208] sm:$0xff] %v2551
    %2744 = vst [vmem:[#allocation3 + $0x210] sm:$0xff] %v2552
    %2745 = vst [vmem:[#allocation3 + $0x218] sm:$0xff] %v2553
    %2746 = vst [vmem:[#allocation3 + $0x220] sm:$0xff] %v2554
    %2747 = vst [vmem:[#allocation3 + $0x228] sm:$0xff] %v2555
    %2748 = vst [vmem:[#allocation3 + $0x230] sm:$0xff] %v2556
    %2749 = vst [vmem:[#allocation3 + $0x238] sm:$0xff] %v2557
    %2750 = vst [vmem:[#allocation3 + $0x240] sm:$0xff] %v2558
    %2751 = vst [vmem:[#allocation3 + $0x248] sm:$0xff] %v2559
    %2752 = vst [vmem:[#allocation3 + $0x250] sm:$0xff] %v2560
    %2753 = vst [vmem:[#allocation3 + $0x258] sm:$0xff] %v2561
    %2754 = vst [vmem:[#allocation3 + $0x260] sm:$0xff] %v2562
    %2755 = vst [vmem:[#allocation3 + $0x268] sm:$0xff] %v2563
    %2756 = vst [vmem:[#allocation3 + $0x270] sm:$0xff] %v2564
    %2757 = vst [vmem:[#allocation3 + $0x278] sm:$0xff] %v2565
    %2758 = vst [vmem:[#allocation3 + $0x280] sm:$0xff] %v2566
    %2759 = vst [vmem:[#allocation3 + $0x288] sm:$0xff] %v2567
    %2760 = vst [vmem:[#allocation3 + $0x290] sm:$0xff] %v2568
    %2761 = vst [vmem:[#allocation3 + $0x298] sm:$0xff] %v2569
    %2762 = vst [vmem:[#allocation3 + $0x2a0] sm:$0xff] %v2570
    %2763 = vst [vmem:[#allocation3 + $0x2a8] sm:$0xff] %v2571
    %2764 = vst [vmem:[#allocation3 + $0x2b0] sm:$0xff] %v2572
    %2765 = vst [vmem:[#allocation3 + $0x2b8] sm:$0xff] %v2573
    %2766 = vst [vmem:[#allocation3 + $0x2c0] sm:$0xff] %v2574
    %2767 = vst [vmem:[#allocation3 + $0x2c8] sm:$0xff] %v2575
    %2768 = vst [vmem:[#allocation3 + $0x2d0] sm:$0xff] %v2576
    %2769 = vst [vmem:[#allocation3 + $0x2d8] sm:$0xff] %v2577
    %2770 = vst [vmem:[#allocation3 + $0x2e0] sm:$0xff] %v2578
    %2771 = vst [vmem:[#allocation3 + $0x2e8] sm:$0xff] %v2579
    %2772 = vst [vmem:[#allocation3 + $0x2f0] sm:$0xff] %v2580
    %2773 = vst [vmem:[#allocation3 + $0x2f8] sm:$0xff] %v2581
    %2774 = vst [vmem:[#allocation3 + $0x300] sm:$0xff] %v2582
    %2775 = vst [vmem:[#allocation3 + $0x308] sm:$0xff] %v2583
    %2776 = vst [vmem:[#allocation3 + $0x310] sm:$0xff] %v2584
    %2777 = vst [vmem:[#allocation3 + $0x318] sm:$0xff] %v2585
    %2778 = vst [vmem:[#allocation3 + $0x320] sm:$0xff] %v2586
    %2779 = vst [vmem:[#allocation3 + $0x328] sm:$0xff] %v2587
    %2780 = vst [vmem:[#allocation3 + $0x330] sm:$0xff] %v2588
    %2781 = vst [vmem:[#allocation3 + $0x338] sm:$0xff] %v2589
    %2782 = vst [vmem:[#allocation3 + $0x340] sm:$0xff] %v2590
    %2783 = vst [vmem:[#allocation3 + $0x348] sm:$0xff] %v2591
    %2784 = vst [vmem:[#allocation3 + $0x350] sm:$0xff] %v2592
    %2785 = vst [vmem:[#allocation3 + $0x358] sm:$0xff] %v2593
    %2786 = vst [vmem:[#allocation3 + $0x360] sm:$0xff] %v2594
    %2787 = vst [vmem:[#allocation3 + $0x368] sm:$0xff] %v2595
    %2788 = vst [vmem:[#allocation3 + $0x370] sm:$0xff] %v2596
    %2789 = vst [vmem:[#allocation3 + $0x378] sm:$0xff] %v2597
    %2790 = vst [vmem:[#allocation3 + $0x380] sm:$0xff] %v2598
    %2791 = vst [vmem:[#allocation3 + $0x388] sm:$0xff] %v2599
    %2792 = vst [vmem:[#allocation3 + $0x390] sm:$0xff] %v2600
    %2793 = vst [vmem:[#allocation3 + $0x398] sm:$0xff] %v2601
    %2794 = vst [vmem:[#allocation3 + $0x3a0] sm:$0xff] %v2602
    %2795 = vst [vmem:[#allocation3 + $0x3a8] sm:$0xff] %v2603
    %2796 = vst [vmem:[#allocation3 + $0x3b0] sm:$0xff] %v2604
    %2797 = vst [vmem:[#allocation3 + $0x3b8] sm:$0xff] %v2605
    %2798 = vst [vmem:[#allocation3 + $0x3c0] sm:$0xff] %v2606
    %2799 = vst [vmem:[#allocation3 + $0x3c8] sm:$0xff] %v2607
    %2800 = vst [vmem:[#allocation3 + $0x3d0] sm:$0xff] %v2608
    %2801 = vst [vmem:[#allocation3 + $0x3d8] sm:$0xff] %v2609
    %2802 = vst [vmem:[#allocation3 + $0x3e0] sm:$0xff] %v2610
    %2803 = vst [vmem:[#allocation3 + $0x3e8] sm:$0xff] %v2611
    %2804 = vst [vmem:[#allocation3 + $0x3f0] sm:$0xff] %v2612
    %2805 = vst [vmem:[#allocation3 + $0x3f8] sm:$0xff] %v2613
    %2806 = vst [vmem:[#allocation3 + $0x400] sm:$0xff] %v2614
    %2807 = vst [vmem:[#allocation3 + $0x408] sm:$0xff] %v2615
    %2808 = vst [vmem:[#allocation3 + $0x410] sm:$0xff] %v2616
    %2809 = vst [vmem:[#allocation3 + $0x418] sm:$0xff] %v2617
    %2810 = vst [vmem:[#allocation3 + $0x420] sm:$0xff] %v2618
    %2811 = vst [vmem:[#allocation3 + $0x428] sm:$0xff] %v2619
    %2812 = vst [vmem:[#allocation3 + $0x430] sm:$0xff] %v2620
    %2813 = vst [vmem:[#allocation3 + $0x438] sm:$0xff] %v2621
    %2814 = vst [vmem:[#allocation3 + $0x440] sm:$0xff] %v2622
    %2815 = vst [vmem:[#allocation3 + $0x448] sm:$0xff] %v2623
    %2816 = vst [vmem:[#allocation3 + $0x450] sm:$0xff] %v2624
    %2817 = vst [vmem:[#allocation3 + $0x458] sm:$0xff] %v2625
    %2818 = vst [vmem:[#allocation3 + $0x460] sm:$0xff] %v2626
    %2819 = vst [vmem:[#allocation3 + $0x468] sm:$0xff] %v2627
    %2820 = vst [vmem:[#allocation3 + $0x470] sm:$0xff] %v2628
    %2821 = vst [vmem:[#allocation3 + $0x478] sm:$0xff] %v2629
    %2822 = vst [vmem:[#allocation3 + $0x480] sm:$0xff] %v2630
    %2823 = vst [vmem:[#allocation3 + $0x488] sm:$0xff] %v2631
    %2824 = vst [vmem:[#allocation3 + $0x490] sm:$0xff] %v2632
    %2825 = vst [vmem:[#allocation3 + $0x498] sm:$0xff] %v2633
    %2826 = vst [vmem:[#allocation3 + $0x4a0] sm:$0xff] %v2634
    %2827 = vst [vmem:[#allocation3 + $0x4a8] sm:$0xff] %v2635
    %2828 = vst [vmem:[#allocation3 + $0x4b0] sm:$0xff] %v2636
    %2829 = vst [vmem:[#allocation3 + $0x4b8] sm:$0xff] %v2637
    %2830 = vst [vmem:[#allocation3 + $0x4c0] sm:$0xff] %v2638
    %2831 = vst [vmem:[#allocation3 + $0x4c8] sm:$0xff] %v2639
    %2832 = vst [vmem:[#allocation3 + $0x4d0] sm:$0xff] %v2640
    %2833 = vst [vmem:[#allocation3 + $0x4d8] sm:$0xff] %v2641
    %2834 = vst [vmem:[#allocation3 + $0x4e0] sm:$0xff] %v2642
    %2835 = vst [vmem:[#allocation3 + $0x4e8] sm:$0xff] %v2643
    %2836 = vst [vmem:[#allocation3 + $0x4f0] sm:$0xff] %v2644
    %2837 = vst [vmem:[#allocation3 + $0x4f8] sm:$0xff] %v2645
    %2838 = vst [vmem:[#allocation3 + $0x500] sm:$0xff] %v2646
    %2839 = vst [vmem:[#allocation3 + $0x508] sm:$0xff] %v2647
    %2840 = vst [vmem:[#allocation3 + $0x510] sm:$0xff] %v2648
    %2841 = vst [vmem:[#allocation3 + $0x518] sm:$0xff] %v2649
    %2842 = vst [vmem:[#allocation3 + $0x520] sm:$0xff] %v2650
    %2843 = vst [vmem:[#allocation3 + $0x528] sm:$0xff] %v2651
    %2844 = vst [vmem:[#allocation3 + $0x530] sm:$0xff] %v2652
    %2845 = vst [vmem:[#allocation3 + $0x538] sm:$0xff] %v2653
    %2846 = vst [vmem:[#allocation3 + $0x540] sm:$0xff] %v2654
    %2847 = vst [vmem:[#allocation3 + $0x548] sm:$0xff] %v2655
    %2848 = vst [vmem:[#allocation3 + $0x550] sm:$0xff] %v2656
    %2849 = vst [vmem:[#allocation3 + $0x558] sm:$0xff] %v2657
    %2850 = vst [vmem:[#allocation3 + $0x560] sm:$0xff] %v2658
    %2851 = vst [vmem:[#allocation3 + $0x568] sm:$0xff] %v2659
    %2852 = vst [vmem:[#allocation3 + $0x570] sm:$0xff] %v2660
    %2853 = vst [vmem:[#allocation3 + $0x578] sm:$0xff] %v2661
    %2854 = vst [vmem:[#allocation3 + $0x580] sm:$0xff] %v2662
    %2855 = vst [vmem:[#allocation3 + $0x588] sm:$0xff] %v2663
    %2856 = vst [vmem:[#allocation3 + $0x590] sm:$0xff] %v2664
    %2857 = vst [vmem:[#allocation3 + $0x598] sm:$0xff] %v2665
    %2858 = vst [vmem:[#allocation3 + $0x5a0] sm:$0xff] %v2666
    %2859 = vst [vmem:[#allocation3 + $0x5a8] sm:$0xff] %v2667
    %2860 = vst [vmem:[#allocation3 + $0x5b0] sm:$0xff] %v2668
    %2861 = vst [vmem:[#allocation3 + $0x5b8] sm:$0xff] %v2669
    %2862 = vst [vmem:[#allocation3 + $0x5c0] sm:$0xff] %v2670
    %2863 = vst [vmem:[#allocation3 + $0x5c8] sm:$0xff] %v2671
    %2864 = vst [vmem:[#allocation3 + $0x5d0] sm:$0xff] %v2672
    %2865 = vst [vmem:[#allocation3 + $0x5d8] sm:$0xff] %v2673
    %2866 = vst [vmem:[#allocation3 + $0x5e0] sm:$0xff] %v2674
    %2867 = vst [vmem:[#allocation3 + $0x5e8] sm:$0xff] %v2675
    %2868 = vst [vmem:[#allocation3 + $0x5f0] sm:$0xff] %v2676
    %2869 = vst [vmem:[#allocation3 + $0x5f8] sm:$0xff] %v2677
    %v2870 = vadd.s32 %v1870, %v866
    %v2871 = vadd.s32 %v1871, %v867
    %v2872 = vadd.s32 %v1872, %v868
    %v2873 = vadd.s32 %v1873, %v869
    %v2874 = vlaneseq
    %v2875 = vshrl.u32 %v2874, 7
    %v2876 = vsub.s32 1, %v2875
    %v2877 = vrot.slane %v2870, %v2876
    %v2878 = vlaneseq
    %v2879 = vshrl.u32 %v2878, 7
    %v2880 = vsub.s32 1, %v2879
    %v2881 = vrot.slane %v2871, %v2880
    %v2882 = vlaneseq
    %v2883 = vshrl.u32 %v2882, 7
    %v2884 = vsub.s32 1, %v2883
    %v2885 = vrot.slane %v2872, %v2884
    %v2886 = vlaneseq
    %v2887 = vshrl.u32 %v2886, 7
    %v2888 = vsub.s32 1, %v2887
    %v2889 = vrot.slane %v2873, %v2888
    %vm2890 = vcmp.eq.s32.totalorder %v150, %v2877
    %vm2891 = vcmp.eq.s32.totalorder %v150, %v2881
    %vm2892 = vcmp.eq.s32.totalorder %v150, %v2885
    %vm2893 = vcmp.eq.s32.totalorder %v150, %v2889
    %vm2894 = vcmp.eq.s32.totalorder %v151, %v2877
    %vm2895 = vcmp.eq.s32.totalorder %v151, %v2881
    %vm2896 = vcmp.eq.s32.totalorder %v151, %v2885
    %vm2897 = vcmp.eq.s32.totalorder %v151, %v2889
    %vm2898 = vcmp.eq.s32.totalorder %v152, %v2877
    %vm2899 = vcmp.eq.s32.totalorder %v152, %v2881
    %vm2900 = vcmp.eq.s32.totalorder %v152, %v2885
    %vm2901 = vcmp.eq.s32.totalorder %v152, %v2889
    %vm2902 = vcmp.eq.s32.totalorder %v153, %v2877
    %vm2903 = vcmp.eq.s32.totalorder %v153, %v2881
    %vm2904 = vcmp.eq.s32.totalorder %v153, %v2885
    %vm2905 = vcmp.eq.s32.totalorder %v153, %v2889
    %vm2906 = vcmp.eq.s32.totalorder %v154, %v2877
    %vm2907 = vcmp.eq.s32.totalorder %v154, %v2881
    %vm2908 = vcmp.eq.s32.totalorder %v154, %v2885
    %vm2909 = vcmp.eq.s32.totalorder %v154, %v2889
    %vm2910 = vcmp.eq.s32.totalorder %v155, %v2877
    %vm2911 = vcmp.eq.s32.totalorder %v155, %v2881
    %vm2912 = vcmp.eq.s32.totalorder %v155, %v2885
    %vm2913 = vcmp.eq.s32.totalorder %v155, %v2889
    %vm2914 = vcmp.eq.s32.totalorder %v156, %v2877
    %vm2915 = vcmp.eq.s32.totalorder %v156, %v2881
    %vm2916 = vcmp.eq.s32.totalorder %v156, %v2885
    %vm2917 = vcmp.eq.s32.totalorder %v156, %v2889
    %vm2918 = vcmp.eq.s32.totalorder %v157, %v2877
    %vm2919 = vcmp.eq.s32.totalorder %v157, %v2881
    %vm2920 = vcmp.eq.s32.totalorder %v157, %v2885
    %vm2921 = vcmp.eq.s32.totalorder %v157, %v2889
    %vm2922 = vcmp.eq.s32.totalorder %v158, %v2877
    %vm2923 = vcmp.eq.s32.totalorder %v158, %v2881
    %vm2924 = vcmp.eq.s32.totalorder %v158, %v2885
    %vm2925 = vcmp.eq.s32.totalorder %v158, %v2889
    %vm2926 = vcmp.eq.s32.totalorder %v159, %v2877
    %vm2927 = vcmp.eq.s32.totalorder %v159, %v2881
    %vm2928 = vcmp.eq.s32.totalorder %v159, %v2885
    %vm2929 = vcmp.eq.s32.totalorder %v159, %v2889
    %vm2930 = vcmp.eq.s32.totalorder %v160, %v2877
    %vm2931 = vcmp.eq.s32.totalorder %v160, %v2881
    %vm2932 = vcmp.eq.s32.totalorder %v160, %v2885
    %vm2933 = vcmp.eq.s32.totalorder %v160, %v2889
    %vm2934 = vcmp.eq.s32.totalorder %v161, %v2877
    %vm2935 = vcmp.eq.s32.totalorder %v161, %v2881
    %vm2936 = vcmp.eq.s32.totalorder %v161, %v2885
    %vm2937 = vcmp.eq.s32.totalorder %v161, %v2889
    %vm2938 = vcmp.eq.s32.totalorder %v162, %v2877
    %vm2939 = vcmp.eq.s32.totalorder %v162, %v2881
    %vm2940 = vcmp.eq.s32.totalorder %v162, %v2885
    %vm2941 = vcmp.eq.s32.totalorder %v162, %v2889
    %vm2942 = vcmp.eq.s32.totalorder %v163, %v2877
    %vm2943 = vcmp.eq.s32.totalorder %v163, %v2881
    %vm2944 = vcmp.eq.s32.totalorder %v163, %v2885
    %vm2945 = vcmp.eq.s32.totalorder %v163, %v2889
    %vm2946 = vcmp.eq.s32.totalorder %v164, %v2877
    %vm2947 = vcmp.eq.s32.totalorder %v164, %v2881
    %vm2948 = vcmp.eq.s32.totalorder %v164, %v2885
    %vm2949 = vcmp.eq.s32.totalorder %v164, %v2889
    %vm2950 = vcmp.eq.s32.totalorder %v165, %v2877
    %vm2951 = vcmp.eq.s32.totalorder %v165, %v2881
    %vm2952 = vcmp.eq.s32.totalorder %v165, %v2885
    %vm2953 = vcmp.eq.s32.totalorder %v165, %v2889
    %vm2954 = vcmp.eq.s32.totalorder %v166, %v2877
    %vm2955 = vcmp.eq.s32.totalorder %v166, %v2881
    %vm2956 = vcmp.eq.s32.totalorder %v166, %v2885
    %vm2957 = vcmp.eq.s32.totalorder %v166, %v2889
    %vm2958 = vcmp.eq.s32.totalorder %v167, %v2877
    %vm2959 = vcmp.eq.s32.totalorder %v167, %v2881
    %vm2960 = vcmp.eq.s32.totalorder %v167, %v2885
    %vm2961 = vcmp.eq.s32.totalorder %v167, %v2889
    %vm2962 = vcmp.eq.s32.totalorder %v168, %v2877
    %vm2963 = vcmp.eq.s32.totalorder %v168, %v2881
    %vm2964 = vcmp.eq.s32.totalorder %v168, %v2885
    %vm2965 = vcmp.eq.s32.totalorder %v168, %v2889
    %vm2966 = vcmp.eq.s32.totalorder %v169, %v2877
    %vm2967 = vcmp.eq.s32.totalorder %v169, %v2881
    %vm2968 = vcmp.eq.s32.totalorder %v169, %v2885
    %vm2969 = vcmp.eq.s32.totalorder %v169, %v2889
    %vm2970 = vcmp.eq.s32.totalorder %v170, %v2877
    %vm2971 = vcmp.eq.s32.totalorder %v170, %v2881
    %vm2972 = vcmp.eq.s32.totalorder %v170, %v2885
    %vm2973 = vcmp.eq.s32.totalorder %v170, %v2889
    %vm2974 = vcmp.eq.s32.totalorder %v171, %v2877
    %vm2975 = vcmp.eq.s32.totalorder %v171, %v2881
    %vm2976 = vcmp.eq.s32.totalorder %v171, %v2885
    %vm2977 = vcmp.eq.s32.totalorder %v171, %v2889
    %vm2978 = vcmp.eq.s32.totalorder %v172, %v2877
    %vm2979 = vcmp.eq.s32.totalorder %v172, %v2881
    %vm2980 = vcmp.eq.s32.totalorder %v172, %v2885
    %vm2981 = vcmp.eq.s32.totalorder %v172, %v2889
    %vm2982 = vcmp.eq.s32.totalorder %v173, %v2877
    %vm2983 = vcmp.eq.s32.totalorder %v173, %v2881
    %vm2984 = vcmp.eq.s32.totalorder %v173, %v2885
    %vm2985 = vcmp.eq.s32.totalorder %v173, %v2889
    %vm2986 = vcmp.eq.s32.totalorder %v174, %v2877
    %vm2987 = vcmp.eq.s32.totalorder %v174, %v2881
    %vm2988 = vcmp.eq.s32.totalorder %v174, %v2885
    %vm2989 = vcmp.eq.s32.totalorder %v174, %v2889
    %vm2990 = vcmp.eq.s32.totalorder %v175, %v2877
    %vm2991 = vcmp.eq.s32.totalorder %v175, %v2881
    %vm2992 = vcmp.eq.s32.totalorder %v175, %v2885
    %vm2993 = vcmp.eq.s32.totalorder %v175, %v2889
    %vm2994 = vcmp.eq.s32.totalorder %v176, %v2877
    %vm2995 = vcmp.eq.s32.totalorder %v176, %v2881
    %vm2996 = vcmp.eq.s32.totalorder %v176, %v2885
    %vm2997 = vcmp.eq.s32.totalorder %v176, %v2889
    %vm2998 = vcmp.eq.s32.totalorder %v177, %v2877
    %vm2999 = vcmp.eq.s32.totalorder %v177, %v2881
    %vm3000 = vcmp.eq.s32.totalorder %v177, %v2885
    %vm3001 = vcmp.eq.s32.totalorder %v177, %v2889
    %vm3002 = vcmp.eq.s32.totalorder %v178, %v2877
    %vm3003 = vcmp.eq.s32.totalorder %v178, %v2881
    %vm3004 = vcmp.eq.s32.totalorder %v178, %v2885
    %vm3005 = vcmp.eq.s32.totalorder %v178, %v2889
    %vm3006 = vcmp.eq.s32.totalorder %v179, %v2877
    %vm3007 = vcmp.eq.s32.totalorder %v179, %v2881
    %vm3008 = vcmp.eq.s32.totalorder %v179, %v2885
    %vm3009 = vcmp.eq.s32.totalorder %v179, %v2889
    %vm3010 = vcmp.eq.s32.totalorder %v180, %v2877
    %vm3011 = vcmp.eq.s32.totalorder %v180, %v2881
    %vm3012 = vcmp.eq.s32.totalorder %v180, %v2885
    %vm3013 = vcmp.eq.s32.totalorder %v180, %v2889
    %vm3014 = vcmp.eq.s32.totalorder %v181, %v2877
    %vm3015 = vcmp.eq.s32.totalorder %v181, %v2881
    %vm3016 = vcmp.eq.s32.totalorder %v181, %v2885
    %vm3017 = vcmp.eq.s32.totalorder %v181, %v2889
    %vm3018 = vcmp.eq.s32.totalorder %v182, %v2877
    %vm3019 = vcmp.eq.s32.totalorder %v182, %v2881
    %vm3020 = vcmp.eq.s32.totalorder %v182, %v2885
    %vm3021 = vcmp.eq.s32.totalorder %v182, %v2889
    %vm3022 = vcmp.eq.s32.totalorder %v183, %v2877
    %vm3023 = vcmp.eq.s32.totalorder %v183, %v2881
    %vm3024 = vcmp.eq.s32.totalorder %v183, %v2885
    %vm3025 = vcmp.eq.s32.totalorder %v183, %v2889
    %vm3026 = vcmp.eq.s32.totalorder %v184, %v2877
    %vm3027 = vcmp.eq.s32.totalorder %v184, %v2881
    %vm3028 = vcmp.eq.s32.totalorder %v184, %v2885
    %vm3029 = vcmp.eq.s32.totalorder %v184, %v2889
    %vm3030 = vcmp.eq.s32.totalorder %v185, %v2877
    %vm3031 = vcmp.eq.s32.totalorder %v185, %v2881
    %vm3032 = vcmp.eq.s32.totalorder %v185, %v2885
    %vm3033 = vcmp.eq.s32.totalorder %v185, %v2889
    %vm3034 = vcmp.eq.s32.totalorder %v186, %v2877
    %vm3035 = vcmp.eq.s32.totalorder %v186, %v2881
    %vm3036 = vcmp.eq.s32.totalorder %v186, %v2885
    %vm3037 = vcmp.eq.s32.totalorder %v186, %v2889
    %vm3038 = vcmp.eq.s32.totalorder %v187, %v2877
    %vm3039 = vcmp.eq.s32.totalorder %v187, %v2881
    %vm3040 = vcmp.eq.s32.totalorder %v187, %v2885
    %vm3041 = vcmp.eq.s32.totalorder %v187, %v2889
    %vm3042 = vcmp.eq.s32.totalorder %v188, %v2877
    %vm3043 = vcmp.eq.s32.totalorder %v188, %v2881
    %vm3044 = vcmp.eq.s32.totalorder %v188, %v2885
    %vm3045 = vcmp.eq.s32.totalorder %v188, %v2889
    %vm3046 = vcmp.eq.s32.totalorder %v189, %v2877
    %vm3047 = vcmp.eq.s32.totalorder %v189, %v2881
    %vm3048 = vcmp.eq.s32.totalorder %v189, %v2885
    %vm3049 = vcmp.eq.s32.totalorder %v189, %v2889
    %vm3050 = vcmp.eq.s32.totalorder %v190, %v2877
    %vm3051 = vcmp.eq.s32.totalorder %v190, %v2881
    %vm3052 = vcmp.eq.s32.totalorder %v190, %v2885
    %vm3053 = vcmp.eq.s32.totalorder %v190, %v2889
    %vm3054 = vcmp.eq.s32.totalorder %v191, %v2877
    %vm3055 = vcmp.eq.s32.totalorder %v191, %v2881
    %vm3056 = vcmp.eq.s32.totalorder %v191, %v2885
    %vm3057 = vcmp.eq.s32.totalorder %v191, %v2889
    %vm3058 = vcmp.eq.s32.totalorder %v192, %v2877
    %vm3059 = vcmp.eq.s32.totalorder %v192, %v2881
    %vm3060 = vcmp.eq.s32.totalorder %v192, %v2885
    %vm3061 = vcmp.eq.s32.totalorder %v192, %v2889
    %vm3062 = vcmp.eq.s32.totalorder %v193, %v2877
    %vm3063 = vcmp.eq.s32.totalorder %v193, %v2881
    %vm3064 = vcmp.eq.s32.totalorder %v193, %v2885
    %vm3065 = vcmp.eq.s32.totalorder %v193, %v2889
    %vm3066 = vcmp.eq.s32.totalorder %v194, %v2877
    %vm3067 = vcmp.eq.s32.totalorder %v194, %v2881
    %vm3068 = vcmp.eq.s32.totalorder %v194, %v2885
    %vm3069 = vcmp.eq.s32.totalorder %v194, %v2889
    %vm3070 = vcmp.eq.s32.totalorder %v195, %v2877
    %vm3071 = vcmp.eq.s32.totalorder %v195, %v2881
    %vm3072 = vcmp.eq.s32.totalorder %v195, %v2885
    %vm3073 = vcmp.eq.s32.totalorder %v195, %v2889
    %vm3074 = vcmp.eq.s32.totalorder %v196, %v2877
    %vm3075 = vcmp.eq.s32.totalorder %v196, %v2881
    %vm3076 = vcmp.eq.s32.totalorder %v196, %v2885
    %vm3077 = vcmp.eq.s32.totalorder %v196, %v2889
    %vm3078 = vcmp.eq.s32.totalorder %v197, %v2877
    %vm3079 = vcmp.eq.s32.totalorder %v197, %v2881
    %vm3080 = vcmp.eq.s32.totalorder %v197, %v2885
    %vm3081 = vcmp.eq.s32.totalorder %v197, %v2889
    %v3082 = vlaneseq
    %v3083 = vshrl.u32 %v3082, 7
    %v3084 = vsub.s32 1, %v3083
    %v3085 = vrot.slane %v234, %v3084
    %v3086 = vlaneseq
    %v3087 = vshrl.u32 %v3086, 7
    %v3088 = vsub.s32 1, %v3087
    %v3089 = vrot.slane %v235, %v3088
    %v3090 = vlaneseq
    %v3091 = vshrl.u32 %v3090, 7
    %v3092 = vsub.s32 1, %v3091
    %v3093 = vrot.slane %v236, %v3092
    %v3094 = vlaneseq
    %v3095 = vshrl.u32 %v3094, 7
    %v3096 = vsub.s32 1, %v3095
    %v3097 = vrot.slane %v237, %v3096
    %v3098 = vsel %vm2890, %v3085, 0.0
    %v3099 = vsel %vm2891, %v3089, 0.0
    %v3100 = vsel %vm2892, %v3093, 0.0
    %v3101 = vsel %vm2893, %v3097, 0.0
    %v3102 = vsel %vm2894, %v3085, 0.0
    %v3103 = vsel %vm2895, %v3089, 0.0
    %v3104 = vsel %vm2896, %v3093, 0.0
    %v3105 = vsel %vm2897, %v3097, 0.0
    %v3106 = vsel %vm2898, %v3085, 0.0
    %v3107 = vsel %vm2899, %v3089, 0.0
    %v3108 = vsel %vm2900, %v3093, 0.0
    %v3109 = vsel %vm2901, %v3097, 0.0
    %v3110 = vsel %vm2902, %v3085, 0.0
    %v3111 = vsel %vm2903, %v3089, 0.0
    %v3112 = vsel %vm2904, %v3093, 0.0
    %v3113 = vsel %vm2905, %v3097, 0.0
    %v3114 = vsel %vm2906, %v3085, 0.0
    %v3115 = vsel %vm2907, %v3089, 0.0
    %v3116 = vsel %vm2908, %v3093, 0.0
    %v3117 = vsel %vm2909, %v3097, 0.0
    %v3118 = vsel %vm2910, %v3085, 0.0
    %v3119 = vsel %vm2911, %v3089, 0.0
    %v3120 = vsel %vm2912, %v3093, 0.0
    %v3121 = vsel %vm2913, %v3097, 0.0
    %v3122 = vsel %vm2914, %v3085, 0.0
    %v3123 = vsel %vm2915, %v3089, 0.0
    %v3124 = vsel %vm2916, %v3093, 0.0
    %v3125 = vsel %vm2917, %v3097, 0.0
    %v3126 = vsel %vm2918, %v3085, 0.0
    %v3127 = vsel %vm2919, %v3089, 0.0
    %v3128 = vsel %vm2920, %v3093, 0.0
    %v3129 = vsel %vm2921, %v3097, 0.0
    %v3130 = vsel %vm2922, %v3085, 0.0
    %v3131 = vsel %vm2923, %v3089, 0.0
    %v3132 = vsel %vm2924, %v3093, 0.0
    %v3133 = vsel %vm2925, %v3097, 0.0
    %v3134 = vsel %vm2926, %v3085, 0.0
    %v3135 = vsel %vm2927, %v3089, 0.0
    %v3136 = vsel %vm2928, %v3093, 0.0
    %v3137 = vsel %vm2929, %v3097, 0.0
    %v3138 = vsel %vm2930, %v3085, 0.0
    %v3139 = vsel %vm2931, %v3089, 0.0
    %v3140 = vsel %vm2932, %v3093, 0.0
    %v3141 = vsel %vm2933, %v3097, 0.0
    %v3142 = vsel %vm2934, %v3085, 0.0
    %v3143 = vsel %vm2935, %v3089, 0.0
    %v3144 = vsel %vm2936, %v3093, 0.0
    %v3145 = vsel %vm2937, %v3097, 0.0
    %v3146 = vsel %vm2938, %v3085, 0.0
    %v3147 = vsel %vm2939, %v3089, 0.0
    %v3148 = vsel %vm2940, %v3093, 0.0
    %v3149 = vsel %vm2941, %v3097, 0.0
    %v3150 = vsel %vm2942, %v3085, 0.0
    %v3151 = vsel %vm2943, %v3089, 0.0
    %v3152 = vsel %vm2944, %v3093, 0.0
    %v3153 = vsel %vm2945, %v3097, 0.0
    %v3154 = vsel %vm2946, %v3085, 0.0
    %v3155 = vsel %vm2947, %v3089, 0.0
    %v3156 = vsel %vm2948, %v3093, 0.0
    %v3157 = vsel %vm2949, %v3097, 0.0
    %v3158 = vsel %vm2950, %v3085, 0.0
    %v3159 = vsel %vm2951, %v3089, 0.0
    %v3160 = vsel %vm2952, %v3093, 0.0
    %v3161 = vsel %vm2953, %v3097, 0.0
    %v3162 = vsel %vm2954, %v3085, 0.0
    %v3163 = vsel %vm2955, %v3089, 0.0
    %v3164 = vsel %vm2956, %v3093, 0.0
    %v3165 = vsel %vm2957, %v3097, 0.0
    %v3166 = vsel %vm2958, %v3085, 0.0
    %v3167 = vsel %vm2959, %v3089, 0.0
    %v3168 = vsel %vm2960, %v3093, 0.0
    %v3169 = vsel %vm2961, %v3097, 0.0
    %v3170 = vsel %vm2962, %v3085, 0.0
    %v3171 = vsel %vm2963, %v3089, 0.0
    %v3172 = vsel %vm2964, %v3093, 0.0
    %v3173 = vsel %vm2965, %v3097, 0.0
    %v3174 = vsel %vm2966, %v3085, 0.0
    %v3175 = vsel %vm2967, %v3089, 0.0
    %v3176 = vsel %vm2968, %v3093, 0.0
    %v3177 = vsel %vm2969, %v3097, 0.0
    %v3178 = vsel %vm2970, %v3085, 0.0
    %v3179 = vsel %vm2971, %v3089, 0.0
    %v3180 = vsel %vm2972, %v3093, 0.0
    %v3181 = vsel %vm2973, %v3097, 0.0
    %v3182 = vsel %vm2974, %v3085, 0.0
    %v3183 = vsel %vm2975, %v3089, 0.0
    %v3184 = vsel %vm2976, %v3093, 0.0
    %v3185 = vsel %vm2977, %v3097, 0.0
    %v3186 = vsel %vm2978, %v3085, 0.0
    %v3187 = vsel %vm2979, %v3089, 0.0
    %v3188 = vsel %vm2980, %v3093, 0.0
    %v3189 = vsel %vm2981, %v3097, 0.0
    %v3190 = vsel %vm2982, %v3085, 0.0
    %v3191 = vsel %vm2983, %v3089, 0.0
    %v3192 = vsel %vm2984, %v3093, 0.0
    %v3193 = vsel %vm2985, %v3097, 0.0
    %v3194 = vsel %vm2986, %v3085, 0.0
    %v3195 = vsel %vm2987, %v3089, 0.0
    %v3196 = vsel %vm2988, %v3093, 0.0
    %v3197 = vsel %vm2989, %v3097, 0.0
    %v3198 = vsel %vm2990, %v3085, 0.0
    %v3199 = vsel %vm2991, %v3089, 0.0
    %v3200 = vsel %vm2992, %v3093, 0.0
    %v3201 = vsel %vm2993, %v3097, 0.0
    %v3202 = vsel %vm2994, %v3085, 0.0
    %v3203 = vsel %vm2995, %v3089, 0.0
    %v3204 = vsel %vm2996, %v3093, 0.0
    %v3205 = vsel %vm2997, %v3097, 0.0
    %v3206 = vsel %vm2998, %v3085, 0.0
    %v3207 = vsel %vm2999, %v3089, 0.0
    %v3208 = vsel %vm3000, %v3093, 0.0
    %v3209 = vsel %vm3001, %v3097, 0.0
    %v3210 = vsel %vm3002, %v3085, 0.0
    %v3211 = vsel %vm3003, %v3089, 0.0
    %v3212 = vsel %vm3004, %v3093, 0.0
    %v3213 = vsel %vm3005, %v3097, 0.0
    %v3214 = vsel %vm3006, %v3085, 0.0
    %v3215 = vsel %vm3007, %v3089, 0.0
    %v3216 = vsel %vm3008, %v3093, 0.0
    %v3217 = vsel %vm3009, %v3097, 0.0
    %v3218 = vsel %vm3010, %v3085, 0.0
    %v3219 = vsel %vm3011, %v3089, 0.0
    %v3220 = vsel %vm3012, %v3093, 0.0
    %v3221 = vsel %vm3013, %v3097, 0.0
    %v3222 = vsel %vm3014, %v3085, 0.0
    %v3223 = vsel %vm3015, %v3089, 0.0
    %v3224 = vsel %vm3016, %v3093, 0.0
    %v3225 = vsel %vm3017, %v3097, 0.0
    %v3226 = vsel %vm3018, %v3085, 0.0
    %v3227 = vsel %vm3019, %v3089, 0.0
    %v3228 = vsel %vm3020, %v3093, 0.0
    %v3229 = vsel %vm3021, %v3097, 0.0
    %v3230 = vsel %vm3022, %v3085, 0.0
    %v3231 = vsel %vm3023, %v3089, 0.0
    %v3232 = vsel %vm3024, %v3093, 0.0
    %v3233 = vsel %vm3025, %v3097, 0.0
    %v3234 = vsel %vm3026, %v3085, 0.0
    %v3235 = vsel %vm3027, %v3089, 0.0
    %v3236 = vsel %vm3028, %v3093, 0.0
    %v3237 = vsel %vm3029, %v3097, 0.0
    %v3238 = vsel %vm3030, %v3085, 0.0
    %v3239 = vsel %vm3031, %v3089, 0.0
    %v3240 = vsel %vm3032, %v3093, 0.0
    %v3241 = vsel %vm3033, %v3097, 0.0
    %v3242 = vsel %vm3034, %v3085, 0.0
    %v3243 = vsel %vm3035, %v3089, 0.0
    %v3244 = vsel %vm3036, %v3093, 0.0
    %v3245 = vsel %vm3037, %v3097, 0.0
    %v3246 = vsel %vm3038, %v3085, 0.0
    %v3247 = vsel %vm3039, %v3089, 0.0
    %v3248 = vsel %vm3040, %v3093, 0.0
    %v3249 = vsel %vm3041, %v3097, 0.0
    %v3250 = vsel %vm3042, %v3085, 0.0
    %v3251 = vsel %vm3043, %v3089, 0.0
    %v3252 = vsel %vm3044, %v3093, 0.0
    %v3253 = vsel %vm3045, %v3097, 0.0
    %v3254 = vsel %vm3046, %v3085, 0.0
    %v3255 = vsel %vm3047, %v3089, 0.0
    %v3256 = vsel %vm3048, %v3093, 0.0
    %v3257 = vsel %vm3049, %v3097, 0.0
    %v3258 = vsel %vm3050, %v3085, 0.0
    %v3259 = vsel %vm3051, %v3089, 0.0
    %v3260 = vsel %vm3052, %v3093, 0.0
    %v3261 = vsel %vm3053, %v3097, 0.0
    %v3262 = vsel %vm3054, %v3085, 0.0
    %v3263 = vsel %vm3055, %v3089, 0.0
    %v3264 = vsel %vm3056, %v3093, 0.0
    %v3265 = vsel %vm3057, %v3097, 0.0
    %v3266 = vsel %vm3058, %v3085, 0.0
    %v3267 = vsel %vm3059, %v3089, 0.0
    %v3268 = vsel %vm3060, %v3093, 0.0
    %v3269 = vsel %vm3061, %v3097, 0.0
    %v3270 = vsel %vm3062, %v3085, 0.0
    %v3271 = vsel %vm3063, %v3089, 0.0
    %v3272 = vsel %vm3064, %v3093, 0.0
    %v3273 = vsel %vm3065, %v3097, 0.0
    %v3274 = vsel %vm3066, %v3085, 0.0
    %v3275 = vsel %vm3067, %v3089, 0.0
    %v3276 = vsel %vm3068, %v3093, 0.0
    %v3277 = vsel %vm3069, %v3097, 0.0
    %v3278 = vsel %vm3070, %v3085, 0.0
    %v3279 = vsel %vm3071, %v3089, 0.0
    %v3280 = vsel %vm3072, %v3093, 0.0
    %v3281 = vsel %vm3073, %v3097, 0.0
    %v3282 = vsel %vm3074, %v3085, 0.0
    %v3283 = vsel %vm3075, %v3089, 0.0
    %v3284 = vsel %vm3076, %v3093, 0.0
    %v3285 = vsel %vm3077, %v3097, 0.0
    %v3286 = vsel %vm3078, %v3085, 0.0
    %v3287 = vsel %vm3079, %v3089, 0.0
    %v3288 = vsel %vm3080, %v3093, 0.0
    %v3289 = vsel %vm3081, %v3097, 0.0
    %v3290 = vld [vmem:[#allocation3] sm:$0xff]
    %v3291 = vld [vmem:[#allocation3 + $0x8] sm:$0xff]
    %v3292 = vld [vmem:[#allocation3 + $0x10] sm:$0xff]
    %v3293 = vld [vmem:[#allocation3 + $0x18] sm:$0xff]
    %v3294 = vld [vmem:[#allocation3 + $0x20] sm:$0xff]
    %v3295 = vld [vmem:[#allocation3 + $0x28] sm:$0xff]
    %v3296 = vld [vmem:[#allocation3 + $0x30] sm:$0xff]
    %v3297 = vld [vmem:[#allocation3 + $0x38] sm:$0xff]
    %v3298 = vld [vmem:[#allocation3 + $0x40] sm:$0xff]
    %v3299 = vld [vmem:[#allocation3 + $0x48] sm:$0xff]
    %v3300 = vld [vmem:[#allocation3 + $0x50] sm:$0xff]
    %v3301 = vld [vmem:[#allocation3 + $0x58] sm:$0xff]
    %v3302 = vld [vmem:[#allocation3 + $0x60] sm:$0xff]
    %v3303 = vld [vmem:[#allocation3 + $0x68] sm:$0xff]
    %v3304 = vld [vmem:[#allocation3 + $0x70] sm:$0xff]
    %v3305 = vld [vmem:[#allocation3 + $0x78] sm:$0xff]
    %v3306 = vld [vmem:[#allocation3 + $0x80] sm:$0xff]
    %v3307 = vld [vmem:[#allocation3 + $0x88] sm:$0xff]
    %v3308 = vld [vmem:[#allocation3 + $0x90] sm:$0xff]
    %v3309 = vld [vmem:[#allocation3 + $0x98] sm:$0xff]
    %v3310 = vld [vmem:[#allocation3 + $0xa0] sm:$0xff]
    %v3311 = vld [vmem:[#allocation3 + $0xa8] sm:$0xff]
    %v3312 = vld [vmem:[#allocation3 + $0xb0] sm:$0xff]
    %v3313 = vld [vmem:[#allocation3 + $0xb8] sm:$0xff]
    %v3314 = vld [vmem:[#allocation3 + $0xc0] sm:$0xff]
    %v3315 = vld [vmem:[#allocation3 + $0xc8] sm:$0xff]
    %v3316 = vld [vmem:[#allocation3 + $0xd0] sm:$0xff]
    %v3317 = vld [vmem:[#allocation3 + $0xd8] sm:$0xff]
    %v3318 = vld [vmem:[#allocation3 + $0xe0] sm:$0xff]
    %v3319 = vld [vmem:[#allocation3 + $0xe8] sm:$0xff]
    %v3320 = vld [vmem:[#allocation3 + $0xf0] sm:$0xff]
    %v3321 = vld [vmem:[#allocation3 + $0xf8] sm:$0xff]
    %v3322 = vld [vmem:[#allocation3 + $0x100] sm:$0xff]
    %v3323 = vld [vmem:[#allocation3 + $0x108] sm:$0xff]
    %v3324 = vld [vmem:[#allocation3 + $0x110] sm:$0xff]
    %v3325 = vld [vmem:[#allocation3 + $0x118] sm:$0xff]
    %v3326 = vld [vmem:[#allocation3 + $0x120] sm:$0xff]
    %v3327 = vld [vmem:[#allocation3 + $0x128] sm:$0xff]
    %v3328 = vld [vmem:[#allocation3 + $0x130] sm:$0xff]
    %v3329 = vld [vmem:[#allocation3 + $0x138] sm:$0xff]
    %v3330 = vld [vmem:[#allocation3 + $0x140] sm:$0xff]
    %v3331 = vld [vmem:[#allocation3 + $0x148] sm:$0xff]
    %v3332 = vld [vmem:[#allocation3 + $0x150] sm:$0xff]
    %v3333 = vld [vmem:[#allocation3 + $0x158] sm:$0xff]
    %v3334 = vld [vmem:[#allocation3 + $0x160] sm:$0xff]
    %v3335 = vld [vmem:[#allocation3 + $0x168] sm:$0xff]
    %v3336 = vld [vmem:[#allocation3 + $0x170] sm:$0xff]
    %v3337 = vld [vmem:[#allocation3 + $0x178] sm:$0xff]
    %v3338 = vld [vmem:[#allocation3 + $0x180] sm:$0xff]
    %v3339 = vld [vmem:[#allocation3 + $0x188] sm:$0xff]
    %v3340 = vld [vmem:[#allocation3 + $0x190] sm:$0xff]
    %v3341 = vld [vmem:[#allocation3 + $0x198] sm:$0xff]
    %v3342 = vld [vmem:[#allocation3 + $0x1a0] sm:$0xff]
    %v3343 = vld [vmem:[#allocation3 + $0x1a8] sm:$0xff]
    %v3344 = vld [vmem:[#allocation3 + $0x1b0] sm:$0xff]
    %v3345 = vld [vmem:[#allocation3 + $0x1b8] sm:$0xff]
    %v3346 = vld [vmem:[#allocation3 + $0x1c0] sm:$0xff]
    %v3347 = vld [vmem:[#allocation3 + $0x1c8] sm:$0xff]
    %v3348 = vld [vmem:[#allocation3 + $0x1d0] sm:$0xff]
    %v3349 = vld [vmem:[#allocation3 + $0x1d8] sm:$0xff]
    %v3350 = vld [vmem:[#allocation3 + $0x1e0] sm:$0xff]
    %v3351 = vld [vmem:[#allocation3 + $0x1e8] sm:$0xff]
    %v3352 = vld [vmem:[#allocation3 + $0x1f0] sm:$0xff]
    %v3353 = vld [vmem:[#allocation3 + $0x1f8] sm:$0xff]
    %v3354 = vld [vmem:[#allocation3 + $0x200] sm:$0xff]
    %v3355 = vld [vmem:[#allocation3 + $0x208] sm:$0xff]
    %v3356 = vld [vmem:[#allocation3 + $0x210] sm:$0xff]
    %v3357 = vld [vmem:[#allocation3 + $0x218] sm:$0xff]
    %v3358 = vld [vmem:[#allocation3 + $0x220] sm:$0xff]
    %v3359 = vld [vmem:[#allocation3 + $0x228] sm:$0xff]
    %v3360 = vld [vmem:[#allocation3 + $0x230] sm:$0xff]
    %v3361 = vld [vmem:[#allocation3 + $0x238] sm:$0xff]
    %v3362 = vld [vmem:[#allocation3 + $0x240] sm:$0xff]
    %v3363 = vld [vmem:[#allocation3 + $0x248] sm:$0xff]
    %v3364 = vld [vmem:[#allocation3 + $0x250] sm:$0xff]
    %v3365 = vld [vmem:[#allocation3 + $0x258] sm:$0xff]
    %v3366 = vld [vmem:[#allocation3 + $0x260] sm:$0xff]
    %v3367 = vld [vmem:[#allocation3 + $0x268] sm:$0xff]
    %v3368 = vld [vmem:[#allocation3 + $0x270] sm:$0xff]
    %v3369 = vld [vmem:[#allocation3 + $0x278] sm:$0xff]
    %v3370 = vld [vmem:[#allocation3 + $0x280] sm:$0xff]
    %v3371 = vld [vmem:[#allocation3 + $0x288] sm:$0xff]
    %v3372 = vld [vmem:[#allocation3 + $0x290] sm:$0xff]
    %v3373 = vld [vmem:[#allocation3 + $0x298] sm:$0xff]
    %v3374 = vld [vmem:[#allocation3 + $0x2a0] sm:$0xff]
    %v3375 = vld [vmem:[#allocation3 + $0x2a8] sm:$0xff]
    %v3376 = vld [vmem:[#allocation3 + $0x2b0] sm:$0xff]
    %v3377 = vld [vmem:[#allocation3 + $0x2b8] sm:$0xff]
    %v3378 = vld [vmem:[#allocation3 + $0x2c0] sm:$0xff]
    %v3379 = vld [vmem:[#allocation3 + $0x2c8] sm:$0xff]
    %v3380 = vld [vmem:[#allocation3 + $0x2d0] sm:$0xff]
    %v3381 = vld [vmem:[#allocation3 + $0x2d8] sm:$0xff]
    %v3382 = vld [vmem:[#allocation3 + $0x2e0] sm:$0xff]
    %v3383 = vld [vmem:[#allocation3 + $0x2e8] sm:$0xff]
    %v3384 = vld [vmem:[#allocation3 + $0x2f0] sm:$0xff]
    %v3385 = vld [vmem:[#allocation3 + $0x2f8] sm:$0xff]
    %v3386 = vld [vmem:[#allocation3 + $0x300] sm:$0xff]
    %v3387 = vld [vmem:[#allocation3 + $0x308] sm:$0xff]
    %v3388 = vld [vmem:[#allocation3 + $0x310] sm:$0xff]
    %v3389 = vld [vmem:[#allocation3 + $0x318] sm:$0xff]
    %v3390 = vld [vmem:[#allocation3 + $0x320] sm:$0xff]
    %v3391 = vld [vmem:[#allocation3 + $0x328] sm:$0xff]
    %v3392 = vld [vmem:[#allocation3 + $0x330] sm:$0xff]
    %v3393 = vld [vmem:[#allocation3 + $0x338] sm:$0xff]
    %v3394 = vld [vmem:[#allocation3 + $0x340] sm:$0xff]
    %v3395 = vld [vmem:[#allocation3 + $0x348] sm:$0xff]
    %v3396 = vld [vmem:[#allocation3 + $0x350] sm:$0xff]
    %v3397 = vld [vmem:[#allocation3 + $0x358] sm:$0xff]
    %v3398 = vld [vmem:[#allocation3 + $0x360] sm:$0xff]
    %v3399 = vld [vmem:[#allocation3 + $0x368] sm:$0xff]
    %v3400 = vld [vmem:[#allocation3 + $0x370] sm:$0xff]
    %v3401 = vld [vmem:[#allocation3 + $0x378] sm:$0xff]
    %v3402 = vld [vmem:[#allocation3 + $0x380] sm:$0xff]
    %v3403 = vld [vmem:[#allocation3 + $0x388] sm:$0xff]
    %v3404 = vld [vmem:[#allocation3 + $0x390] sm:$0xff]
    %v3405 = vld [vmem:[#allocation3 + $0x398] sm:$0xff]
    %v3406 = vld [vmem:[#allocation3 + $0x3a0] sm:$0xff]
    %v3407 = vld [vmem:[#allocation3 + $0x3a8] sm:$0xff]
    %v3408 = vld [vmem:[#allocation3 + $0x3b0] sm:$0xff]
    %v3409 = vld [vmem:[#allocation3 + $0x3b8] sm:$0xff]
    %v3410 = vld [vmem:[#allocation3 + $0x3c0] sm:$0xff]
    %v3411 = vld [vmem:[#allocation3 + $0x3c8] sm:$0xff]
    %v3412 = vld [vmem:[#allocation3 + $0x3d0] sm:$0xff]
    %v3413 = vld [vmem:[#allocation3 + $0x3d8] sm:$0xff]
    %v3414 = vld [vmem:[#allocation3 + $0x3e0] sm:$0xff]
    %v3415 = vld [vmem:[#allocation3 + $0x3e8] sm:$0xff]
    %v3416 = vld [vmem:[#allocation3 + $0x3f0] sm:$0xff]
    %v3417 = vld [vmem:[#allocation3 + $0x3f8] sm:$0xff]
    %v3418 = vld [vmem:[#allocation3 + $0x400] sm:$0xff]
    %v3419 = vld [vmem:[#allocation3 + $0x408] sm:$0xff]
    %v3420 = vld [vmem:[#allocation3 + $0x410] sm:$0xff]
    %v3421 = vld [vmem:[#allocation3 + $0x418] sm:$0xff]
    %v3422 = vld [vmem:[#allocation3 + $0x420] sm:$0xff]
    %v3423 = vld [vmem:[#allocation3 + $0x428] sm:$0xff]
    %v3424 = vld [vmem:[#allocation3 + $0x430] sm:$0xff]
    %v3425 = vld [vmem:[#allocation3 + $0x438] sm:$0xff]
    %v3426 = vld [vmem:[#allocation3 + $0x440] sm:$0xff]
    %v3427 = vld [vmem:[#allocation3 + $0x448] sm:$0xff]
    %v3428 = vld [vmem:[#allocation3 + $0x450] sm:$0xff]
    %v3429 = vld [vmem:[#allocation3 + $0x458] sm:$0xff]
    %v3430 = vld [vmem:[#allocation3 + $0x460] sm:$0xff]
    %v3431 = vld [vmem:[#allocation3 + $0x468] sm:$0xff]
    %v3432 = vld [vmem:[#allocation3 + $0x470] sm:$0xff]
    %v3433 = vld [vmem:[#allocation3 + $0x478] sm:$0xff]
    %v3434 = vld [vmem:[#allocation3 + $0x480] sm:$0xff]
    %v3435 = vld [vmem:[#allocation3 + $0x488] sm:$0xff]
    %v3436 = vld [vmem:[#allocation3 + $0x490] sm:$0xff]
    %v3437 = vld [vmem:[#allocation3 + $0x498] sm:$0xff]
    %v3438 = vld [vmem:[#allocation3 + $0x4a0] sm:$0xff]
    %v3439 = vld [vmem:[#allocation3 + $0x4a8] sm:$0xff]
    %v3440 = vld [vmem:[#allocation3 + $0x4b0] sm:$0xff]
    %v3441 = vld [vmem:[#allocation3 + $0x4b8] sm:$0xff]
    %v3442 = vld [vmem:[#allocation3 + $0x4c0] sm:$0xff]
    %v3443 = vld [vmem:[#allocation3 + $0x4c8] sm:$0xff]
    %v3444 = vld [vmem:[#allocation3 + $0x4d0] sm:$0xff]
    %v3445 = vld [vmem:[#allocation3 + $0x4d8] sm:$0xff]
    %v3446 = vld [vmem:[#allocation3 + $0x4e0] sm:$0xff]
    %v3447 = vld [vmem:[#allocation3 + $0x4e8] sm:$0xff]
    %v3448 = vld [vmem:[#allocation3 + $0x4f0] sm:$0xff]
    %v3449 = vld [vmem:[#allocation3 + $0x4f8] sm:$0xff]
    %v3450 = vld [vmem:[#allocation3 + $0x500] sm:$0xff]
    %v3451 = vld [vmem:[#allocation3 + $0x508] sm:$0xff]
    %v3452 = vld [vmem:[#allocation3 + $0x510] sm:$0xff]
    %v3453 = vld [vmem:[#allocation3 + $0x518] sm:$0xff]
    %v3454 = vld [vmem:[#allocation3 + $0x520] sm:$0xff]
    %v3455 = vld [vmem:[#allocation3 + $0x528] sm:$0xff]
    %v3456 = vld [vmem:[#allocation3 + $0x530] sm:$0xff]
    %v3457 = vld [vmem:[#allocation3 + $0x538] sm:$0xff]
    %v3458 = vld [vmem:[#allocation3 + $0x540] sm:$0xff]
    %v3459 = vld [vmem:[#allocation3 + $0x548] sm:$0xff]
    %v3460 = vld [vmem:[#allocation3 + $0x550] sm:$0xff]
    %v3461 = vld [vmem:[#allocation3 + $0x558] sm:$0xff]
    %v3462 = vld [vmem:[#allocation3 + $0x560] sm:$0xff]
    %v3463 = vld [vmem:[#allocation3 + $0x568] sm:$0xff]
    %v3464 = vld [vmem:[#allocation3 + $0x570] sm:$0xff]
    %v3465 = vld [vmem:[#allocation3 + $0x578] sm:$0xff]
    %v3466 = vld [vmem:[#allocation3 + $0x580] sm:$0xff]
    %v3467 = vld [vmem:[#allocation3 + $0x588] sm:$0xff]
    %v3468 = vld [vmem:[#allocation3 + $0x590] sm:$0xff]
    %v3469 = vld [vmem:[#allocation3 + $0x598] sm:$0xff]
    %v3470 = vld [vmem:[#allocation3 + $0x5a0] sm:$0xff]
    %v3471 = vld [vmem:[#allocation3 + $0x5a8] sm:$0xff]
    %v3472 = vld [vmem:[#allocation3 + $0x5b0] sm:$0xff]
    %v3473 = vld [vmem:[#allocation3 + $0x5b8] sm:$0xff]
    %v3474 = vld [vmem:[#allocation3 + $0x5c0] sm:$0xff]
    %v3475 = vld [vmem:[#allocation3 + $0x5c8] sm:$0xff]
    %v3476 = vld [vmem:[#allocation3 + $0x5d0] sm:$0xff]
    %v3477 = vld [vmem:[#allocation3 + $0x5d8] sm:$0xff]
    %v3478 = vld [vmem:[#allocation3 + $0x5e0] sm:$0xff]
    %v3479 = vld [vmem:[#allocation3 + $0x5e8] sm:$0xff]
    %v3480 = vld [vmem:[#allocation3 + $0x5f0] sm:$0xff]
    %v3481 = vld [vmem:[#allocation3 + $0x5f8] sm:$0xff]
    %v3482 = vadd.f32 %v3290, %v3098
    %v3483 = vadd.f32 %v3291, %v3099
    %v3484 = vadd.f32 %v3292, %v3100
    %v3485 = vadd.f32 %v3293, %v3101
    %v3486 = vadd.f32 %v3294, %v3102
    %v3487 = vadd.f32 %v3295, %v3103
    %v3488 = vadd.f32 %v3296, %v3104
    %v3489 = vadd.f32 %v3297, %v3105
    %v3490 = vadd.f32 %v3298, %v3106
    %v3491 = vadd.f32 %v3299, %v3107
    %v3492 = vadd.f32 %v3300, %v3108
    %v3493 = vadd.f32 %v3301, %v3109
    %v3494 = vadd.f32 %v3302, %v3110
    %v3495 = vadd.f32 %v3303, %v3111
    %v3496 = vadd.f32 %v3304, %v3112
    %v3497 = vadd.f32 %v3305, %v3113
    %v3498 = vadd.f32 %v3306, %v3114
    %v3499 = vadd.f32 %v3307, %v3115
    %v3500 = vadd.f32 %v3308, %v3116
    %v3501 = vadd.f32 %v3309, %v3117
    %v3502 = vadd.f32 %v3310, %v3118
    %v3503 = vadd.f32 %v3311, %v3119
    %v3504 = vadd.f32 %v3312, %v3120
    %v3505 = vadd.f32 %v3313, %v3121
    %v3506 = vadd.f32 %v3314, %v3122
    %v3507 = vadd.f32 %v3315, %v3123
    %v3508 = vadd.f32 %v3316, %v3124
    %v3509 = vadd.f32 %v3317, %v3125
    %v3510 = vadd.f32 %v3318, %v3126
    %v3511 = vadd.f32 %v3319, %v3127
    %v3512 = vadd.f32 %v3320, %v3128
    %v3513 = vadd.f32 %v3321, %v3129
    %v3514 = vadd.f32 %v3322, %v3130
    %v3515 = vadd.f32 %v3323, %v3131
    %v3516 = vadd.f32 %v3324, %v3132
    %v3517 = vadd.f32 %v3325, %v3133
    %v3518 = vadd.f32 %v3326, %v3134
    %v3519 = vadd.f32 %v3327, %v3135
    %v3520 = vadd.f32 %v3328, %v3136
    %v3521 = vadd.f32 %v3329, %v3137
    %v3522 = vadd.f32 %v3330, %v3138
    %v3523 = vadd.f32 %v3331, %v3139
    %v3524 = vadd.f32 %v3332, %v3140
    %v3525 = vadd.f32 %v3333, %v3141
    %v3526 = vadd.f32 %v3334, %v3142
    %v3527 = vadd.f32 %v3335, %v3143
    %v3528 = vadd.f32 %v3336, %v3144
    %v3529 = vadd.f32 %v3337, %v3145
    %v3530 = vadd.f32 %v3338, %v3146
    %v3531 = vadd.f32 %v3339, %v3147
    %v3532 = vadd.f32 %v3340, %v3148
    %v3533 = vadd.f32 %v3341, %v3149
    %v3534 = vadd.f32 %v3342, %v3150
    %v3535 = vadd.f32 %v3343, %v3151
    %v3536 = vadd.f32 %v3344, %v3152
    %v3537 = vadd.f32 %v3345, %v3153
    %v3538 = vadd.f32 %v3346, %v3154
    %v3539 = vadd.f32 %v3347, %v3155
    %v3540 = vadd.f32 %v3348, %v3156
    %v3541 = vadd.f32 %v3349, %v3157
    %v3542 = vadd.f32 %v3350, %v3158
    %v3543 = vadd.f32 %v3351, %v3159
    %v3544 = vadd.f32 %v3352, %v3160
    %v3545 = vadd.f32 %v3353, %v3161
    %v3546 = vadd.f32 %v3354, %v3162
    %v3547 = vadd.f32 %v3355, %v3163
    %v3548 = vadd.f32 %v3356, %v3164
    %v3549 = vadd.f32 %v3357, %v3165
    %v3550 = vadd.f32 %v3358, %v3166
    %v3551 = vadd.f32 %v3359, %v3167
    %v3552 = vadd.f32 %v3360, %v3168
    %v3553 = vadd.f32 %v3361, %v3169
    %v3554 = vadd.f32 %v3362, %v3170
    %v3555 = vadd.f32 %v3363, %v3171
    %v3556 = vadd.f32 %v3364, %v3172
    %v3557 = vadd.f32 %v3365, %v3173
    %v3558 = vadd.f32 %v3366, %v3174
    %v3559 = vadd.f32 %v3367, %v3175
    %v3560 = vadd.f32 %v3368, %v3176
    %v3561 = vadd.f32 %v3369, %v3177
    %v3562 = vadd.f32 %v3370, %v3178
    %v3563 = vadd.f32 %v3371, %v3179
    %v3564 = vadd.f32 %v3372, %v3180
    %v3565 = vadd.f32 %v3373, %v3181
    %v3566 = vadd.f32 %v3374, %v3182
    %v3567 = vadd.f32 %v3375, %v3183
    %v3568 = vadd.f32 %v3376, %v3184
    %v3569 = vadd.f32 %v3377, %v3185
    %v3570 = vadd.f32 %v3378, %v3186
    %v3571 = vadd.f32 %v3379, %v3187
    %v3572 = vadd.f32 %v3380, %v3188
    %v3573 = vadd.f32 %v3381, %v3189
    %v3574 = vadd.f32 %v3382, %v3190
    %v3575 = vadd.f32 %v3383, %v3191
    %v3576 = vadd.f32 %v3384, %v3192
    %v3577 = vadd.f32 %v3385, %v3193
    %v3578 = vadd.f32 %v3386, %v3194
    %v3579 = vadd.f32 %v3387, %v3195
    %v3580 = vadd.f32 %v3388, %v3196
    %v3581 = vadd.f32 %v3389, %v3197
    %v3582 = vadd.f32 %v3390, %v3198
    %v3583 = vadd.f32 %v3391, %v3199
    %v3584 = vadd.f32 %v3392, %v3200
    %v3585 = vadd.f32 %v3393, %v3201
    %v3586 = vadd.f32 %v3394, %v3202
    %v3587 = vadd.f32 %v3395, %v3203
    %v3588 = vadd.f32 %v3396, %v3204
    %v3589 = vadd.f32 %v3397, %v3205
    %v3590 = vadd.f32 %v3398, %v3206
    %v3591 = vadd.f32 %v3399, %v3207
    %v3592 = vadd.f32 %v3400, %v3208
    %v3593 = vadd.f32 %v3401, %v3209
    %v3594 = vadd.f32 %v3402, %v3210
    %v3595 = vadd.f32 %v3403, %v3211
    %v3596 = vadd.f32 %v3404, %v3212
    %v3597 = vadd.f32 %v3405, %v3213
    %v3598 = vadd.f32 %v3406, %v3214
    %v3599 = vadd.f32 %v3407, %v3215
    %v3600 = vadd.f32 %v3408, %v3216
    %v3601 = vadd.f32 %v3409, %v3217
    %v3602 = vadd.f32 %v3410, %v3218
    %v3603 = vadd.f32 %v3411, %v3219
    %v3604 = vadd.f32 %v3412, %v3220
    %v3605 = vadd.f32 %v3413, %v3221
    %v3606 = vadd.f32 %v3414, %v3222
    %v3607 = vadd.f32 %v3415, %v3223
    %v3608 = vadd.f32 %v3416, %v3224
    %v3609 = vadd.f32 %v3417, %v3225
    %v3610 = vadd.f32 %v3418, %v3226
    %v3611 = vadd.f32 %v3419, %v3227
    %v3612 = vadd.f32 %v3420, %v3228
    %v3613 = vadd.f32 %v3421, %v3229
    %v3614 = vadd.f32 %v3422, %v3230
    %v3615 = vadd.f32 %v3423, %v3231
    %v3616 = vadd.f32 %v3424, %v3232
    %v3617 = vadd.f32 %v3425, %v3233
    %v3618 = vadd.f32 %v3426, %v3234
    %v3619 = vadd.f32 %v3427, %v3235
    %v3620 = vadd.f32 %v3428, %v3236
    %v3621 = vadd.f32 %v3429, %v3237
    %v3622 = vadd.f32 %v3430, %v3238
    %v3623 = vadd.f32 %v3431, %v3239
    %v3624 = vadd.f32 %v3432, %v3240
    %v3625 = vadd.f32 %v3433, %v3241
    %v3626 = vadd.f32 %v3434, %v3242
    %v3627 = vadd.f32 %v3435, %v3243
    %v3628 = vadd.f32 %v3436, %v3244
    %v3629 = vadd.f32 %v3437, %v3245
    %v3630 = vadd.f32 %v3438, %v3246
    %v3631 = vadd.f32 %v3439, %v3247
    %v3632 = vadd.f32 %v3440, %v3248
    %v3633 = vadd.f32 %v3441, %v3249
    %v3634 = vadd.f32 %v3442, %v3250
    %v3635 = vadd.f32 %v3443, %v3251
    %v3636 = vadd.f32 %v3444, %v3252
    %v3637 = vadd.f32 %v3445, %v3253
    %v3638 = vadd.f32 %v3446, %v3254
    %v3639 = vadd.f32 %v3447, %v3255
    %v3640 = vadd.f32 %v3448, %v3256
    %v3641 = vadd.f32 %v3449, %v3257
    %v3642 = vadd.f32 %v3450, %v3258
    %v3643 = vadd.f32 %v3451, %v3259
    %v3644 = vadd.f32 %v3452, %v3260
    %v3645 = vadd.f32 %v3453, %v3261
    %v3646 = vadd.f32 %v3454, %v3262
    %v3647 = vadd.f32 %v3455, %v3263
    %v3648 = vadd.f32 %v3456, %v3264
    %v3649 = vadd.f32 %v3457, %v3265
    %v3650 = vadd.f32 %v3458, %v3266
    %v3651 = vadd.f32 %v3459, %v3267
    %v3652 = vadd.f32 %v3460, %v3268
    %v3653 = vadd.f32 %v3461, %v3269
    %v3654 = vadd.f32 %v3462, %v3270
    %v3655 = vadd.f32 %v3463, %v3271
    %v3656 = vadd.f32 %v3464, %v3272
    %v3657 = vadd.f32 %v3465, %v3273
    %v3658 = vadd.f32 %v3466, %v3274
    %v3659 = vadd.f32 %v3467, %v3275
    %v3660 = vadd.f32 %v3468, %v3276
    %v3661 = vadd.f32 %v3469, %v3277
    %v3662 = vadd.f32 %v3470, %v3278
    %v3663 = vadd.f32 %v3471, %v3279
    %v3664 = vadd.f32 %v3472, %v3280
    %v3665 = vadd.f32 %v3473, %v3281
    %v3666 = vadd.f32 %v3474, %v3282
    %v3667 = vadd.f32 %v3475, %v3283
    %v3668 = vadd.f32 %v3476, %v3284
    %v3669 = vadd.f32 %v3477, %v3285
    %v3670 = vadd.f32 %v3478, %v3286
    %v3671 = vadd.f32 %v3479, %v3287
    %v3672 = vadd.f32 %v3480, %v3288
    %v3673 = vadd.f32 %v3481, %v3289
    %3674 = vst [vmem:[#allocation3] sm:$0xff] %v3482
    %3675 = vst [vmem:[#allocation3 + $0x8] sm:$0xff] %v3483
    %3676 = vst [vmem:[#allocation3 + $0x10] sm:$0xff] %v3484
    %3677 = vst [vmem:[#allocation3 + $0x18] sm:$0xff] %v3485
    %3678 = vst [vmem:[#allocation3 + $0x20] sm:$0xff] %v3486
    %3679 = vst [vmem:[#allocation3 + $0x28] sm:$0xff] %v3487
    %3680 = vst [vmem:[#allocation3 + $0x30] sm:$0xff] %v3488
    %3681 = vst [vmem:[#allocation3 + $0x38] sm:$0xff] %v3489
    %3682 = vst [vmem:[#allocation3 + $0x40] sm:$0xff] %v3490
    %3683 = vst [vmem:[#allocation3 + $0x48] sm:$0xff] %v3491
    %3684 = vst [vmem:[#allocation3 + $0x50] sm:$0xff] %v3492
    %3685 = vst [vmem:[#allocation3 + $0x58] sm:$0xff] %v3493
    %3686 = vst [vmem:[#allocation3 + $0x60] sm:$0xff] %v3494
    %3687 = vst [vmem:[#allocation3 + $0x68] sm:$0xff] %v3495
    %3688 = vst [vmem:[#allocation3 + $0x70] sm:$0xff] %v3496
    %3689 = vst [vmem:[#allocation3 + $0x78] sm:$0xff] %v3497
    %3690 = vst [vmem:[#allocation3 + $0x80] sm:$0xff] %v3498
    %3691 = vst [vmem:[#allocation3 + $0x88] sm:$0xff] %v3499
    %3692 = vst [vmem:[#allocation3 + $0x90] sm:$0xff] %v3500
    %3693 = vst [vmem:[#allocation3 + $0x98] sm:$0xff] %v3501
    %3694 = vst [vmem:[#allocation3 + $0xa0] sm:$0xff] %v3502
    %3695 = vst [vmem:[#allocation3 + $0xa8] sm:$0xff] %v3503
    %3696 = vst [vmem:[#allocation3 + $0xb0] sm:$0xff] %v3504
    %3697 = vst [vmem:[#allocation3 + $0xb8] sm:$0xff] %v3505
    %3698 = vst [vmem:[#allocation3 + $0xc0] sm:$0xff] %v3506
    %3699 = vst [vmem:[#allocation3 + $0xc8] sm:$0xff] %v3507
    %3700 = vst [vmem:[#allocation3 + $0xd0] sm:$0xff] %v3508
    %3701 = vst [vmem:[#allocation3 + $0xd8] sm:$0xff] %v3509
    %3702 = vst [vmem:[#allocation3 + $0xe0] sm:$0xff] %v3510
    %3703 = vst [vmem:[#allocation3 + $0xe8] sm:$0xff] %v3511
    %3704 = vst [vmem:[#allocation3 + $0xf0] sm:$0xff] %v3512
    %3705 = vst [vmem:[#allocation3 + $0xf8] sm:$0xff] %v3513
    %3706 = vst [vmem:[#allocation3 + $0x100] sm:$0xff] %v3514
    %3707 = vst [vmem:[#allocation3 + $0x108] sm:$0xff] %v3515
    %3708 = vst [vmem:[#allocation3 + $0x110] sm:$0xff] %v3516
    %3709 = vst [vmem:[#allocation3 + $0x118] sm:$0xff] %v3517
    %3710 = vst [vmem:[#allocation3 + $0x120] sm:$0xff] %v3518
    %3711 = vst [vmem:[#allocation3 + $0x128] sm:$0xff] %v3519
    %3712 = vst [vmem:[#allocation3 + $0x130] sm:$0xff] %v3520
    %3713 = vst [vmem:[#allocation3 + $0x138] sm:$0xff] %v3521
    %3714 = vst [vmem:[#allocation3 + $0x140] sm:$0xff] %v3522
    %3715 = vst [vmem:[#allocation3 + $0x148] sm:$0xff] %v3523
    %3716 = vst [vmem:[#allocation3 + $0x150] sm:$0xff] %v3524
    %3717 = vst [vmem:[#allocation3 + $0x158] sm:$0xff] %v3525
    %3718 = vst [vmem:[#allocation3 + $0x160] sm:$0xff] %v3526
    %3719 = vst [vmem:[#allocation3 + $0x168] sm:$0xff] %v3527
    %3720 = vst [vmem:[#allocation3 + $0x170] sm:$0xff] %v3528
    %3721 = vst [vmem:[#allocation3 + $0x178] sm:$0xff] %v3529
    %3722 = vst [vmem:[#allocation3 + $0x180] sm:$0xff] %v3530
    %3723 = vst [vmem:[#allocation3 + $0x188] sm:$0xff] %v3531
    %3724 = vst [vmem:[#allocation3 + $0x190] sm:$0xff] %v3532
    %3725 = vst [vmem:[#allocation3 + $0x198] sm:$0xff] %v3533
    %3726 = vst [vmem:[#allocation3 + $0x1a0] sm:$0xff] %v3534
    %3727 = vst [vmem:[#allocation3 + $0x1a8] sm:$0xff] %v3535
    %3728 = vst [vmem:[#allocation3 + $0x1b0] sm:$0xff] %v3536
    %3729 = vst [vmem:[#allocation3 + $0x1b8] sm:$0xff] %v3537
    %3730 = vst [vmem:[#allocation3 + $0x1c0] sm:$0xff] %v3538
    %3731 = vst [vmem:[#allocation3 + $0x1c8] sm:$0xff] %v3539
    %3732 = vst [vmem:[#allocation3 + $0x1d0] sm:$0xff] %v3540
    %3733 = vst [vmem:[#allocation3 + $0x1d8] sm:$0xff] %v3541
    %3734 = vst [vmem:[#allocation3 + $0x1e0] sm:$0xff] %v3542
    %3735 = vst [vmem:[#allocation3 + $0x1e8] sm:$0xff] %v3543
    %3736 = vst [vmem:[#allocation3 + $0x1f0] sm:$0xff] %v3544
    %3737 = vst [vmem:[#allocation3 + $0x1f8] sm:$0xff] %v3545
    %3738 = vst [vmem:[#allocation3 + $0x200] sm:$0xff] %v3546
    %3739 = vst [vmem:[#allocation3 + $0x208] sm:$0xff] %v3547
    %3740 = vst [vmem:[#allocation3 + $0x210] sm:$0xff] %v3548
    %3741 = vst [vmem:[#allocation3 + $0x218] sm:$0xff] %v3549
    %3742 = vst [vmem:[#allocation3 + $0x220] sm:$0xff] %v3550
    %3743 = vst [vmem:[#allocation3 + $0x228] sm:$0xff] %v3551
    %3744 = vst [vmem:[#allocation3 + $0x230] sm:$0xff] %v3552
    %3745 = vst [vmem:[#allocation3 + $0x238] sm:$0xff] %v3553
    %3746 = vst [vmem:[#allocation3 + $0x240] sm:$0xff] %v3554
    %3747 = vst [vmem:[#allocation3 + $0x248] sm:$0xff] %v3555
    %3748 = vst [vmem:[#allocation3 + $0x250] sm:$0xff] %v3556
    %3749 = vst [vmem:[#allocation3 + $0x258] sm:$0xff] %v3557
    %3750 = vst [vmem:[#allocation3 + $0x260] sm:$0xff] %v3558
    %3751 = vst [vmem:[#allocation3 + $0x268] sm:$0xff] %v3559
    %3752 = vst [vmem:[#allocation3 + $0x270] sm:$0xff] %v3560
    %3753 = vst [vmem:[#allocation3 + $0x278] sm:$0xff] %v3561
    %3754 = vst [vmem:[#allocation3 + $0x280] sm:$0xff] %v3562
    %3755 = vst [vmem:[#allocation3 + $0x288] sm:$0xff] %v3563
    %3756 = vst [vmem:[#allocation3 + $0x290] sm:$0xff] %v3564
    %3757 = vst [vmem:[#allocation3 + $0x298] sm:$0xff] %v3565
    %3758 = vst [vmem:[#allocation3 + $0x2a0] sm:$0xff] %v3566
    %3759 = vst [vmem:[#allocation3 + $0x2a8] sm:$0xff] %v3567
    %3760 = vst [vmem:[#allocation3 + $0x2b0] sm:$0xff] %v3568
    %3761 = vst [vmem:[#allocation3 + $0x2b8] sm:$0xff] %v3569
    %3762 = vst [vmem:[#allocation3 + $0x2c0] sm:$0xff] %v3570
    %3763 = vst [vmem:[#allocation3 + $0x2c8] sm:$0xff] %v3571
    %3764 = vst [vmem:[#allocation3 + $0x2d0] sm:$0xff] %v3572
    %3765 = vst [vmem:[#allocation3 + $0x2d8] sm:$0xff] %v3573
    %3766 = vst [vmem:[#allocation3 + $0x2e0] sm:$0xff] %v3574
    %3767 = vst [vmem:[#allocation3 + $0x2e8] sm:$0xff] %v3575
    %3768 = vst [vmem:[#allocation3 + $0x2f0] sm:$0xff] %v3576
    %3769 = vst [vmem:[#allocation3 + $0x2f8] sm:$0xff] %v3577
    %3770 = vst [vmem:[#allocation3 + $0x300] sm:$0xff] %v3578
    %3771 = vst [vmem:[#allocation3 + $0x308] sm:$0xff] %v3579
    %3772 = vst [vmem:[#allocation3 + $0x310] sm:$0xff] %v3580
    %3773 = vst [vmem:[#allocation3 + $0x318] sm:$0xff] %v3581
    %3774 = vst [vmem:[#allocation3 + $0x320] sm:$0xff] %v3582
    %3775 = vst [vmem:[#allocation3 + $0x328] sm:$0xff] %v3583
    %3776 = vst [vmem:[#allocation3 + $0x330] sm:$0xff] %v3584
    %3777 = vst [vmem:[#allocation3 + $0x338] sm:$0xff] %v3585
    %3778 = vst [vmem:[#allocation3 + $0x340] sm:$0xff] %v3586
    %3779 = vst [vmem:[#allocation3 + $0x348] sm:$0xff] %v3587
    %3780 = vst [vmem:[#allocation3 + $0x350] sm:$0xff] %v3588
    %3781 = vst [vmem:[#allocation3 + $0x358] sm:$0xff] %v3589
    %3782 = vst [vmem:[#allocation3 + $0x360] sm:$0xff] %v3590
    %3783 = vst [vmem:[#allocation3 + $0x368] sm:$0xff] %v3591
    %3784 = vst [vmem:[#allocation3 + $0x370] sm:$0xff] %v3592
    %3785 = vst [vmem:[#allocation3 + $0x378] sm:$0xff] %v3593
    %3786 = vst [vmem:[#allocation3 + $0x380] sm:$0xff] %v3594
    %3787 = vst [vmem:[#allocation3 + $0x388] sm:$0xff] %v3595
    %3788 = vst [vmem:[#allocation3 + $0x390] sm:$0xff] %v3596
    %3789 = vst [vmem:[#allocation3 + $0x398] sm:$0xff] %v3597
    %3790 = vst [vmem:[#allocation3 + $0x3a0] sm:$0xff] %v3598
    %3791 = vst [vmem:[#allocation3 + $0x3a8] sm:$0xff] %v3599
    %3792 = vst [vmem:[#allocation3 + $0x3b0] sm:$0xff] %v3600
    %3793 = vst [vmem:[#allocation3 + $0x3b8] sm:$0xff] %v3601
    %3794 = vst [vmem:[#allocation3 + $0x3c0] sm:$0xff] %v3602
    %3795 = vst [vmem:[#allocation3 + $0x3c8] sm:$0xff] %v3603
    %3796 = vst [vmem:[#allocation3 + $0x3d0] sm:$0xff] %v3604
    %3797 = vst [vmem:[#allocation3 + $0x3d8] sm:$0xff] %v3605
    %3798 = vst [vmem:[#allocation3 + $0x3e0] sm:$0xff] %v3606
    %3799 = vst [vmem:[#allocation3 + $0x3e8] sm:$0xff] %v3607
    %3800 = vst [vmem:[#allocation3 + $0x3f0] sm:$0xff] %v3608
    %3801 = vst [vmem:[#allocation3 + $0x3f8] sm:$0xff] %v3609
    %3802 = vst [vmem:[#allocation3 + $0x400] sm:$0xff] %v3610
    %3803 = vst [vmem:[#allocation3 + $0x408] sm:$0xff] %v3611
    %3804 = vst [vmem:[#allocation3 + $0x410] sm:$0xff] %v3612
    %3805 = vst [vmem:[#allocation3 + $0x418] sm:$0xff] %v3613
    %3806 = vst [vmem:[#allocation3 + $0x420] sm:$0xff] %v3614
    %3807 = vst [vmem:[#allocation3 + $0x428] sm:$0xff] %v3615
    %3808 = vst [vmem:[#allocation3 + $0x430] sm:$0xff] %v3616
    %3809 = vst [vmem:[#allocation3 + $0x438] sm:$0xff] %v3617
    %3810 = vst [vmem:[#allocation3 + $0x440] sm:$0xff] %v3618
    %3811 = vst [vmem:[#allocation3 + $0x448] sm:$0xff] %v3619
    %3812 = vst [vmem:[#allocation3 + $0x450] sm:$0xff] %v3620
    %3813 = vst [vmem:[#allocation3 + $0x458] sm:$0xff] %v3621
    %3814 = vst [vmem:[#allocation3 + $0x460] sm:$0xff] %v3622
    %3815 = vst [vmem:[#allocation3 + $0x468] sm:$0xff] %v3623
    %3816 = vst [vmem:[#allocation3 + $0x470] sm:$0xff] %v3624
    %3817 = vst [vmem:[#allocation3 + $0x478] sm:$0xff] %v3625
    %3818 = vst [vmem:[#allocation3 + $0x480] sm:$0xff] %v3626
    %3819 = vst [vmem:[#allocation3 + $0x488] sm:$0xff] %v3627
    %3820 = vst [vmem:[#allocation3 + $0x490] sm:$0xff] %v3628
    %3821 = vst [vmem:[#allocation3 + $0x498] sm:$0xff] %v3629
    %3822 = vst [vmem:[#allocation3 + $0x4a0] sm:$0xff] %v3630
    %3823 = vst [vmem:[#allocation3 + $0x4a8] sm:$0xff] %v3631
    %3824 = vst [vmem:[#allocation3 + $0x4b0] sm:$0xff] %v3632
    %3825 = vst [vmem:[#allocation3 + $0x4b8] sm:$0xff] %v3633
    %3826 = vst [vmem:[#allocation3 + $0x4c0] sm:$0xff] %v3634
    %3827 = vst [vmem:[#allocation3 + $0x4c8] sm:$0xff] %v3635
    %3828 = vst [vmem:[#allocation3 + $0x4d0] sm:$0xff] %v3636
    %3829 = vst [vmem:[#allocation3 + $0x4d8] sm:$0xff] %v3637
    %3830 = vst [vmem:[#allocation3 + $0x4e0] sm:$0xff] %v3638
    %3831 = vst [vmem:[#allocation3 + $0x4e8] sm:$0xff] %v3639
    %3832 = vst [vmem:[#allocation3 + $0x4f0] sm:$0xff] %v3640
    %3833 = vst [vmem:[#allocation3 + $0x4f8] sm:$0xff] %v3641
    %3834 = vst [vmem:[#allocation3 + $0x500] sm:$0xff] %v3642
    %3835 = vst [vmem:[#allocation3 + $0x508] sm:$0xff] %v3643
    %3836 = vst [vmem:[#allocation3 + $0x510] sm:$0xff] %v3644
    %3837 = vst [vmem:[#allocation3 + $0x518] sm:$0xff] %v3645
    %3838 = vst [vmem:[#allocation3 + $0x520] sm:$0xff] %v3646
    %3839 = vst [vmem:[#allocation3 + $0x528] sm:$0xff] %v3647
    %3840 = vst [vmem:[#allocation3 + $0x530] sm:$0xff] %v3648
    %3841 = vst [vmem:[#allocation3 + $0x538] sm:$0xff] %v3649
    %3842 = vst [vmem:[#allocation3 + $0x540] sm:$0xff] %v3650
    %3843 = vst [vmem:[#allocation3 + $0x548] sm:$0xff] %v3651
    %3844 = vst [vmem:[#allocation3 + $0x550] sm:$0xff] %v3652
    %3845 = vst [vmem:[#allocation3 + $0x558] sm:$0xff] %v3653
    %3846 = vst [vmem:[#allocation3 + $0x560] sm:$0xff] %v3654
    %3847 = vst [vmem:[#allocation3 + $0x568] sm:$0xff] %v3655
    %3848 = vst [vmem:[#allocation3 + $0x570] sm:$0xff] %v3656
    %3849 = vst [vmem:[#allocation3 + $0x578] sm:$0xff] %v3657
    %3850 = vst [vmem:[#allocation3 + $0x580] sm:$0xff] %v3658
    %3851 = vst [vmem:[#allocation3 + $0x588] sm:$0xff] %v3659
    %3852 = vst [vmem:[#allocation3 + $0x590] sm:$0xff] %v3660
    %3853 = vst [vmem:[#allocation3 + $0x598] sm:$0xff] %v3661
    %3854 = vst [vmem:[#allocation3 + $0x5a0] sm:$0xff] %v3662
    %3855 = vst [vmem:[#allocation3 + $0x5a8] sm:$0xff] %v3663
    %3856 = vst [vmem:[#allocation3 + $0x5b0] sm:$0xff] %v3664
    %3857 = vst [vmem:[#allocation3 + $0x5b8] sm:$0xff] %v3665
    %3858 = vst [vmem:[#allocation3 + $0x5c0] sm:$0xff] %v3666
    %3859 = vst [vmem:[#allocation3 + $0x5c8] sm:$0xff] %v3667
    %3860 = vst [vmem:[#allocation3 + $0x5d0] sm:$0xff] %v3668
    %3861 = vst [vmem:[#allocation3 + $0x5d8] sm:$0xff] %v3669
    %3862 = vst [vmem:[#allocation3 + $0x5e0] sm:$0xff] %v3670
    %3863 = vst [vmem:[#allocation3 + $0x5e8] sm:$0xff] %v3671
    %3864 = vst [vmem:[#allocation3 + $0x5f0] sm:$0xff] %v3672
    %3865 = vst [vmem:[#allocation3 + $0x5f8] sm:$0xff] %v3673
    %p3866 = scmp.eq.s32.totalorder 0, 0
    // Predicated region
    $region18: #{tpu_custom_call.1} parent=1 // pred_check
      %p3867 = pneg %p3866
    $region19: #{tpu_custom_call.1} parent=1 // pred_check_branch
      %3869 = sbr.rel (%p3867) target = $region21
    $region20: #{tpu_custom_call.1} parent=1 // pred_region
      %3870 = vst [vmem:[#allocation2] sm:$0xff] 0.0
      %3871 = vst [vmem:[#allocation2 + $0x8] sm:$0xff] 0.0
      %3872 = vst [vmem:[#allocation2 + $0x10] sm:$0xff] 0.0
      %3873 = vst [vmem:[#allocation2 + $0x18] sm:$0xff] 0.0
      %3874 = vst [vmem:[#allocation2 + $0x20] sm:$0xff] 0.0
      %3875 = vst [vmem:[#allocation2 + $0x28] sm:$0xff] 0.0
      %3876 = vst [vmem:[#allocation2 + $0x30] sm:$0xff] 0.0
      %3877 = vst [vmem:[#allocation2 + $0x38] sm:$0xff] 0.0
    $region21: #{tpu_custom_call.1} parent=1 // pred_fallthru
      _
    %v3878 = vld [vmem:[#allocation7] sm:$0xff]
    %v3879 = vld [vmem:[#allocation7 + $0x8] sm:$0xff]
    %v3880 = vld [vmem:[#allocation7 + $0x10] sm:$0xff]
    %v3881 = vld [vmem:[#allocation7 + $0x18] sm:$0xff]
    %v3882 = vld [vmem:[#allocation7 + $0x20] sm:$0xff]
    %v3883 = vld [vmem:[#allocation7 + $0x28] sm:$0xff]
    %v3884 = vpack.c.bf16 %v3881, %v3878
    %v3885 = vpack.c.bf16 %v3882, %v3879
    %v3886 = vpack.c.bf16 %v3883, %v3880
    %v3887 = vld [vmem:[#allocation2] sm:$0xff]
    %v3888 = vld [vmem:[#allocation2 + $0x8] sm:$0xff]
    %v3889 = vld [vmem:[#allocation2 + $0x10] sm:$0xff]
    %v3890 = vld [vmem:[#allocation2 + $0x18] sm:$0xff]
    %v3891 = vld [vmem:[#allocation2 + $0x20] sm:$0xff]
    %v3892 = vld [vmem:[#allocation2 + $0x28] sm:$0xff]
    %v3893 = vld [vmem:[#allocation2 + $0x30] sm:$0xff]
    %v3894 = vld [vmem:[#allocation2 + $0x38] sm:$0xff]
    %v3895 = vld [vmem:[#allocation3] sm:$0xff]
    %v3896 = vld [vmem:[#allocation3 + $0x8] sm:$0xff]
    %v3897 = vld [vmem:[#allocation3 + $0x10] sm:$0xff]
    %v3898 = vld [vmem:[#allocation3 + $0x18] sm:$0xff]
    %v3899 = vld [vmem:[#allocation3 + $0x20] sm:$0xff]
    %v3900 = vld [vmem:[#allocation3 + $0x28] sm:$0xff]
    %v3901 = vld [vmem:[#allocation3 + $0x30] sm:$0xff]
    %v3902 = vld [vmem:[#allocation3 + $0x38] sm:$0xff]
    %v3903 = vld [vmem:[#allocation3 + $0x40] sm:$0xff]
    %v3904 = vld [vmem:[#allocation3 + $0x48] sm:$0xff]
    %v3905 = vld [vmem:[#allocation3 + $0x50] sm:$0xff]
    %v3906 = vld [vmem:[#allocation3 + $0x58] sm:$0xff]
    %v3907 = vld [vmem:[#allocation3 + $0x60] sm:$0xff]
    %v3908 = vld [vmem:[#allocation3 + $0x68] sm:$0xff]
    %v3909 = vld [vmem:[#allocation3 + $0x70] sm:$0xff]
    %v3910 = vld [vmem:[#allocation3 + $0x78] sm:$0xff]
    %v3911 = vld [vmem:[#allocation3 + $0x80] sm:$0xff]
    %v3912 = vld [vmem:[#allocation3 + $0x88] sm:$0xff]
    %v3913 = vld [vmem:[#allocation3 + $0x90] sm:$0xff]
    %v3914 = vld [vmem:[#allocation3 + $0x98] sm:$0xff]
    %v3915 = vld [vmem:[#allocation3 + $0xa0] sm:$0xff]
    %v3916 = vld [vmem:[#allocation3 + $0xa8] sm:$0xff]
    %v3917 = vld [vmem:[#allocation3 + $0xb0] sm:$0xff]
    %v3918 = vld [vmem:[#allocation3 + $0xb8] sm:$0xff]
    %v3919 = vld [vmem:[#allocation3 + $0xc0] sm:$0xff]
    %v3920 = vld [vmem:[#allocation3 + $0xc8] sm:$0xff]
    %v3921 = vld [vmem:[#allocation3 + $0xd0] sm:$0xff]
    %v3922 = vld [vmem:[#allocation3 + $0xd8] sm:$0xff]
    %v3923 = vld [vmem:[#allocation3 + $0xe0] sm:$0xff]
    %v3924 = vld [vmem:[#allocation3 + $0xe8] sm:$0xff]
    %v3925 = vld [vmem:[#allocation3 + $0xf0] sm:$0xff]
    %v3926 = vld [vmem:[#allocation3 + $0xf8] sm:$0xff]
    %v3927 = vld [vmem:[#allocation3 + $0x100] sm:$0xff]
    %v3928 = vld [vmem:[#allocation3 + $0x108] sm:$0xff]
    %v3929 = vld [vmem:[#allocation3 + $0x110] sm:$0xff]
    %v3930 = vld [vmem:[#allocation3 + $0x118] sm:$0xff]
    %v3931 = vld [vmem:[#allocation3 + $0x120] sm:$0xff]
    %v3932 = vld [vmem:[#allocation3 + $0x128] sm:$0xff]
    %v3933 = vld [vmem:[#allocation3 + $0x130] sm:$0xff]
    %v3934 = vld [vmem:[#allocation3 + $0x138] sm:$0xff]
    %v3935 = vld [vmem:[#allocation3 + $0x140] sm:$0xff]
    %v3936 = vld [vmem:[#allocation3 + $0x148] sm:$0xff]
    %v3937 = vld [vmem:[#allocation3 + $0x150] sm:$0xff]
    %v3938 = vld [vmem:[#allocation3 + $0x158] sm:$0xff]
    %v3939 = vld [vmem:[#allocation3 + $0x160] sm:$0xff]
    %v3940 = vld [vmem:[#allocation3 + $0x168] sm:$0xff]
    %v3941 = vld [vmem:[#allocation3 + $0x170] sm:$0xff]
    %v3942 = vld [vmem:[#allocation3 + $0x178] sm:$0xff]
    %v3943 = vld [vmem:[#allocation3 + $0x180] sm:$0xff]
    %v3944 = vld [vmem:[#allocation3 + $0x188] sm:$0xff]
    %v3945 = vld [vmem:[#allocation3 + $0x190] sm:$0xff]
    %v3946 = vld [vmem:[#allocation3 + $0x198] sm:$0xff]
    %v3947 = vld [vmem:[#allocation3 + $0x1a0] sm:$0xff]
    %v3948 = vld [vmem:[#allocation3 + $0x1a8] sm:$0xff]
    %v3949 = vld [vmem:[#allocation3 + $0x1b0] sm:$0xff]
    %v3950 = vld [vmem:[#allocation3 + $0x1b8] sm:$0xff]
    %v3951 = vld [vmem:[#allocation3 + $0x1c0] sm:$0xff]
    %v3952 = vld [vmem:[#allocation3 + $0x1c8] sm:$0xff]
    %v3953 = vld [vmem:[#allocation3 + $0x1d0] sm:$0xff]
    %v3954 = vld [vmem:[#allocation3 + $0x1d8] sm:$0xff]
    %v3955 = vld [vmem:[#allocation3 + $0x1e0] sm:$0xff]
    %v3956 = vld [vmem:[#allocation3 + $0x1e8] sm:$0xff]
    %v3957 = vld [vmem:[#allocation3 + $0x1f0] sm:$0xff]
    %v3958 = vld [vmem:[#allocation3 + $0x1f8] sm:$0xff]
    %v3959 = vld [vmem:[#allocation3 + $0x200] sm:$0xff]
    %v3960 = vld [vmem:[#allocation3 + $0x208] sm:$0xff]
    %v3961 = vld [vmem:[#allocation3 + $0x210] sm:$0xff]
    %v3962 = vld [vmem:[#allocation3 + $0x218] sm:$0xff]
    %v3963 = vld [vmem:[#allocation3 + $0x220] sm:$0xff]
    %v3964 = vld [vmem:[#allocation3 + $0x228] sm:$0xff]
    %v3965 = vld [vmem:[#allocation3 + $0x230] sm:$0xff]
    %v3966 = vld [vmem:[#allocation3 + $0x238] sm:$0xff]
    %v3967 = vld [vmem:[#allocation3 + $0x240] sm:$0xff]
    %v3968 = vld [vmem:[#allocation3 + $0x248] sm:$0xff]
    %v3969 = vld [vmem:[#allocation3 + $0x250] sm:$0xff]
    %v3970 = vld [vmem:[#allocation3 + $0x258] sm:$0xff]
    %v3971 = vld [vmem:[#allocation3 + $0x260] sm:$0xff]
    %v3972 = vld [vmem:[#allocation3 + $0x268] sm:$0xff]
    %v3973 = vld [vmem:[#allocation3 + $0x270] sm:$0xff]
    %v3974 = vld [vmem:[#allocation3 + $0x278] sm:$0xff]
    %v3975 = vld [vmem:[#allocation3 + $0x280] sm:$0xff]
    %v3976 = vld [vmem:[#allocation3 + $0x288] sm:$0xff]
    %v3977 = vld [vmem:[#allocation3 + $0x290] sm:$0xff]
    %v3978 = vld [vmem:[#allocation3 + $0x298] sm:$0xff]
    %v3979 = vld [vmem:[#allocation3 + $0x2a0] sm:$0xff]
    %v3980 = vld [vmem:[#allocation3 + $0x2a8] sm:$0xff]
    %v3981 = vld [vmem:[#allocation3 + $0x2b0] sm:$0xff]
    %v3982 = vld [vmem:[#allocation3 + $0x2b8] sm:$0xff]
    %v3983 = vld [vmem:[#allocation3 + $0x2c0] sm:$0xff]
    %v3984 = vld [vmem:[#allocation3 + $0x2c8] sm:$0xff]
    %v3985 = vld [vmem:[#allocation3 + $0x2d0] sm:$0xff]
    %v3986 = vld [vmem:[#allocation3 + $0x2d8] sm:$0xff]
    %v3987 = vld [vmem:[#allocation3 + $0x2e0] sm:$0xff]
    %v3988 = vld [vmem:[#allocation3 + $0x2e8] sm:$0xff]
    %v3989 = vld [vmem:[#allocation3 + $0x2f0] sm:$0xff]
    %v3990 = vld [vmem:[#allocation3 + $0x2f8] sm:$0xff]
    %v3991 = vld [vmem:[#allocation3 + $0x300] sm:$0xff]
    %v3992 = vld [vmem:[#allocation3 + $0x308] sm:$0xff]
    %v3993 = vld [vmem:[#allocation3 + $0x310] sm:$0xff]
    %v3994 = vld [vmem:[#allocation3 + $0x318] sm:$0xff]
    %v3995 = vld [vmem:[#allocation3 + $0x320] sm:$0xff]
    %v3996 = vld [vmem:[#allocation3 + $0x328] sm:$0xff]
    %v3997 = vld [vmem:[#allocation3 + $0x330] sm:$0xff]
    %v3998 = vld [vmem:[#allocation3 + $0x338] sm:$0xff]
    %v3999 = vld [vmem:[#allocation3 + $0x340] sm:$0xff]
    %v4000 = vld [vmem:[#allocation3 + $0x348] sm:$0xff]
    %v4001 = vld [vmem:[#allocation3 + $0x350] sm:$0xff]
    %v4002 = vld [vmem:[#allocation3 + $0x358] sm:$0xff]
    %v4003 = vld [vmem:[#allocation3 + $0x360] sm:$0xff]
    %v4004 = vld [vmem:[#allocation3 + $0x368] sm:$0xff]
    %v4005 = vld [vmem:[#allocation3 + $0x370] sm:$0xff]
    %v4006 = vld [vmem:[#allocation3 + $0x378] sm:$0xff]
    %v4007 = vld [vmem:[#allocation3 + $0x380] sm:$0xff]
    %v4008 = vld [vmem:[#allocation3 + $0x388] sm:$0xff]
    %v4009 = vld [vmem:[#allocation3 + $0x390] sm:$0xff]
    %v4010 = vld [vmem:[#allocation3 + $0x398] sm:$0xff]
    %v4011 = vld [vmem:[#allocation3 + $0x3a0] sm:$0xff]
    %v4012 = vld [vmem:[#allocation3 + $0x3a8] sm:$0xff]
    %v4013 = vld [vmem:[#allocation3 + $0x3b0] sm:$0xff]
    %v4014 = vld [vmem:[#allocation3 + $0x3b8] sm:$0xff]
    %v4015 = vld [vmem:[#allocation3 + $0x3c0] sm:$0xff]
    %v4016 = vld [vmem:[#allocation3 + $0x3c8] sm:$0xff]
    %v4017 = vld [vmem:[#allocation3 + $0x3d0] sm:$0xff]
    %v4018 = vld [vmem:[#allocation3 + $0x3d8] sm:$0xff]
    %v4019 = vld [vmem:[#allocation3 + $0x3e0] sm:$0xff]
    %v4020 = vld [vmem:[#allocation3 + $0x3e8] sm:$0xff]
    %v4021 = vld [vmem:[#allocation3 + $0x3f0] sm:$0xff]
    %v4022 = vld [vmem:[#allocation3 + $0x3f8] sm:$0xff]
    %v4023 = vld [vmem:[#allocation3 + $0x400] sm:$0xff]
    %v4024 = vld [vmem:[#allocation3 + $0x408] sm:$0xff]
    %v4025 = vld [vmem:[#allocation3 + $0x410] sm:$0xff]
    %v4026 = vld [vmem:[#allocation3 + $0x418] sm:$0xff]
    %v4027 = vld [vmem:[#allocation3 + $0x420] sm:$0xff]
    %v4028 = vld [vmem:[#allocation3 + $0x428] sm:$0xff]
    %v4029 = vld [vmem:[#allocation3 + $0x430] sm:$0xff]
    %v4030 = vld [vmem:[#allocation3 + $0x438] sm:$0xff]
    %v4031 = vld [vmem:[#allocation3 + $0x440] sm:$0xff]
    %v4032 = vld [vmem:[#allocation3 + $0x448] sm:$0xff]
    %v4033 = vld [vmem:[#allocation3 + $0x450] sm:$0xff]
    %v4034 = vld [vmem:[#allocation3 + $0x458] sm:$0xff]
    %v4035 = vld [vmem:[#allocation3 + $0x460] sm:$0xff]
    %v4036 = vld [vmem:[#allocation3 + $0x468] sm:$0xff]
    %v4037 = vld [vmem:[#allocation3 + $0x470] sm:$0xff]
    %v4038 = vld [vmem:[#allocation3 + $0x478] sm:$0xff]
    %v4039 = vld [vmem:[#allocation3 + $0x480] sm:$0xff]
    %v4040 = vld [vmem:[#allocation3 + $0x488] sm:$0xff]
    %v4041 = vld [vmem:[#allocation3 + $0x490] sm:$0xff]
    %v4042 = vld [vmem:[#allocation3 + $0x498] sm:$0xff]
    %v4043 = vld [vmem:[#allocation3 + $0x4a0] sm:$0xff]
    %v4044 = vld [vmem:[#allocation3 + $0x4a8] sm:$0xff]
    %v4045 = vld [vmem:[#allocation3 + $0x4b0] sm:$0xff]
    %v4046 = vld [vmem:[#allocation3 + $0x4b8] sm:$0xff]
    %v4047 = vld [vmem:[#allocation3 + $0x4c0] sm:$0xff]
    %v4048 = vld [vmem:[#allocation3 + $0x4c8] sm:$0xff]
    %v4049 = vld [vmem:[#allocation3 + $0x4d0] sm:$0xff]
    %v4050 = vld [vmem:[#allocation3 + $0x4d8] sm:$0xff]
    %v4051 = vld [vmem:[#allocation3 + $0x4e0] sm:$0xff]
    %v4052 = vld [vmem:[#allocation3 + $0x4e8] sm:$0xff]
    %v4053 = vld [vmem:[#allocation3 + $0x4f0] sm:$0xff]
    %v4054 = vld [vmem:[#allocation3 + $0x4f8] sm:$0xff]
    %v4055 = vld [vmem:[#allocation3 + $0x500] sm:$0xff]
    %v4056 = vld [vmem:[#allocation3 + $0x508] sm:$0xff]
    %v4057 = vld [vmem:[#allocation3 + $0x510] sm:$0xff]
    %v4058 = vld [vmem:[#allocation3 + $0x518] sm:$0xff]
    %v4059 = vld [vmem:[#allocation3 + $0x520] sm:$0xff]
    %v4060 = vld [vmem:[#allocation3 + $0x528] sm:$0xff]
    %v4061 = vld [vmem:[#allocation3 + $0x530] sm:$0xff]
    %v4062 = vld [vmem:[#allocation3 + $0x538] sm:$0xff]
    %v4063 = vld [vmem:[#allocation3 + $0x540] sm:$0xff]
    %v4064 = vld [vmem:[#allocation3 + $0x548] sm:$0xff]
    %v4065 = vld [vmem:[#allocation3 + $0x550] sm:$0xff]
    %v4066 = vld [vmem:[#allocation3 + $0x558] sm:$0xff]
    %v4067 = vld [vmem:[#allocation3 + $0x560] sm:$0xff]
    %v4068 = vld [vmem:[#allocation3 + $0x568] sm:$0xff]
    %v4069 = vld [vmem:[#allocation3 + $0x570] sm:$0xff]
    %v4070 = vld [vmem:[#allocation3 + $0x578] sm:$0xff]
    %v4071 = vld [vmem:[#allocation3 + $0x580] sm:$0xff]
    %v4072 = vld [vmem:[#allocation3 + $0x588] sm:$0xff]
    %v4073 = vld [vmem:[#allocation3 + $0x590] sm:$0xff]
    %v4074 = vld [vmem:[#allocation3 + $0x598] sm:$0xff]
    %v4075 = vld [vmem:[#allocation3 + $0x5a0] sm:$0xff]
    %v4076 = vld [vmem:[#allocation3 + $0x5a8] sm:$0xff]
    %v4077 = vld [vmem:[#allocation3 + $0x5b0] sm:$0xff]
    %v4078 = vld [vmem:[#allocation3 + $0x5b8] sm:$0xff]
    %v4079 = vld [vmem:[#allocation3 + $0x5c0] sm:$0xff]
    %v4080 = vld [vmem:[#allocation3 + $0x5c8] sm:$0xff]
    %v4081 = vld [vmem:[#allocation3 + $0x5d0] sm:$0xff]
    %v4082 = vld [vmem:[#allocation3 + $0x5d8] sm:$0xff]
    %v4083 = vld [vmem:[#allocation3 + $0x5e0] sm:$0xff]
    %v4084 = vld [vmem:[#allocation3 + $0x5e8] sm:$0xff]
    %v4085 = vld [vmem:[#allocation3 + $0x5f0] sm:$0xff]
    %v4086 = vld [vmem:[#allocation3 + $0x5f8] sm:$0xff]
    %v4087 = vpack.c.bf16 %v3899, %v3895
    %v4088 = vpack.c.bf16 %v3900, %v3896
    %v4089 = vpack.c.bf16 %v3901, %v3897
    %v4090 = vpack.c.bf16 %v3902, %v3898
    %v4091 = vpack.c.bf16 %v3907, %v3903
    %v4092 = vpack.c.bf16 %v3908, %v3904
    %v4093 = vpack.c.bf16 %v3909, %v3905
    %v4094 = vpack.c.bf16 %v3910, %v3906
    %v4095 = vpack.c.bf16 %v3915, %v3911
    %v4096 = vpack.c.bf16 %v3916, %v3912
    %v4097 = vpack.c.bf16 %v3917, %v3913
    %v4098 = vpack.c.bf16 %v3918, %v3914
    %v4099 = vpack.c.bf16 %v3923, %v3919
    %v4100 = vpack.c.bf16 %v3924, %v3920
    %v4101 = vpack.c.bf16 %v3925, %v3921
    %v4102 = vpack.c.bf16 %v3926, %v3922
    %v4103 = vpack.c.bf16 %v3931, %v3927
    %v4104 = vpack.c.bf16 %v3932, %v3928
    %v4105 = vpack.c.bf16 %v3933, %v3929
    %v4106 = vpack.c.bf16 %v3934, %v3930
    %v4107 = vpack.c.bf16 %v3939, %v3935
    %v4108 = vpack.c.bf16 %v3940, %v3936
    %v4109 = vpack.c.bf16 %v3941, %v3937
    %v4110 = vpack.c.bf16 %v3942, %v3938
    %v4111 = vpack.c.bf16 %v3947, %v3943
    %v4112 = vpack.c.bf16 %v3948, %v3944
    %v4113 = vpack.c.bf16 %v3949, %v3945
    %v4114 = vpack.c.bf16 %v3950, %v3946
    %v4115 = vpack.c.bf16 %v3955, %v3951
    %v4116 = vpack.c.bf16 %v3956, %v3952
    %v4117 = vpack.c.bf16 %v3957, %v3953
    %v4118 = vpack.c.bf16 %v3958, %v3954
    %v4119 = vpack.c.bf16 %v3963, %v3959
    %v4120 = vpack.c.bf16 %v3964, %v3960
    %v4121 = vpack.c.bf16 %v3965, %v3961
    %v4122 = vpack.c.bf16 %v3966, %v3962
    %v4123 = vpack.c.bf16 %v3971, %v3967
    %v4124 = vpack.c.bf16 %v3972, %v3968
    %v4125 = vpack.c.bf16 %v3973, %v3969
    %v4126 = vpack.c.bf16 %v3974, %v3970
    %v4127 = vpack.c.bf16 %v3979, %v3975
    %v4128 = vpack.c.bf16 %v3980, %v3976
    %v4129 = vpack.c.bf16 %v3981, %v3977
    %v4130 = vpack.c.bf16 %v3982, %v3978
    %v4131 = vpack.c.bf16 %v3987, %v3983
    %v4132 = vpack.c.bf16 %v3988, %v3984
    %v4133 = vpack.c.bf16 %v3989, %v3985
    %v4134 = vpack.c.bf16 %v3990, %v3986
    %v4135 = vpack.c.bf16 %v3995, %v3991
    %v4136 = vpack.c.bf16 %v3996, %v3992
    %v4137 = vpack.c.bf16 %v3997, %v3993
    %v4138 = vpack.c.bf16 %v3998, %v3994
    %v4139 = vpack.c.bf16 %v4003, %v3999
    %v4140 = vpack.c.bf16 %v4004, %v4000
    %v4141 = vpack.c.bf16 %v4005, %v4001
    %v4142 = vpack.c.bf16 %v4006, %v4002
    %v4143 = vpack.c.bf16 %v4011, %v4007
    %v4144 = vpack.c.bf16 %v4012, %v4008
    %v4145 = vpack.c.bf16 %v4013, %v4009
    %v4146 = vpack.c.bf16 %v4014, %v4010
    %v4147 = vpack.c.bf16 %v4019, %v4015
    %v4148 = vpack.c.bf16 %v4020, %v4016
    %v4149 = vpack.c.bf16 %v4021, %v4017
    %v4150 = vpack.c.bf16 %v4022, %v4018
    %v4151 = vpack.c.bf16 %v4027, %v4023
    %v4152 = vpack.c.bf16 %v4028, %v4024
    %v4153 = vpack.c.bf16 %v4029, %v4025
    %v4154 = vpack.c.bf16 %v4030, %v4026
    %v4155 = vpack.c.bf16 %v4035, %v4031
    %v4156 = vpack.c.bf16 %v4036, %v4032
    %v4157 = vpack.c.bf16 %v4037, %v4033
    %v4158 = vpack.c.bf16 %v4038, %v4034
    %v4159 = vpack.c.bf16 %v4043, %v4039
    %v4160 = vpack.c.bf16 %v4044, %v4040
    %v4161 = vpack.c.bf16 %v4045, %v4041
    %v4162 = vpack.c.bf16 %v4046, %v4042
    %v4163 = vpack.c.bf16 %v4051, %v4047
    %v4164 = vpack.c.bf16 %v4052, %v4048
    %v4165 = vpack.c.bf16 %v4053, %v4049
    %v4166 = vpack.c.bf16 %v4054, %v4050
    %v4167 = vpack.c.bf16 %v4059, %v4055
    %v4168 = vpack.c.bf16 %v4060, %v4056
    %v4169 = vpack.c.bf16 %v4061, %v4057
    %v4170 = vpack.c.bf16 %v4062, %v4058
    %v4171 = vpack.c.bf16 %v4067, %v4063
    %v4172 = vpack.c.bf16 %v4068, %v4064
    %v4173 = vpack.c.bf16 %v4069, %v4065
    %v4174 = vpack.c.bf16 %v4070, %v4066
    %v4175 = vpack.c.bf16 %v4075, %v4071
    %v4176 = vpack.c.bf16 %v4076, %v4072
    %v4177 = vpack.c.bf16 %v4077, %v4073
    %v4178 = vpack.c.bf16 %v4078, %v4074
    %v4179 = vpack.c.bf16 %v4083, %v4079
    %v4180 = vpack.c.bf16 %v4084, %v4080
    %v4181 = vpack.c.bf16 %v4085, %v4081
    %v4182 = vpack.c.bf16 %v4086, %v4082
    %4183 = vmatprep.subr.bf16.mxu0 %v4088
    %4184 = vmatpush1.bf16.msra.mxu0 %v4087
    %4185 = vmatprep.subr.bf16.mxu0 %v4092
    %4186 = vmatpush1.bf16.msra.mxu0 %v4091
    %4187 = vmatprep.subr.bf16.mxu0 %v4096
    %4188 = vmatpush1.bf16.msra.mxu0 %v4095
    %4189 = vmatprep.subr.bf16.mxu0 %v4100
    %4190 = vmatpush1.bf16.msra.mxu0 %v4099
    %4191 = vmatprep.subr.bf16.mxu0 %v4104
    %4192 = vmatpush1.bf16.msra.mxu0 %v4103
    %4193 = vmatprep.subr.bf16.mxu0 %v4108
    %4194 = vmatpush1.bf16.msra.mxu0 %v4107
    %4195 = vmatprep.subr.bf16.mxu0 %v4112
    %4196 = vmatpush1.bf16.msra.mxu0 %v4111
    %4197 = vmatprep.subr.bf16.mxu0 %v4116
    %4198 = vmatpush1.bf16.msra.mxu0 %v4115
    %4199 = vmatprep.subr.bf16.mxu0 %v4120
    %4200 = vmatpush1.bf16.msra.mxu0 %v4119
    %4201 = vmatprep.subr.bf16.mxu0 %v4124
    %4202 = vmatpush1.bf16.msra.mxu0 %v4123
    %4203 = vmatprep.subr.bf16.mxu0 %v4128
    %4204 = vmatpush1.bf16.msra.mxu0 %v4127
    %4205 = vmatprep.subr.bf16.mxu0 %v4132
    %4206 = vmatpush1.bf16.msra.mxu0 %v4131
    %4207 = vmatprep.subr.bf16.mxu0 %v4136
    %4208 = vmatpush1.bf16.msra.mxu0 %v4135
    %4209 = vmatprep.subr.bf16.mxu0 %v4140
    %4210 = vmatpush1.bf16.msra.mxu0 %v4139
    %4211 = vmatprep.subr.bf16.mxu0 %v4144
    %4212 = vmatpush1.bf16.msra.mxu0 %v4143
    %4213 = vmatprep.subr.bf16.mxu0 %v4148
    %4214 = vmatpush1.bf16.msra.mxu0 %v4147
    %4215 = vmatprep.mubr.bf16.mxu0 %v3885
    %4216 = vmatmul.mubr.bf16.gmra.mrb[0].mxu0 %v3884
    %v4217 = vpop.f32.mrb[0].mxu0
    %v4218 = vadd.f32 0.0, %v4217
    %v4219 = vpop.f32.mrb[0].mxu0
    %v4220 = vadd.f32 0.0, %v4219
    %v4221 = vpop.f32.mrb[0].mxu0
    %v4222 = vadd.f32 0.0, %v4221
    %v4223 = vpop.f32.mrb[0].mxu0
    %v4224 = vadd.f32 0.0, %v4223
    %4225 = vdwg.mxu0
    %4226 = vmatprep.subr.bf16.mxu0 %v4152
    %4227 = vmatpush1.bf16.msra.mxu0 %v4151
    %4228 = vmatprep.subr.bf16.mxu0 %v4156
    %4229 = vmatpush1.bf16.msra.mxu0 %v4155
    %4230 = vmatprep.subr.bf16.mxu0 %v4160
    %4231 = vmatpush1.bf16.msra.mxu0 %v4159
    %4232 = vmatprep.subr.bf16.mxu0 %v4164
    %4233 = vmatpush1.bf16.msra.mxu0 %v4163
    %4234 = vmatprep.subr.bf16.mxu0 %v4168
    %4235 = vmatpush1.bf16.msra.mxu0 %v4167
    %4236 = vmatprep.subr.bf16.mxu0 %v4172
    %4237 = vmatpush1.bf16.msra.mxu0 %v4171
    %4238 = vmatprep.subr.bf16.mxu0 %v4176
    %4239 = vmatpush1.bf16.msra.mxu0 %v4175
    %4240 = vmatprep.subr.bf16.mxu0 %v4180
    %4241 = vmatpush1.bf16.msra.mxu0 %v4179
    %4242 = vmatprep.subr.bf16.mxu0 0
    %4243 = vmatpush1.bf16.msra.mxu0 0
    %4244 = vmatprep.subr.bf16.mxu0 0
    %4245 = vmatpush1.bf16.msra.mxu0 0
    %4246 = vmatprep.subr.bf16.mxu0 0
    %4247 = vmatpush1.bf16.msra.mxu0 0
    %4248 = vmatprep.subr.bf16.mxu0 0
    %4249 = vmatpush1.bf16.msra.mxu0 0
    %4250 = vmatprep.subr.bf16.mxu0 0
    %4251 = vmatpush1.bf16.msra.mxu0 0
    %4252 = vmatprep.subr.bf16.mxu0 0
    %4253 = vmatpush1.bf16.msra.mxu0 0
    %4254 = vmatprep.subr.bf16.mxu0 0
    %4255 = vmatpush1.bf16.msra.mxu0 0
    %4256 = vmatprep.subr.bf16.mxu0 0
    %4257 = vmatpush1.bf16.msra.mxu0 0
    %4258 = vmatprep.mubr.bf16.mxu0 0
    %4259 = vmatmul.mubr.bf16.gmra.mrb[0].mxu0 %v3886
    %v4260 = vpop.f32.mrb[0].mxu0
    %v4261 = vadd.f32 %v4218, %v4260
    %v4262 = vpop.f32.mrb[0].mxu0
    %v4263 = vadd.f32 %v4220, %v4262
    %v4264 = vpop.f32.mrb[0].mxu0
    %v4265 = vadd.f32 %v4222, %v4264
    %v4266 = vpop.f32.mrb[0].mxu0
    %v4267 = vadd.f32 %v4224, %v4266
    %4268 = vdwg.mxu0
    %4269 = vmatprep.subr.bf16.mxu0 %v4090
    %4270 = vmatpush1.bf16.msra.mxu0 %v4089
    %4271 = vmatprep.subr.bf16.mxu0 %v4094
    %4272 = vmatpush1.bf16.msra.mxu0 %v4093
    %4273 = vmatprep.subr.bf16.mxu0 %v4098
    %4274 = vmatpush1.bf16.msra.mxu0 %v4097
    %4275 = vmatprep.subr.bf16.mxu0 %v4102
    %4276 = vmatpush1.bf16.msra.mxu0 %v4101
    %4277 = vmatprep.subr.bf16.mxu0 %v4106
    %4278 = vmatpush1.bf16.msra.mxu0 %v4105
    %4279 = vmatprep.subr.bf16.mxu0 %v4110
    %4280 = vmatpush1.bf16.msra.mxu0 %v4109
    %4281 = vmatprep.subr.bf16.mxu0 %v4114
    %4282 = vmatpush1.bf16.msra.mxu0 %v4113
    %4283 = vmatprep.subr.bf16.mxu0 %v4118
    %4284 = vmatpush1.bf16.msra.mxu0 %v4117
    %4285 = vmatprep.subr.bf16.mxu0 %v4122
    %4286 = vmatpush1.bf16.msra.mxu0 %v4121
    %4287 = vmatprep.subr.bf16.mxu0 %v4126
    %4288 = vmatpush1.bf16.msra.mxu0 %v4125
    %4289 = vmatprep.subr.bf16.mxu0 %v4130
    %4290 = vmatpush1.bf16.msra.mxu0 %v4129
    %4291 = vmatprep.subr.bf16.mxu0 %v4134
    %4292 = vmatpush1.bf16.msra.mxu0 %v4133
    %4293 = vmatprep.subr.bf16.mxu0 %v4138
    %4294 = vmatpush1.bf16.msra.mxu0 %v4137
    %4295 = vmatprep.subr.bf16.mxu0 %v4142
    %4296 = vmatpush1.bf16.msra.mxu0 %v4141
    %4297 = vmatprep.subr.bf16.mxu0 %v4146
    %4298 = vmatpush1.bf16.msra.mxu0 %v4145
    %4299 = vmatprep.subr.bf16.mxu0 %v4150
    %4300 = vmatpush1.bf16.msra.mxu0 %v4149
    %4301 = vmatprep.mubr.bf16.mxu0 %v3885
    %4302 = vmatmul.mubr.bf16.gmra.mrb[0].mxu0 %v3884
    %v4303 = vpop.f32.mrb[0].mxu0
    %v4304 = vadd.f32 0.0, %v4303
    %v4305 = vpop.f32.mrb[0].mxu0
    %v4306 = vadd.f32 0.0, %v4305
    %v4307 = vpop.f32.mrb[0].mxu0
    %v4308 = vadd.f32 0.0, %v4307
    %v4309 = vpop.f32.mrb[0].mxu0
    %v4310 = vadd.f32 0.0, %v4309
    %4311 = vdwg.mxu0
    %4312 = vmatprep.subr.bf16.mxu0 %v4154
    %4313 = vmatpush1.bf16.msra.mxu0 %v4153
    %4314 = vmatprep.subr.bf16.mxu0 %v4158
    %4315 = vmatpush1.bf16.msra.mxu0 %v4157
    %4316 = vmatprep.subr.bf16.mxu0 %v4162
    %4317 = vmatpush1.bf16.msra.mxu0 %v4161
    %4318 = vmatprep.subr.bf16.mxu0 %v4166
    %4319 = vmatpush1.bf16.msra.mxu0 %v4165
    %4320 = vmatprep.subr.bf16.mxu0 %v4170
    %4321 = vmatpush1.bf16.msra.mxu0 %v4169
    %4322 = vmatprep.subr.bf16.mxu0 %v4174
    %4323 = vmatpush1.bf16.msra.mxu0 %v4173
    %4324 = vmatprep.subr.bf16.mxu0 %v4178
    %4325 = vmatpush1.bf16.msra.mxu0 %v4177
    %4326 = vmatprep.subr.bf16.mxu0 %v4182
    %4327 = vmatpush1.bf16.msra.mxu0 %v4181
    %4328 = vmatprep.subr.bf16.mxu0 0
    %4329 = vmatpush1.bf16.msra.mxu0 0
    %4330 = vmatprep.subr.bf16.mxu0 0
    %4331 = vmatpush1.bf16.msra.mxu0 0
    %4332 = vmatprep.subr.bf16.mxu0 0
    %4333 = vmatpush1.bf16.msra.mxu0 0
    %4334 = vmatprep.subr.bf16.mxu0 0
    %4335 = vmatpush1.bf16.msra.mxu0 0
    %4336 = vmatprep.subr.bf16.mxu0 0
    %4337 = vmatpush1.bf16.msra.mxu0 0
    %4338 = vmatprep.subr.bf16.mxu0 0
    %4339 = vmatpush1.bf16.msra.mxu0 0
    %4340 = vmatprep.subr.bf16.mxu0 0
    %4341 = vmatpush1.bf16.msra.mxu0 0
    %4342 = vmatprep.subr.bf16.mxu0 0
    %4343 = vmatpush1.bf16.msra.mxu0 0
    %4344 = vmatprep.mubr.bf16.mxu0 0
    %4345 = vmatmul.mubr.bf16.gmra.mrb[0].mxu0 %v3886
    %v4346 = vpop.f32.mrb[0].mxu0
    %v4347 = vadd.f32 %v4304, %v4346
    %v4348 = vpop.f32.mrb[0].mxu0
    %v4349 = vadd.f32 %v4306, %v4348
    %v4350 = vpop.f32.mrb[0].mxu0
    %v4351 = vadd.f32 %v4308, %v4350
    %v4352 = vpop.f32.mrb[0].mxu0
    %v4353 = vadd.f32 %v4310, %v4352
    %4354 = vdwg.mxu0
    %v4355 = vadd.f32 %v3887, %v4261
    %v4356 = vadd.f32 %v3888, %v4263
    %v4357 = vadd.f32 %v3889, %v4347
    %v4358 = vadd.f32 %v3890, %v4349
    %v4359 = vadd.f32 %v3891, %v4265
    %v4360 = vadd.f32 %v3892, %v4267
    %v4361 = vadd.f32 %v3893, %v4351
    %v4362 = vadd.f32 %v3894, %v4353
    %4363 = vst [vmem:[#allocation2] sm:$0xff] %v4355
    %4364 = vst [vmem:[#allocation2 + $0x8] sm:$0xff] %v4356
    %4365 = vst [vmem:[#allocation2 + $0x10] sm:$0xff] %v4357
    %4366 = vst [vmem:[#allocation2 + $0x18] sm:$0xff] %v4358
    %4367 = vst [vmem:[#allocation2 + $0x20] sm:$0xff] %v4359
    %4368 = vst [vmem:[#allocation2 + $0x28] sm:$0xff] %v4360
    %4369 = vst [vmem:[#allocation2 + $0x30] sm:$0xff] %v4361
    %4370 = vst [vmem:[#allocation2 + $0x38] sm:$0xff] %v4362
    // Predicated region
    $region22: #{tpu_custom_call.1} parent=1 // pred_check
      %p4371 = pneg %p3866
    $region23: #{tpu_custom_call.1} parent=1 // pred_check_branch
      %4373 = sbr.rel (%p4371) target = $region25
    $region24: #{tpu_custom_call.1} parent=1 // pred_region
      %v4374 = vld [vmem:[#allocation2] sm:$0xff]
      %v4375 = vld [vmem:[#allocation2 + $0x8] sm:$0xff]
      %v4376 = vld [vmem:[#allocation2 + $0x10] sm:$0xff]
      %v4377 = vld [vmem:[#allocation2 + $0x18] sm:$0xff]
      %v4378 = vld [vmem:[#allocation2 + $0x20] sm:$0xff]
      %v4379 = vld [vmem:[#allocation2 + $0x28] sm:$0xff]
      %v4380 = vld [vmem:[#allocation2 + $0x30] sm:$0xff]
      %v4381 = vld [vmem:[#allocation2 + $0x38] sm:$0xff]
      %4382 = vst [vmem:[#allocation9] sm:$0xff] %v4374
      %4383 = vst [vmem:[#allocation9 + $0x8] sm:$0xff] %v4375
      %4384 = vst [vmem:[#allocation9 + $0x10] sm:$0xff] %v4376
      %4385 = vst [vmem:[#allocation9 + $0x18] sm:$0xff] %v4377
      %4386 = vst [vmem:[#allocation9 + $0x20] sm:$0xff] %v4378
      %4387 = vst [vmem:[#allocation9 + $0x28] sm:$0xff] %v4379
      %4388 = vst [vmem:[#allocation9 + $0x30] sm:$0xff] %v4380
      %4389 = vst [vmem:[#allocation9 + $0x38] sm:$0xff] %v4381
    $region25: #{tpu_custom_call.1} parent=1 // pred_fallthru
      _
    // Predicated region
    $region26: #{tpu_custom_call.1} parent=1 // pred_check
      _
    $region27: #{tpu_custom_call.1} parent=1 // pred_check_branch
      %4391 = sbr.rel (0) target = $region29
    $region28: #{tpu_custom_call.1} parent=1 // pred_region
      %s4393 = ssub.s32 1024, 1024
      %4394 = vsyncadd [#allocation6], %s4393
      %s4395 = sshll.u32 [#allocation9], 4
      %s4396 = int_to_ptr.vmem [resolvable:$true] %s4395
      %4401 = dma.vmem_to_hbm [thread:$0]  %s4396, 1024, %s2, [#allocation6], 512, 512, 32
    $region29: #{tpu_custom_call.1} parent=1 // pred_fallthru
      _
    // Predicated region
    $region30: #{tpu_custom_call.1} parent=1 // pred_check
      _
    $region31: #{tpu_custom_call.1} parent=1 // pred_check_branch
      %4403 = sbr.rel (0) target = $region33
    $region32: #{tpu_custom_call.1} parent=1 // pred_region
      %4404 = dma.done [#allocation6], 1024
    $region33: #{tpu_custom_call.1} parent=1 // pred_fallthru
      _
    %4405 = vsyncpa [#allocation5], 1
    %4406 = vsyncpa [#allocation8], 1
    %4407 = vsyncpa [#allocation6], 1

</llo_original>
